<compile_context>
chip_gen: v5e
topology: v5e:2x2
jax: 0.10.0
libtpu: 0.0.40
codegen_flags: <defaults>
</compile_context>

<pallas_src>
import functools
import math

import jax
import jax.numpy as jnp
from jax.experimental import pallas as pl
from jax.experimental.pallas import tpu as pltpu

# ----------------------------- model config ---------------------------------
IMG_SIZE = 16
PATCH = 4
IN_CHANS = 3
EMBED = 32
DEPTH = 2
HEADS = 4
HEAD_DIM = EMBED // HEADS
MLP_RATIO = 4.0
MLP_HIDDEN = int(EMBED * MLP_RATIO)          # 128
NUM_CLASSES = 10
NUM_PATCHES = (IMG_SIZE // PATCH) ** 2       # 16
SEQ = NUM_PATCHES + 1                        # 17
SEQ_PAD = 24                                 # 17 rounded up to a multiple of 8
PATCH_DIM = IN_CHANS * PATCH * PATCH         # 48
LN_EPS = 1e-5
NC_PAD = 128                                 # head padded to a full 128-lane slab
LANES = 128

# packed "small slab" row layout: all tiny per-row params in one (SMALL_ROWS, 128) f32 slab
_ROW_NORM_W, _ROW_NORM_B, _ROW_HEAD_B = 0, 1, 2
_BLK_BASE, _BLK_ROWS = 3, 8   # per depth: ln1_w, ln1_b, ln2_w, ln2_b, proj_b, fc2_b, qkv_b, fc1_b
SMALL_ROWS = ((_BLK_BASE + DEPTH * _BLK_ROWS + 7) // 8) * 8   # 19 -> 24

_INV_SQRT2 = 1.0 / math.sqrt(2.0)


def _gelu_exact(y):
    # PyTorch nn.GELU() default: exact erf-based GELU.
    return 0.5 * y * (1.0 + jax.lax.erf(y * _INV_SQRT2))


def _gelu_tanh(y):
    # tanh approximation: runs on the EUP slot, keeps the VALU free.
    return jax.nn.gelu(y, approximate=True)


# ----------------------------- fused Pallas kernel ---------------------------
def _vit_kernel(patches_ref, add_ref, small_ref, patch_w_ref, qkv_w_ref,
                proj_w_ref, fc1_w_ref, fc2_w_ref, head_w_ref, out_ref,
                *, gelu, b_tile):
    """Entire ViT forward for b_tile images; everything VMEM-resident."""
    f32, bf16 = jnp.float32, jnp.bfloat16
    R = b_tile * SEQ_PAD

    def ln(v, g, b):
        mu = jnp.mean(v, axis=-1, keepdims=True)
        var = jnp.mean(jnp.square(v - mu), axis=-1, keepdims=True)
        return (v - mu) * jax.lax.rsqrt(var + LN_EPS) * g + b

    # unpack the packed small-parameter slab with static slices
    sm = small_ref[...]
    norm_w = sm[_ROW_NORM_W:_ROW_NORM_W + 1, :EMBED]
    norm_b = sm[_ROW_NORM_B:_ROW_NORM_B + 1, :EMBED]
    head_b = sm[_ROW_HEAD_B:_ROW_HEAD_B + 1, :NC_PAD]

    # Patch embedding for all b_tile images at once (bf16 MXU, f32 accumulate).
    # `add` injects (cls + pos[0]) on cls rows, (patch_b + pos[i]) on patch rows,
    # zeros on the padding rows -- so no in-kernel concat is needed.
    x = jnp.dot(patches_ref[0], patch_w_ref[...],
                preferred_element_type=f32) + add_ref[...]                 # (R, E) f32

    scale = HEAD_DIM ** (-0.5)
    for d in range(DEPTH):                       # static unroll over blocks
        r = _BLK_BASE + d * _BLK_ROWS
        ln1_w, ln1_b = sm[r:r + 1, :EMBED], sm[r + 1:r + 2, :EMBED]
        ln2_w, ln2_b = sm[r + 2:r + 3, :EMBED], sm[r + 3:r + 4, :EMBED]
        proj_b, fc2_b = sm[r + 4:r + 5, :EMBED], sm[r + 5:r + 6, :EMBED]
        qkv_b = sm[r + 6:r + 7, :3 * EMBED]
        fc1_b = sm[r + 7:r + 8, :MLP_HIDDEN]

        # ---------------- attention branch ----------------
        h = ln(x, ln1_w, ln1_b)
        qkv = jnp.dot(h.astype(bf16), qkv_w_ref[d],
                      preferred_element_type=f32) + qkv_b                  # (R, 3E) f32
        w_proj = proj_w_ref[d]                                             # (E, E) bf16
        img_outs = []
        for img in range(b_tile):                # static unroll over images in the tile
            r0 = img * SEQ_PAD                   # 8-aligned sublane offset
            acc = None
            for hh in range(HEADS):              # static unroll over heads
                lo = hh * HEAD_DIM
                # q over the padded rows (junk rows never reach real outputs),
                # k / v over the real SEQ rows only.
                q = qkv[r0:r0 + SEQ_PAD, lo:lo + HEAD_DIM]
                k = qkv[r0:r0 + SEQ, EMBED + lo:EMBED + lo + HEAD_DIM]
                v = qkv[r0:r0 + SEQ, 2 * EMBED + lo:2 * EMBED + lo + HEAD_DIM]
                s = jax.lax.dot_general(q, k, (((1,), (1,)), ((), ())),
                                        preferred_element_type=f32) * scale
                s = s - jnp.max(s, axis=-1, keepdims=True)
                p = jnp.exp(s)
                p = p * pl.reciprocal(jnp.sum(p, axis=-1, keepdims=True), approx=True)
                o_h = jnp.dot(p, v, preferred_element_type=f32)            # (SEQ_PAD, hd)
                # head merge fused into the output projection (block-matmul):
                c = jnp.dot(o_h.astype(bf16), w_proj[lo:lo + HEAD_DIM, :],
                            preferred_element_type=f32)                    # (SEQ_PAD, E)
                acc = c if acc is None else acc + c
            img_outs.append(acc)
        attn = img_outs[0] if b_tile == 1 else jnp.concatenate(img_outs, axis=0)
        x = x + proj_b + attn                                              # residual

        # ---------------- MLP branch ----------------
        h2 = ln(x, ln2_w, ln2_b)
        m = gelu(jnp.dot(h2.astype(bf16), fc1_w_ref[d],
                         preferred_element_type=f32) + fc1_b)
        x = x + jnp.dot(m.astype(bf16), fc2_w_ref[d],
                        preferred_element_type=f32) + fc2_b

    # gather each image's cls row (sublane offsets 0, SEQ_PAD, 2*SEQ_PAD, ...)
    # with a tiny selection matmul, then final LN + classification head (M = b_tile).
    col = jax.lax.broadcasted_iota(jnp.int32, (b_tile, R), 1)
    tgt = jax.lax.broadcasted_iota(jnp.int32, (b_tile, R), 0) * SEQ_PAD
    sel = (col == tgt).astype(f32)
    cls = jnp.dot(sel, x, preferred_element_type=f32)                      # (b_tile, E)
    zf = ln(cls, norm_w, norm_b)
    logits = jnp.dot(zf.astype(bf16), head_w_ref[...],
                     preferred_element_type=f32) + head_b                  # (b_tile, NC_PAD)
    out_ref[...] = logits.reshape(1, b_tile, NC_PAD)


# ------------------------------ parameters ----------------------------------
def init_params(key):
    ks = jax.random.split(key, 8)
    tn = lambda k, shape: 0.02 * jax.random.normal(k, shape, jnp.float32)
    zeros = lambda shape: jnp.zeros(shape, jnp.float32)
    ones = lambda shape: jnp.ones(shape, jnp.float32)
    return {
        # conv weight (E, C, p, p) stored flattened+transposed as (C*p*p, E)
        "patch_w": tn(ks[0], (PATCH_DIM, EMBED)),
        "patch_b": zeros((1, EMBED)),
        "cls": tn(ks[1], (1, EMBED)),
        "pos": tn(ks[2], (SEQ, EMBED)),
        "norm_w": ones((1, EMBED)),
        "norm_b": zeros((1, EMBED)),
        # head weight zero-padded to 128 output lanes; logits sliced to 10 outside
        "head_w": zeros((EMBED, NC_PAD)).at[:, :NUM_CLASSES].set(
            tn(ks[3], (EMBED, NUM_CLASSES))),
        "head_b": zeros((1, NC_PAD)),
        "blocks": {                                   # stacked over DEPTH
            "ln1_w": ones((DEPTH, 1, EMBED)), "ln1_b": zeros((DEPTH, 1, EMBED)),
            "qkv_w": tn(ks[4], (DEPTH, EMBED, 3 * EMBED)),          # qkv_bias=True
            "qkv_b": zeros((DEPTH, 1, 3 * EMBED)),
            "proj_w": tn(ks[5], (DEPTH, EMBED, EMBED)),
            "proj_b": zeros((DEPTH, 1, EMBED)),
            "ln2_w": ones((DEPTH, 1, EMBED)), "ln2_b": zeros((DEPTH, 1, EMBED)),
            "fc1_w": tn(ks[6], (DEPTH, EMBED, MLP_HIDDEN)),
            "fc1_b": zeros((DEPTH, 1, MLP_HIDDEN)),
            "fc2_w": tn(ks[7], (DEPTH, MLP_HIDDEN, EMBED)),
            "fc2_b": zeros((DEPTH, 1, EMBED)),
        },
    }


def _row(vec, width):
    v = jnp.asarray(vec, jnp.float32).reshape(1, -1)
    return jnp.pad(v, ((0, 0), (0, LANES - width)))


# ------------------------------ forward pass ---------------------------------
def vit_forward(params, x, *, b_tile=None, exact_gelu=False):
    B, C, H, W = x.shape
    assert C == IN_CHANS and H == IMG_SIZE and W == IMG_SIZE, "input image size mismatch"
    # v5e/v6e: one big step (b_tile = B, up to 8) fills MXU rows and removes
    # per-step overhead.  On v7x pick b_tile = B // (2*k) so the grid has >= 2
    # steps and dimension_semantics=("parallel",) uses both TensorCores.
    if b_tile is None:
        b_tile = B if B <= 8 else 8
    n_tiles = (B + b_tile - 1) // b_tile
    b_pad = n_tiles * b_tile

    # --- wrapper-side glue: patchify once; everything else is in one kernel ---
    p = x.reshape(B, C, H // PATCH, PATCH, W // PATCH, PATCH)
    p = p.transpose(0, 2, 4, 1, 3, 5).reshape(B, NUM_PATCHES, PATCH_DIM)
    p = jnp.concatenate([
        jnp.zeros((B, 1, PATCH_DIM), p.dtype),                 # cls-token slot (row 0)
        p,
        jnp.zeros((B, SEQ_PAD - SEQ, PATCH_DIM), p.dtype),     # sublane padding rows
    ], axis=1)                                                  # (B, SEQ_PAD, pd)
    if b_pad != B:
        p = jnp.concatenate(
            [p, jnp.zeros((b_pad - B, SEQ_PAD, PATCH_DIM), p.dtype)], axis=0)
    patches = p.reshape(n_tiles, b_tile * SEQ_PAD, PATCH_DIM).astype(jnp.bfloat16)

    # additive term: row 0 = cls + pos[0]; rows 1..16 = patch_b + pos[i]; pad rows 0
    add_img = params["pos"] + jnp.concatenate(
        [params["cls"], jnp.broadcast_to(params["patch_b"], (NUM_PATCHES, EMBED))],
        axis=0)
    add_img = jnp.concatenate(
        [add_img, jnp.zeros((SEQ_PAD - SEQ, EMBED), jnp.float32)], axis=0)
    add = jnp.tile(add_img, (b_tile, 1))                        # (b_tile*SEQ_PAD, E)

    # pack the tiny per-row parameters into one (SMALL_ROWS, 128) f32 slab
    blk = params["blocks"]
    rows = [_row(params["norm_w"], EMBED), _row(params["norm_b"], EMBED),
            _row(params["head_b"], NC_PAD)]
    for d in range(DEPTH):
        rows += [_row(blk["ln1_w"][d], EMBED), _row(blk["ln1_b"][d], EMBED),
                 _row(blk["ln2_w"][d], EMBED), _row(blk["ln2_b"][d], EMBED),
                 _row(blk["proj_b"][d], EMBED), _row(blk["fc2_b"][d], EMBED),
                 _row(blk["qkv_b"][d], 3 * EMBED), _row(blk["fc1_b"][d], MLP_HIDDEN)]
    small = jnp.concatenate(rows, axis=0)
    small = jnp.pad(small, ((0, SMALL_ROWS - small.shape[0]), (0, 0)))

    bf = lambda a: a.astype(jnp.bfloat16)
    gelu = _gelu_exact if exact_gelu else _gelu_tanh
    # TODO(synk): default is tanh-approximate GELU (EUP); PyTorch nn.GELU() is
    # exact erf -- pass exact_gelu=True for bit-closer numerics.
    # all dropout layers have rate 0.0 -> identity (omitted)

    def full(shape):  # whole-array VMEM-resident operand, same block every step
        return pl.BlockSpec(shape, lambda b: (0,) * len(shape))

    out = pl.pallas_call(
        functools.partial(_vit_kernel, gelu=gelu, b_tile=b_tile),
        grid=(n_tiles,),
        in_specs=[
            pl.BlockSpec((1, b_tile * SEQ_PAD, PATCH_DIM), lambda b: (b, 0, 0)),
            full((b_tile * SEQ_PAD, EMBED)),
            full((SMALL_ROWS, LANES)),
            full((PATCH_DIM, EMBED)),
            full((DEPTH, EMBED, 3 * EMBED)),
            full((DEPTH, EMBED, EMBED)),
            full((DEPTH, EMBED, MLP_HIDDEN)),
            full((DEPTH, MLP_HIDDEN, EMBED)),
            full((EMBED, NC_PAD)),
        ],
        out_specs=pl.BlockSpec((1, b_tile, NC_PAD), lambda b: (b, 0, 0)),
        out_shape=jax.ShapeDtypeStruct((n_tiles, b_tile, NC_PAD), jnp.float32),
        compiler_params=pltpu.CompilerParams(dimension_semantics=("parallel",)),
    )(patches, add, small,
      bf(params["patch_w"]), bf(blk["qkv_w"]), bf(blk["proj_w"]),
      bf(blk["fc1_w"]), bf(blk["fc2_w"]), bf(params["head_w"]))

    return out.reshape(b_pad, NC_PAD)[:B, :NUM_CLASSES]


if __name__ == "__main__":
    key = jax.random.PRNGKey(0)
    pkey, xkey = jax.random.split(key)
    params = init_params(pkey)
    x = jax.random.normal(xkey, (2, IN_CHANS, IMG_SIZE, IMG_SIZE), jnp.float32)
    fwd = jax.jit(vit_forward)
    logits = jax.block_until_ready(fwd(params, x))
    assert logits.shape == (2, NUM_CLASSES)
    assert bool(jnp.all(jnp.isfinite(logits)))
    print("KERNEL_OK")
</pallas_src>

<mosaic_0001>
module attributes {stable_mosaic.version = 11 : i64} {
  func.func @_vit_kernel(%arg0: i32, %arg1: memref<1x48x48xbf16, #tpu.memory_space<vmem>>, %arg2: memref<48x32xf32, #tpu.memory_space<vmem>>, %arg3: memref<24x128xf32, #tpu.memory_space<vmem>>, %arg4: memref<48x32xbf16, #tpu.memory_space<vmem>>, %arg5: memref<2x32x96xbf16, #tpu.memory_space<vmem>>, %arg6: memref<2x32x32xbf16, #tpu.memory_space<vmem>>, %arg7: memref<2x32x128xbf16, #tpu.memory_space<vmem>>, %arg8: memref<2x128x32xbf16, #tpu.memory_space<vmem>>, %arg9: memref<32x128xbf16, #tpu.memory_space<vmem>>, %arg10: memref<1x2x128xf32, #tpu.memory_space<vmem>>) attributes {dimension_semantics = [#tpu.dimension_semantics<parallel>], iteration_bounds = array<i64: 1>, scalar_prefetch = 0 : i64, scratch_operands = 0 : i64, tpu.core_type = #tpu.core_type<tc>, window_params = [{transform_indices = @transform_0, window_bounds = array<i64: 1, 48, 48>}, {pipeline_mode = #tpu.pipeline_mode<synchronous>, transform_indices = @transform_1, window_bounds = array<i64: 48, 32>}, {pipeline_mode = #tpu.pipeline_mode<synchronous>, transform_indices = @transform_2, window_bounds = array<i64: 24, 128>}, {pipeline_mode = #tpu.pipeline_mode<synchronous>, transform_indices = @transform_3, window_bounds = array<i64: 48, 32>}, {pipeline_mode = #tpu.pipeline_mode<synchronous>, transform_indices = @transform_4, window_bounds = array<i64: 2, 32, 96>}, {pipeline_mode = #tpu.pipeline_mode<synchronous>, transform_indices = @transform_5, window_bounds = array<i64: 2, 32, 32>}, {pipeline_mode = #tpu.pipeline_mode<synchronous>, transform_indices = @transform_6, window_bounds = array<i64: 2, 32, 128>}, {pipeline_mode = #tpu.pipeline_mode<synchronous>, transform_indices = @transform_7, window_bounds = array<i64: 2, 128, 32>}, {pipeline_mode = #tpu.pipeline_mode<synchronous>, transform_indices = @transform_8, window_bounds = array<i64: 32, 128>}, {transform_indices = @transform_9, window_bounds = array<i64: 1, 2, 128>}]} {
    %c0 = arith.constant 0 : index
    %c0_0 = arith.constant 0 : index
    %0 = vector.load %arg3[%c0, %c0_0] : memref<24x128xf32, #tpu.memory_space<vmem>>, vector<24x128xf32>
    %1 = vector.extract_strided_slice %0 {offsets = [0, 0], sizes = [1, 32], strides = [1, 1]} : vector<24x128xf32> to vector<1x32xf32>
    %2 = vector.extract_strided_slice %0 {offsets = [1, 0], sizes = [1, 32], strides = [1, 1]} : vector<24x128xf32> to vector<1x32xf32>
    %3 = vector.extract_strided_slice %0 {offsets = [2, 0], sizes = [1, 128], strides = [1, 1]} : vector<24x128xf32> to vector<1x128xf32>
    %c0_1 = arith.constant 0 : index
    %c0_2 = arith.constant 0 : index
    %c0_3 = arith.constant 0 : index
    %4 = vector.load %arg1[%c0_1, %c0_2, %c0_3] : memref<1x48x48xbf16, #tpu.memory_space<vmem>>, vector<1x48x48xbf16>
    %5 = vector.shape_cast %4 : vector<1x48x48xbf16> to vector<48x48xbf16>
    %c0_4 = arith.constant 0 : index
    %c0_5 = arith.constant 0 : index
    %6 = vector.load %arg4[%c0_4, %c0_5] : memref<48x32xbf16, #tpu.memory_space<vmem>>, vector<48x32xbf16>
    %cst = arith.constant dense<0.000000e+00> : vector<48x32xf32>
    %7 = tpu.matmul %5, %6, %cst {dimension_numbers = #tpu.dot_dimension_numbers<[1], [0], [0], [1], [0, 0, 1, 1], [], []>} : vector<48x48xbf16>, vector<48x32xbf16>, vector<48x32xf32> -> vector<48x32xf32>
    %c0_6 = arith.constant 0 : index
    %c0_7 = arith.constant 0 : index
    %8 = vector.load %arg2[%c0_6, %c0_7] : memref<48x32xf32, #tpu.memory_space<vmem>>, vector<48x32xf32>
    %9 = arith.addf %7, %8 : vector<48x32xf32>
    %10 = vector.extract_strided_slice %0 {offsets = [3, 0], sizes = [1, 32], strides = [1, 1]} : vector<24x128xf32> to vector<1x32xf32>
    %11 = vector.extract_strided_slice %0 {offsets = [4, 0], sizes = [1, 32], strides = [1, 1]} : vector<24x128xf32> to vector<1x32xf32>
    %12 = vector.extract_strided_slice %0 {offsets = [5, 0], sizes = [1, 32], strides = [1, 1]} : vector<24x128xf32> to vector<1x32xf32>
    %13 = vector.extract_strided_slice %0 {offsets = [6, 0], sizes = [1, 32], strides = [1, 1]} : vector<24x128xf32> to vector<1x32xf32>
    %14 = vector.extract_strided_slice %0 {offsets = [7, 0], sizes = [1, 32], strides = [1, 1]} : vector<24x128xf32> to vector<1x32xf32>
    %15 = vector.extract_strided_slice %0 {offsets = [8, 0], sizes = [1, 32], strides = [1, 1]} : vector<24x128xf32> to vector<1x32xf32>
    %16 = vector.extract_strided_slice %0 {offsets = [9, 0], sizes = [1, 96], strides = [1, 1]} : vector<24x128xf32> to vector<1x96xf32>
    %17 = vector.extract_strided_slice %0 {offsets = [10, 0], sizes = [1, 128], strides = [1, 1]} : vector<24x128xf32> to vector<1x128xf32>
    %cst_8 = arith.constant dense<0.000000e+00> : vector<48xf32>
    %18 = vector.multi_reduction <add>, %9, %cst_8 [1] : vector<48x32xf32> to vector<48xf32>
    %19 = vector.shape_cast %18 : vector<48xf32> to vector<48x1xf32>
    %cst_9 = arith.constant 3.200000e+01 : f32
    %20 = vector.broadcast %cst_9 : f32 to vector<48x1xf32>
    %21 = arith.divf %19, %20 : vector<48x1xf32>
    %22 = vector.broadcast %21 : vector<48x1xf32> to vector<48x32xf32>
    %23 = arith.subf %9, %22 : vector<48x32xf32>
    %24 = arith.mulf %23, %23 : vector<48x32xf32>
    %cst_10 = arith.constant dense<0.000000e+00> : vector<48xf32>
    %25 = vector.multi_reduction <add>, %24, %cst_10 [1] : vector<48x32xf32> to vector<48xf32>
    %26 = vector.shape_cast %25 : vector<48xf32> to vector<48x1xf32>
    %cst_11 = arith.constant 3.200000e+01 : f32
    %27 = vector.broadcast %cst_11 : f32 to vector<48x1xf32>
    %28 = arith.divf %26, %27 : vector<48x1xf32>
    %29 = vector.broadcast %21 : vector<48x1xf32> to vector<48x32xf32>
    %30 = arith.subf %9, %29 : vector<48x32xf32>
    %cst_12 = arith.constant 9.99999974E-6 : f32
    %31 = vector.broadcast %cst_12 : f32 to vector<48x1xf32>
    %32 = arith.addf %28, %31 : vector<48x1xf32>
    %33 = math.rsqrt %32 : vector<48x1xf32>
    %34 = vector.broadcast %33 : vector<48x1xf32> to vector<48x32xf32>
    %35 = arith.mulf %30, %34 : vector<48x32xf32>
    %36 = vector.broadcast %10 : vector<1x32xf32> to vector<48x32xf32>
    %37 = arith.mulf %35, %36 : vector<48x32xf32>
    %38 = vector.broadcast %11 : vector<1x32xf32> to vector<48x32xf32>
    %39 = arith.addf %37, %38 : vector<48x32xf32>
    %40 = arith.truncf %39 : vector<48x32xf32> to vector<48x32xbf16>
    %c0_13 = arith.constant 0 : index
    %c0_14 = arith.constant 0 : index
    %c0_15 = arith.constant 0 : index
    %41 = vector.load %arg5[%c0_13, %c0_14, %c0_15] : memref<2x32x96xbf16, #tpu.memory_space<vmem>>, vector<1x32x96xbf16>
    %42 = vector.shape_cast %41 : vector<1x32x96xbf16> to vector<32x96xbf16>
    %cst_16 = arith.constant dense<0.000000e+00> : vector<48x96xf32>
    %43 = tpu.matmul %40, %42, %cst_16 {dimension_numbers = #tpu.dot_dimension_numbers<[1], [0], [0], [1], [0, 0, 1, 1], [], []>} : vector<48x32xbf16>, vector<32x96xbf16>, vector<48x96xf32> -> vector<48x96xf32>
    %44 = vector.broadcast %16 : vector<1x96xf32> to vector<48x96xf32>
    %45 = arith.addf %43, %44 : vector<48x96xf32>
    %c0_17 = arith.constant 0 : index
    %c0_18 = arith.constant 0 : index
    %c0_19 = arith.constant 0 : index
    %46 = vector.load %arg6[%c0_17, %c0_18, %c0_19] : memref<2x32x32xbf16, #tpu.memory_space<vmem>>, vector<1x32x32xbf16>
    %47 = vector.shape_cast %46 : vector<1x32x32xbf16> to vector<32x32xbf16>
    %48 = vector.extract_strided_slice %45 {offsets = [0, 0], sizes = [24, 8], strides = [1, 1]} : vector<48x96xf32> to vector<24x8xf32>
    %49 = vector.extract_strided_slice %45 {offsets = [0, 32], sizes = [17, 8], strides = [1, 1]} : vector<48x96xf32> to vector<17x8xf32>
    %50 = vector.extract_strided_slice %45 {offsets = [0, 64], sizes = [17, 8], strides = [1, 1]} : vector<48x96xf32> to vector<17x8xf32>
    %cst_20 = arith.constant dense<0.000000e+00> : vector<24x17xf32>
    %51 = tpu.matmul %48, %49, %cst_20 {dimension_numbers = #tpu.dot_dimension_numbers<[1], [1], [0], [0], [0, 0, 1, 0], [], []>} : vector<24x8xf32>, vector<17x8xf32>, vector<24x17xf32> -> vector<24x17xf32>
    %cst_21 = arith.constant 0.353553385 : f32
    %52 = vector.broadcast %cst_21 : f32 to vector<24x17xf32>
    %53 = arith.mulf %51, %52 : vector<24x17xf32>
    %cst_22 = arith.constant dense<0xFF800000> : vector<24xf32>
    %54 = vector.multi_reduction <maximumf>, %53, %cst_22 [1] : vector<24x17xf32> to vector<24xf32>
    %55 = vector.shape_cast %54 : vector<24xf32> to vector<24x1xf32>
    %56 = vector.broadcast %55 : vector<24x1xf32> to vector<24x17xf32>
    %57 = arith.subf %53, %56 : vector<24x17xf32>
    %58 = math.exp %57 : vector<24x17xf32>
    %cst_23 = arith.constant dense<0.000000e+00> : vector<24xf32>
    %59 = vector.multi_reduction <add>, %58, %cst_23 [1] : vector<24x17xf32> to vector<24xf32>
    %60 = vector.shape_cast %59 : vector<24xf32> to vector<24x1xf32>
    %61 = tpu.reciprocal %60 {approx = true} : vector<24x1xf32> -> vector<24x1xf32>
    %62 = vector.broadcast %61 : vector<24x1xf32> to vector<24x17xf32>
    %63 = arith.mulf %58, %62 : vector<24x17xf32>
    %cst_24 = arith.constant dense<0.000000e+00> : vector<24x8xf32>
    %64 = tpu.matmul %63, %50, %cst_24 {dimension_numbers = #tpu.dot_dimension_numbers<[1], [0], [0], [1], [0, 0, 1, 1], [], []>} : vector<24x17xf32>, vector<17x8xf32>, vector<24x8xf32> -> vector<24x8xf32>
    %65 = arith.truncf %64 : vector<24x8xf32> to vector<24x8xbf16>
    %66 = vector.extract_strided_slice %47 {offsets = [0, 0], sizes = [8, 32], strides = [1, 1]} : vector<32x32xbf16> to vector<8x32xbf16>
    %cst_25 = arith.constant dense<0.000000e+00> : vector<24x32xf32>
    %67 = tpu.matmul %65, %66, %cst_25 {dimension_numbers = #tpu.dot_dimension_numbers<[1], [0], [0], [1], [0, 0, 1, 1], [], []>} : vector<24x8xbf16>, vector<8x32xbf16>, vector<24x32xf32> -> vector<24x32xf32>
    %68 = vector.extract_strided_slice %45 {offsets = [0, 8], sizes = [24, 8], strides = [1, 1]} : vector<48x96xf32> to vector<24x8xf32>
    %69 = vector.extract_strided_slice %45 {offsets = [0, 40], sizes = [17, 8], strides = [1, 1]} : vector<48x96xf32> to vector<17x8xf32>
    %70 = vector.extract_strided_slice %45 {offsets = [0, 72], sizes = [17, 8], strides = [1, 1]} : vector<48x96xf32> to vector<17x8xf32>
    %cst_26 = arith.constant dense<0.000000e+00> : vector<24x17xf32>
    %71 = tpu.matmul %68, %69, %cst_26 {dimension_numbers = #tpu.dot_dimension_numbers<[1], [1], [0], [0], [0, 0, 1, 0], [], []>} : vector<24x8xf32>, vector<17x8xf32>, vector<24x17xf32> -> vector<24x17xf32>
    %cst_27 = arith.constant 0.353553385 : f32
    %72 = vector.broadcast %cst_27 : f32 to vector<24x17xf32>
    %73 = arith.mulf %71, %72 : vector<24x17xf32>
    %cst_28 = arith.constant dense<0xFF800000> : vector<24xf32>
    %74 = vector.multi_reduction <maximumf>, %73, %cst_28 [1] : vector<24x17xf32> to vector<24xf32>
    %75 = vector.shape_cast %74 : vector<24xf32> to vector<24x1xf32>
    %76 = vector.broadcast %75 : vector<24x1xf32> to vector<24x17xf32>
    %77 = arith.subf %73, %76 : vector<24x17xf32>
    %78 = math.exp %77 : vector<24x17xf32>
    %cst_29 = arith.constant dense<0.000000e+00> : vector<24xf32>
    %79 = vector.multi_reduction <add>, %78, %cst_29 [1] : vector<24x17xf32> to vector<24xf32>
    %80 = vector.shape_cast %79 : vector<24xf32> to vector<24x1xf32>
    %81 = tpu.reciprocal %80 {approx = true} : vector<24x1xf32> -> vector<24x1xf32>
    %82 = vector.broadcast %81 : vector<24x1xf32> to vector<24x17xf32>
    %83 = arith.mulf %78, %82 : vector<24x17xf32>
    %cst_30 = arith.constant dense<0.000000e+00> : vector<24x8xf32>
    %84 = tpu.matmul %83, %70, %cst_30 {dimension_numbers = #tpu.dot_dimension_numbers<[1], [0], [0], [1], [0, 0, 1, 1], [], []>} : vector<24x17xf32>, vector<17x8xf32>, vector<24x8xf32> -> vector<24x8xf32>
    %85 = arith.truncf %84 : vector<24x8xf32> to vector<24x8xbf16>
    %86 = vector.extract_strided_slice %47 {offsets = [8, 0], sizes = [8, 32], strides = [1, 1]} : vector<32x32xbf16> to vector<8x32xbf16>
    %cst_31 = arith.constant dense<0.000000e+00> : vector<24x32xf32>
    %87 = tpu.matmul %85, %86, %cst_31 {dimension_numbers = #tpu.dot_dimension_numbers<[1], [0], [0], [1], [0, 0, 1, 1], [], []>} : vector<24x8xbf16>, vector<8x32xbf16>, vector<24x32xf32> -> vector<24x32xf32>
    %88 = arith.addf %67, %87 : vector<24x32xf32>
    %89 = vector.extract_strided_slice %45 {offsets = [0, 16], sizes = [24, 8], strides = [1, 1]} : vector<48x96xf32> to vector<24x8xf32>
    %90 = vector.extract_strided_slice %45 {offsets = [0, 48], sizes = [17, 8], strides = [1, 1]} : vector<48x96xf32> to vector<17x8xf32>
    %91 = vector.extract_strided_slice %45 {offsets = [0, 80], sizes = [17, 8], strides = [1, 1]} : vector<48x96xf32> to vector<17x8xf32>
    %cst_32 = arith.constant dense<0.000000e+00> : vector<24x17xf32>
    %92 = tpu.matmul %89, %90, %cst_32 {dimension_numbers = #tpu.dot_dimension_numbers<[1], [1], [0], [0], [0, 0, 1, 0], [], []>} : vector<24x8xf32>, vector<17x8xf32>, vector<24x17xf32> -> vector<24x17xf32>
    %cst_33 = arith.constant 0.353553385 : f32
    %93 = vector.broadcast %cst_33 : f32 to vector<24x17xf32>
    %94 = arith.mulf %92, %93 : vector<24x17xf32>
    %cst_34 = arith.constant dense<0xFF800000> : vector<24xf32>
    %95 = vector.multi_reduction <maximumf>, %94, %cst_34 [1] : vector<24x17xf32> to vector<24xf32>
    %96 = vector.shape_cast %95 : vector<24xf32> to vector<24x1xf32>
    %97 = vector.broadcast %96 : vector<24x1xf32> to vector<24x17xf32>
    %98 = arith.subf %94, %97 : vector<24x17xf32>
    %99 = math.exp %98 : vector<24x17xf32>
    %cst_35 = arith.constant dense<0.000000e+00> : vector<24xf32>
    %100 = vector.multi_reduction <add>, %99, %cst_35 [1] : vector<24x17xf32> to vector<24xf32>
    %101 = vector.shape_cast %100 : vector<24xf32> to vector<24x1xf32>
    %102 = tpu.reciprocal %101 {approx = true} : vector<24x1xf32> -> vector<24x1xf32>
    %103 = vector.broadcast %102 : vector<24x1xf32> to vector<24x17xf32>
    %104 = arith.mulf %99, %103 : vector<24x17xf32>
    %cst_36 = arith.constant dense<0.000000e+00> : vector<24x8xf32>
    %105 = tpu.matmul %104, %91, %cst_36 {dimension_numbers = #tpu.dot_dimension_numbers<[1], [0], [0], [1], [0, 0, 1, 1], [], []>} : vector<24x17xf32>, vector<17x8xf32>, vector<24x8xf32> -> vector<24x8xf32>
    %106 = arith.truncf %105 : vector<24x8xf32> to vector<24x8xbf16>
    %107 = vector.extract_strided_slice %47 {offsets = [16, 0], sizes = [8, 32], strides = [1, 1]} : vector<32x32xbf16> to vector<8x32xbf16>
    %cst_37 = arith.constant dense<0.000000e+00> : vector<24x32xf32>
    %108 = tpu.matmul %106, %107, %cst_37 {dimension_numbers = #tpu.dot_dimension_numbers<[1], [0], [0], [1], [0, 0, 1, 1], [], []>} : vector<24x8xbf16>, vector<8x32xbf16>, vector<24x32xf32> -> vector<24x32xf32>
    %109 = arith.addf %88, %108 : vector<24x32xf32>
    %110 = vector.extract_strided_slice %45 {offsets = [0, 24], sizes = [24, 8], strides = [1, 1]} : vector<48x96xf32> to vector<24x8xf32>
    %111 = vector.extract_strided_slice %45 {offsets = [0, 56], sizes = [17, 8], strides = [1, 1]} : vector<48x96xf32> to vector<17x8xf32>
    %112 = vector.extract_strided_slice %45 {offsets = [0, 88], sizes = [17, 8], strides = [1, 1]} : vector<48x96xf32> to vector<17x8xf32>
    %cst_38 = arith.constant dense<0.000000e+00> : vector<24x17xf32>
    %113 = tpu.matmul %110, %111, %cst_38 {dimension_numbers = #tpu.dot_dimension_numbers<[1], [1], [0], [0], [0, 0, 1, 0], [], []>} : vector<24x8xf32>, vector<17x8xf32>, vector<24x17xf32> -> vector<24x17xf32>
    %cst_39 = arith.constant 0.353553385 : f32
    %114 = vector.broadcast %cst_39 : f32 to vector<24x17xf32>
    %115 = arith.mulf %113, %114 : vector<24x17xf32>
    %cst_40 = arith.constant dense<0xFF800000> : vector<24xf32>
    %116 = vector.multi_reduction <maximumf>, %115, %cst_40 [1] : vector<24x17xf32> to vector<24xf32>
    %117 = vector.shape_cast %116 : vector<24xf32> to vector<24x1xf32>
    %118 = vector.broadcast %117 : vector<24x1xf32> to vector<24x17xf32>
    %119 = arith.subf %115, %118 : vector<24x17xf32>
    %120 = math.exp %119 : vector<24x17xf32>
    %cst_41 = arith.constant dense<0.000000e+00> : vector<24xf32>
    %121 = vector.multi_reduction <add>, %120, %cst_41 [1] : vector<24x17xf32> to vector<24xf32>
    %122 = vector.shape_cast %121 : vector<24xf32> to vector<24x1xf32>
    %123 = tpu.reciprocal %122 {approx = true} : vector<24x1xf32> -> vector<24x1xf32>
    %124 = vector.broadcast %123 : vector<24x1xf32> to vector<24x17xf32>
    %125 = arith.mulf %120, %124 : vector<24x17xf32>
    %cst_42 = arith.constant dense<0.000000e+00> : vector<24x8xf32>
    %126 = tpu.matmul %125, %112, %cst_42 {dimension_numbers = #tpu.dot_dimension_numbers<[1], [0], [0], [1], [0, 0, 1, 1], [], []>} : vector<24x17xf32>, vector<17x8xf32>, vector<24x8xf32> -> vector<24x8xf32>
    %127 = arith.truncf %126 : vector<24x8xf32> to vector<24x8xbf16>
    %128 = vector.extract_strided_slice %47 {offsets = [24, 0], sizes = [8, 32], strides = [1, 1]} : vector<32x32xbf16> to vector<8x32xbf16>
    %cst_43 = arith.constant dense<0.000000e+00> : vector<24x32xf32>
    %129 = tpu.matmul %127, %128, %cst_43 {dimension_numbers = #tpu.dot_dimension_numbers<[1], [0], [0], [1], [0, 0, 1, 1], [], []>} : vector<24x8xbf16>, vector<8x32xbf16>, vector<24x32xf32> -> vector<24x32xf32>
    %130 = arith.addf %109, %129 : vector<24x32xf32>
    %131 = vector.extract_strided_slice %45 {offsets = [24, 0], sizes = [24, 8], strides = [1, 1]} : vector<48x96xf32> to vector<24x8xf32>
    %132 = vector.extract_strided_slice %45 {offsets = [24, 32], sizes = [17, 8], strides = [1, 1]} : vector<48x96xf32> to vector<17x8xf32>
    %133 = vector.extract_strided_slice %45 {offsets = [24, 64], sizes = [17, 8], strides = [1, 1]} : vector<48x96xf32> to vector<17x8xf32>
    %cst_44 = arith.constant dense<0.000000e+00> : vector<24x17xf32>
    %134 = tpu.matmul %131, %132, %cst_44 {dimension_numbers = #tpu.dot_dimension_numbers<[1], [1], [0], [0], [0, 0, 1, 0], [], []>} : vector<24x8xf32>, vector<17x8xf32>, vector<24x17xf32> -> vector<24x17xf32>
    %cst_45 = arith.constant 0.353553385 : f32
    %135 = vector.broadcast %cst_45 : f32 to vector<24x17xf32>
    %136 = arith.mulf %134, %135 : vector<24x17xf32>
    %cst_46 = arith.constant dense<0xFF800000> : vector<24xf32>
    %137 = vector.multi_reduction <maximumf>, %136, %cst_46 [1] : vector<24x17xf32> to vector<24xf32>
    %138 = vector.shape_cast %137 : vector<24xf32> to vector<24x1xf32>
    %139 = vector.broadcast %138 : vector<24x1xf32> to vector<24x17xf32>
    %140 = arith.subf %136, %139 : vector<24x17xf32>
    %141 = math.exp %140 : vector<24x17xf32>
    %cst_47 = arith.constant dense<0.000000e+00> : vector<24xf32>
    %142 = vector.multi_reduction <add>, %141, %cst_47 [1] : vector<24x17xf32> to vector<24xf32>
    %143 = vector.shape_cast %142 : vector<24xf32> to vector<24x1xf32>
    %144 = tpu.reciprocal %143 {approx = true} : vector<24x1xf32> -> vector<24x1xf32>
    %145 = vector.broadcast %144 : vector<24x1xf32> to vector<24x17xf32>
    %146 = arith.mulf %141, %145 : vector<24x17xf32>
    %cst_48 = arith.constant dense<0.000000e+00> : vector<24x8xf32>
    %147 = tpu.matmul %146, %133, %cst_48 {dimension_numbers = #tpu.dot_dimension_numbers<[1], [0], [0], [1], [0, 0, 1, 1], [], []>} : vector<24x17xf32>, vector<17x8xf32>, vector<24x8xf32> -> vector<24x8xf32>
    %148 = arith.truncf %147 : vector<24x8xf32> to vector<24x8xbf16>
    %149 = vector.extract_strided_slice %47 {offsets = [0, 0], sizes = [8, 32], strides = [1, 1]} : vector<32x32xbf16> to vector<8x32xbf16>
    %cst_49 = arith.constant dense<0.000000e+00> : vector<24x32xf32>
    %150 = tpu.matmul %148, %149, %cst_49 {dimension_numbers = #tpu.dot_dimension_numbers<[1], [0], [0], [1], [0, 0, 1, 1], [], []>} : vector<24x8xbf16>, vector<8x32xbf16>, vector<24x32xf32> -> vector<24x32xf32>
    %151 = vector.extract_strided_slice %45 {offsets = [24, 8], sizes = [24, 8], strides = [1, 1]} : vector<48x96xf32> to vector<24x8xf32>
    %152 = vector.extract_strided_slice %45 {offsets = [24, 40], sizes = [17, 8], strides = [1, 1]} : vector<48x96xf32> to vector<17x8xf32>
    %153 = vector.extract_strided_slice %45 {offsets = [24, 72], sizes = [17, 8], strides = [1, 1]} : vector<48x96xf32> to vector<17x8xf32>
    %cst_50 = arith.constant dense<0.000000e+00> : vector<24x17xf32>
    %154 = tpu.matmul %151, %152, %cst_50 {dimension_numbers = #tpu.dot_dimension_numbers<[1], [1], [0], [0], [0, 0, 1, 0], [], []>} : vector<24x8xf32>, vector<17x8xf32>, vector<24x17xf32> -> vector<24x17xf32>
    %cst_51 = arith.constant 0.353553385 : f32
    %155 = vector.broadcast %cst_51 : f32 to vector<24x17xf32>
    %156 = arith.mulf %154, %155 : vector<24x17xf32>
    %cst_52 = arith.constant dense<0xFF800000> : vector<24xf32>
    %157 = vector.multi_reduction <maximumf>, %156, %cst_52 [1] : vector<24x17xf32> to vector<24xf32>
    %158 = vector.shape_cast %157 : vector<24xf32> to vector<24x1xf32>
    %159 = vector.broadcast %158 : vector<24x1xf32> to vector<24x17xf32>
    %160 = arith.subf %156, %159 : vector<24x17xf32>
    %161 = math.exp %160 : vector<24x17xf32>
    %cst_53 = arith.constant dense<0.000000e+00> : vector<24xf32>
    %162 = vector.multi_reduction <add>, %161, %cst_53 [1] : vector<24x17xf32> to vector<24xf32>
    %163 = vector.shape_cast %162 : vector<24xf32> to vector<24x1xf32>
    %164 = tpu.reciprocal %163 {approx = true} : vector<24x1xf32> -> vector<24x1xf32>
    %165 = vector.broadcast %164 : vector<24x1xf32> to vector<24x17xf32>
    %166 = arith.mulf %161, %165 : vector<24x17xf32>
    %cst_54 = arith.constant dense<0.000000e+00> : vector<24x8xf32>
    %167 = tpu.matmul %166, %153, %cst_54 {dimension_numbers = #tpu.dot_dimension_numbers<[1], [0], [0], [1], [0, 0, 1, 1], [], []>} : vector<24x17xf32>, vector<17x8xf32>, vector<24x8xf32> -> vector<24x8xf32>
    %168 = arith.truncf %167 : vector<24x8xf32> to vector<24x8xbf16>
    %169 = vector.extract_strided_slice %47 {offsets = [8, 0], sizes = [8, 32], strides = [1, 1]} : vector<32x32xbf16> to vector<8x32xbf16>
    %cst_55 = arith.constant dense<0.000000e+00> : vector<24x32xf32>
    %170 = tpu.matmul %168, %169, %cst_55 {dimension_numbers = #tpu.dot_dimension_numbers<[1], [0], [0], [1], [0, 0, 1, 1], [], []>} : vector<24x8xbf16>, vector<8x32xbf16>, vector<24x32xf32> -> vector<24x32xf32>
    %171 = arith.addf %150, %170 : vector<24x32xf32>
    %172 = vector.extract_strided_slice %45 {offsets = [24, 16], sizes = [24, 8], strides = [1, 1]} : vector<48x96xf32> to vector<24x8xf32>
    %173 = vector.extract_strided_slice %45 {offsets = [24, 48], sizes = [17, 8], strides = [1, 1]} : vector<48x96xf32> to vector<17x8xf32>
    %174 = vector.extract_strided_slice %45 {offsets = [24, 80], sizes = [17, 8], strides = [1, 1]} : vector<48x96xf32> to vector<17x8xf32>
    %cst_56 = arith.constant dense<0.000000e+00> : vector<24x17xf32>
    %175 = tpu.matmul %172, %173, %cst_56 {dimension_numbers = #tpu.dot_dimension_numbers<[1], [1], [0], [0], [0, 0, 1, 0], [], []>} : vector<24x8xf32>, vector<17x8xf32>, vector<24x17xf32> -> vector<24x17xf32>
    %cst_57 = arith.constant 0.353553385 : f32
    %176 = vector.broadcast %cst_57 : f32 to vector<24x17xf32>
    %177 = arith.mulf %175, %176 : vector<24x17xf32>
    %cst_58 = arith.constant dense<0xFF800000> : vector<24xf32>
    %178 = vector.multi_reduction <maximumf>, %177, %cst_58 [1] : vector<24x17xf32> to vector<24xf32>
    %179 = vector.shape_cast %178 : vector<24xf32> to vector<24x1xf32>
    %180 = vector.broadcast %179 : vector<24x1xf32> to vector<24x17xf32>
    %181 = arith.subf %177, %180 : vector<24x17xf32>
    %182 = math.exp %181 : vector<24x17xf32>
    %cst_59 = arith.constant dense<0.000000e+00> : vector<24xf32>
    %183 = vector.multi_reduction <add>, %182, %cst_59 [1] : vector<24x17xf32> to vector<24xf32>
    %184 = vector.shape_cast %183 : vector<24xf32> to vector<24x1xf32>
    %185 = tpu.reciprocal %184 {approx = true} : vector<24x1xf32> -> vector<24x1xf32>
    %186 = vector.broadcast %185 : vector<24x1xf32> to vector<24x17xf32>
    %187 = arith.mulf %182, %186 : vector<24x17xf32>
    %cst_60 = arith.constant dense<0.000000e+00> : vector<24x8xf32>
    %188 = tpu.matmul %187, %174, %cst_60 {dimension_numbers = #tpu.dot_dimension_numbers<[1], [0], [0], [1], [0, 0, 1, 1], [], []>} : vector<24x17xf32>, vector<17x8xf32>, vector<24x8xf32> -> vector<24x8xf32>
    %189 = arith.truncf %188 : vector<24x8xf32> to vector<24x8xbf16>
    %190 = vector.extract_strided_slice %47 {offsets = [16, 0], sizes = [8, 32], strides = [1, 1]} : vector<32x32xbf16> to vector<8x32xbf16>
    %cst_61 = arith.constant dense<0.000000e+00> : vector<24x32xf32>
    %191 = tpu.matmul %189, %190, %cst_61 {dimension_numbers = #tpu.dot_dimension_numbers<[1], [0], [0], [1], [0, 0, 1, 1], [], []>} : vector<24x8xbf16>, vector<8x32xbf16>, vector<24x32xf32> -> vector<24x32xf32>
    %192 = arith.addf %171, %191 : vector<24x32xf32>
    %193 = vector.extract_strided_slice %45 {offsets = [24, 24], sizes = [24, 8], strides = [1, 1]} : vector<48x96xf32> to vector<24x8xf32>
    %194 = vector.extract_strided_slice %45 {offsets = [24, 56], sizes = [17, 8], strides = [1, 1]} : vector<48x96xf32> to vector<17x8xf32>
    %195 = vector.extract_strided_slice %45 {offsets = [24, 88], sizes = [17, 8], strides = [1, 1]} : vector<48x96xf32> to vector<17x8xf32>
    %cst_62 = arith.constant dense<0.000000e+00> : vector<24x17xf32>
    %196 = tpu.matmul %193, %194, %cst_62 {dimension_numbers = #tpu.dot_dimension_numbers<[1], [1], [0], [0], [0, 0, 1, 0], [], []>} : vector<24x8xf32>, vector<17x8xf32>, vector<24x17xf32> -> vector<24x17xf32>
    %cst_63 = arith.constant 0.353553385 : f32
    %197 = vector.broadcast %cst_63 : f32 to vector<24x17xf32>
    %198 = arith.mulf %196, %197 : vector<24x17xf32>
    %cst_64 = arith.constant dense<0xFF800000> : vector<24xf32>
    %199 = vector.multi_reduction <maximumf>, %198, %cst_64 [1] : vector<24x17xf32> to vector<24xf32>
    %200 = vector.shape_cast %199 : vector<24xf32> to vector<24x1xf32>
    %201 = vector.broadcast %200 : vector<24x1xf32> to vector<24x17xf32>
    %202 = arith.subf %198, %201 : vector<24x17xf32>
    %203 = math.exp %202 : vector<24x17xf32>
    %cst_65 = arith.constant dense<0.000000e+00> : vector<24xf32>
    %204 = vector.multi_reduction <add>, %203, %cst_65 [1] : vector<24x17xf32> to vector<24xf32>
    %205 = vector.shape_cast %204 : vector<24xf32> to vector<24x1xf32>
    %206 = tpu.reciprocal %205 {approx = true} : vector<24x1xf32> -> vector<24x1xf32>
    %207 = vector.broadcast %206 : vector<24x1xf32> to vector<24x17xf32>
    %208 = arith.mulf %203, %207 : vector<24x17xf32>
    %cst_66 = arith.constant dense<0.000000e+00> : vector<24x8xf32>
    %209 = tpu.matmul %208, %195, %cst_66 {dimension_numbers = #tpu.dot_dimension_numbers<[1], [0], [0], [1], [0, 0, 1, 1], [], []>} : vector<24x17xf32>, vector<17x8xf32>, vector<24x8xf32> -> vector<24x8xf32>
    %210 = arith.truncf %209 : vector<24x8xf32> to vector<24x8xbf16>
    %211 = vector.extract_strided_slice %47 {offsets = [24, 0], sizes = [8, 32], strides = [1, 1]} : vector<32x32xbf16> to vector<8x32xbf16>
    %cst_67 = arith.constant dense<0.000000e+00> : vector<24x32xf32>
    %212 = tpu.matmul %210, %211, %cst_67 {dimension_numbers = #tpu.dot_dimension_numbers<[1], [0], [0], [1], [0, 0, 1, 1], [], []>} : vector<24x8xbf16>, vector<8x32xbf16>, vector<24x32xf32> -> vector<24x32xf32>
    %213 = arith.addf %192, %212 : vector<24x32xf32>
    %214 = tpu.concatenate %130, %213 in 0 : vector<24x32xf32>, vector<24x32xf32> -> vector<48x32xf32>
    %215 = vector.broadcast %14 : vector<1x32xf32> to vector<48x32xf32>
    %216 = arith.addf %9, %215 : vector<48x32xf32>
    %217 = arith.addf %216, %214 : vector<48x32xf32>
    %cst_68 = arith.constant dense<0.000000e+00> : vector<48xf32>
    %218 = vector.multi_reduction <add>, %217, %cst_68 [1] : vector<48x32xf32> to vector<48xf32>
    %219 = vector.shape_cast %218 : vector<48xf32> to vector<48x1xf32>
    %cst_69 = arith.constant 3.200000e+01 : f32
    %220 = vector.broadcast %cst_69 : f32 to vector<48x1xf32>
    %221 = arith.divf %219, %220 : vector<48x1xf32>
    %222 = vector.broadcast %221 : vector<48x1xf32> to vector<48x32xf32>
    %223 = arith.subf %217, %222 : vector<48x32xf32>
    %224 = arith.mulf %223, %223 : vector<48x32xf32>
    %cst_70 = arith.constant dense<0.000000e+00> : vector<48xf32>
    %225 = vector.multi_reduction <add>, %224, %cst_70 [1] : vector<48x32xf32> to vector<48xf32>
    %226 = vector.shape_cast %225 : vector<48xf32> to vector<48x1xf32>
    %cst_71 = arith.constant 3.200000e+01 : f32
    %227 = vector.broadcast %cst_71 : f32 to vector<48x1xf32>
    %228 = arith.divf %226, %227 : vector<48x1xf32>
    %229 = vector.broadcast %221 : vector<48x1xf32> to vector<48x32xf32>
    %230 = arith.subf %217, %229 : vector<48x32xf32>
    %cst_72 = arith.constant 9.99999974E-6 : f32
    %231 = vector.broadcast %cst_72 : f32 to vector<48x1xf32>
    %232 = arith.addf %228, %231 : vector<48x1xf32>
    %233 = math.rsqrt %232 : vector<48x1xf32>
    %234 = vector.broadcast %233 : vector<48x1xf32> to vector<48x32xf32>
    %235 = arith.mulf %230, %234 : vector<48x32xf32>
    %236 = vector.broadcast %12 : vector<1x32xf32> to vector<48x32xf32>
    %237 = arith.mulf %235, %236 : vector<48x32xf32>
    %238 = vector.broadcast %13 : vector<1x32xf32> to vector<48x32xf32>
    %239 = arith.addf %237, %238 : vector<48x32xf32>
    %240 = arith.truncf %239 : vector<48x32xf32> to vector<48x32xbf16>
    %c0_73 = arith.constant 0 : index
    %c0_74 = arith.constant 0 : index
    %c0_75 = arith.constant 0 : index
    %241 = vector.load %arg7[%c0_73, %c0_74, %c0_75] : memref<2x32x128xbf16, #tpu.memory_space<vmem>>, vector<1x32x128xbf16>
    %242 = vector.shape_cast %241 : vector<1x32x128xbf16> to vector<32x128xbf16>
    %cst_76 = arith.constant dense<0.000000e+00> : vector<48x128xf32>
    %243 = tpu.matmul %240, %242, %cst_76 {dimension_numbers = #tpu.dot_dimension_numbers<[1], [0], [0], [1], [0, 0, 1, 1], [], []>} : vector<48x32xbf16>, vector<32x128xbf16>, vector<48x128xf32> -> vector<48x128xf32>
    %244 = vector.broadcast %17 : vector<1x128xf32> to vector<48x128xf32>
    %245 = arith.addf %243, %244 : vector<48x128xf32>
    %246 = arith.mulf %245, %245 : vector<48x128xf32>
    %247 = arith.mulf %245, %246 : vector<48x128xf32>
    %cst_77 = arith.constant 4.471500e-02 : f32
    %248 = vector.broadcast %cst_77 : f32 to vector<48x128xf32>
    %249 = arith.mulf %248, %247 : vector<48x128xf32>
    %250 = arith.addf %245, %249 : vector<48x128xf32>
    %cst_78 = arith.constant 0.797884583 : f32
    %251 = vector.broadcast %cst_78 : f32 to vector<48x128xf32>
    %252 = arith.mulf %251, %250 : vector<48x128xf32>
    %253 = math.tanh %252 : vector<48x128xf32>
    %cst_79 = arith.constant 1.000000e+00 : f32
    %254 = vector.broadcast %cst_79 : f32 to vector<48x128xf32>
    %255 = arith.addf %254, %253 : vector<48x128xf32>
    %cst_80 = arith.constant 5.000000e-01 : f32
    %256 = vector.broadcast %cst_80 : f32 to vector<48x128xf32>
    %257 = arith.mulf %256, %255 : vector<48x128xf32>
    %258 = arith.mulf %245, %257 : vector<48x128xf32>
    %259 = arith.truncf %258 : vector<48x128xf32> to vector<48x128xbf16>
    %c0_81 = arith.constant 0 : index
    %c0_82 = arith.constant 0 : index
    %c0_83 = arith.constant 0 : index
    %260 = vector.load %arg8[%c0_81, %c0_82, %c0_83] : memref<2x128x32xbf16, #tpu.memory_space<vmem>>, vector<1x128x32xbf16>
    %261 = vector.shape_cast %260 : vector<1x128x32xbf16> to vector<128x32xbf16>
    %cst_84 = arith.constant dense<0.000000e+00> : vector<48x32xf32>
    %262 = tpu.matmul %259, %261, %cst_84 {dimension_numbers = #tpu.dot_dimension_numbers<[1], [0], [0], [1], [0, 0, 1, 1], [], []>} : vector<48x128xbf16>, vector<128x32xbf16>, vector<48x32xf32> -> vector<48x32xf32>
    %263 = arith.addf %217, %262 : vector<48x32xf32>
    %264 = vector.broadcast %15 : vector<1x32xf32> to vector<48x32xf32>
    %265 = arith.addf %263, %264 : vector<48x32xf32>
    %266 = vector.extract_strided_slice %0 {offsets = [11, 0], sizes = [1, 32], strides = [1, 1]} : vector<24x128xf32> to vector<1x32xf32>
    %267 = vector.extract_strided_slice %0 {offsets = [12, 0], sizes = [1, 32], strides = [1, 1]} : vector<24x128xf32> to vector<1x32xf32>
    %268 = vector.extract_strided_slice %0 {offsets = [13, 0], sizes = [1, 32], strides = [1, 1]} : vector<24x128xf32> to vector<1x32xf32>
    %269 = vector.extract_strided_slice %0 {offsets = [14, 0], sizes = [1, 32], strides = [1, 1]} : vector<24x128xf32> to vector<1x32xf32>
    %270 = vector.extract_strided_slice %0 {offsets = [15, 0], sizes = [1, 32], strides = [1, 1]} : vector<24x128xf32> to vector<1x32xf32>
    %271 = vector.extract_strided_slice %0 {offsets = [16, 0], sizes = [1, 32], strides = [1, 1]} : vector<24x128xf32> to vector<1x32xf32>
    %272 = vector.extract_strided_slice %0 {offsets = [17, 0], sizes = [1, 96], strides = [1, 1]} : vector<24x128xf32> to vector<1x96xf32>
    %273 = vector.extract_strided_slice %0 {offsets = [18, 0], sizes = [1, 128], strides = [1, 1]} : vector<24x128xf32> to vector<1x128xf32>
    %cst_85 = arith.constant dense<0.000000e+00> : vector<48xf32>
    %274 = vector.multi_reduction <add>, %265, %cst_85 [1] : vector<48x32xf32> to vector<48xf32>
    %275 = vector.shape_cast %274 : vector<48xf32> to vector<48x1xf32>
    %cst_86 = arith.constant 3.200000e+01 : f32
    %276 = vector.broadcast %cst_86 : f32 to vector<48x1xf32>
    %277 = arith.divf %275, %276 : vector<48x1xf32>
    %278 = vector.broadcast %277 : vector<48x1xf32> to vector<48x32xf32>
    %279 = arith.subf %265, %278 : vector<48x32xf32>
    %280 = arith.mulf %279, %279 : vector<48x32xf32>
    %cst_87 = arith.constant dense<0.000000e+00> : vector<48xf32>
    %281 = vector.multi_reduction <add>, %280, %cst_87 [1] : vector<48x32xf32> to vector<48xf32>
    %282 = vector.shape_cast %281 : vector<48xf32> to vector<48x1xf32>
    %cst_88 = arith.constant 3.200000e+01 : f32
    %283 = vector.broadcast %cst_88 : f32 to vector<48x1xf32>
    %284 = arith.divf %282, %283 : vector<48x1xf32>
    %285 = vector.broadcast %277 : vector<48x1xf32> to vector<48x32xf32>
    %286 = arith.subf %265, %285 : vector<48x32xf32>
    %cst_89 = arith.constant 9.99999974E-6 : f32
    %287 = vector.broadcast %cst_89 : f32 to vector<48x1xf32>
    %288 = arith.addf %284, %287 : vector<48x1xf32>
    %289 = math.rsqrt %288 : vector<48x1xf32>
    %290 = vector.broadcast %289 : vector<48x1xf32> to vector<48x32xf32>
    %291 = arith.mulf %286, %290 : vector<48x32xf32>
    %292 = vector.broadcast %266 : vector<1x32xf32> to vector<48x32xf32>
    %293 = arith.mulf %291, %292 : vector<48x32xf32>
    %294 = vector.broadcast %267 : vector<1x32xf32> to vector<48x32xf32>
    %295 = arith.addf %293, %294 : vector<48x32xf32>
    %296 = arith.truncf %295 : vector<48x32xf32> to vector<48x32xbf16>
    %c1 = arith.constant 1 : index
    %c0_90 = arith.constant 0 : index
    %c0_91 = arith.constant 0 : index
    %297 = vector.load %arg5[%c1, %c0_90, %c0_91] : memref<2x32x96xbf16, #tpu.memory_space<vmem>>, vector<1x32x96xbf16>
    %298 = vector.shape_cast %297 : vector<1x32x96xbf16> to vector<32x96xbf16>
    %cst_92 = arith.constant dense<0.000000e+00> : vector<48x96xf32>
    %299 = tpu.matmul %296, %298, %cst_92 {dimension_numbers = #tpu.dot_dimension_numbers<[1], [0], [0], [1], [0, 0, 1, 1], [], []>} : vector<48x32xbf16>, vector<32x96xbf16>, vector<48x96xf32> -> vector<48x96xf32>
    %300 = vector.broadcast %272 : vector<1x96xf32> to vector<48x96xf32>
    %301 = arith.addf %299, %300 : vector<48x96xf32>
    %c1_93 = arith.constant 1 : index
    %c0_94 = arith.constant 0 : index
    %c0_95 = arith.constant 0 : index
    %302 = vector.load %arg6[%c1_93, %c0_94, %c0_95] : memref<2x32x32xbf16, #tpu.memory_space<vmem>>, vector<1x32x32xbf16>
    %303 = vector.shape_cast %302 : vector<1x32x32xbf16> to vector<32x32xbf16>
    %304 = vector.extract_strided_slice %301 {offsets = [0, 0], sizes = [24, 8], strides = [1, 1]} : vector<48x96xf32> to vector<24x8xf32>
    %305 = vector.extract_strided_slice %301 {offsets = [0, 32], sizes = [17, 8], strides = [1, 1]} : vector<48x96xf32> to vector<17x8xf32>
    %306 = vector.extract_strided_slice %301 {offsets = [0, 64], sizes = [17, 8], strides = [1, 1]} : vector<48x96xf32> to vector<17x8xf32>
    %cst_96 = arith.constant dense<0.000000e+00> : vector<24x17xf32>
    %307 = tpu.matmul %304, %305, %cst_96 {dimension_numbers = #tpu.dot_dimension_numbers<[1], [1], [0], [0], [0, 0, 1, 0], [], []>} : vector<24x8xf32>, vector<17x8xf32>, vector<24x17xf32> -> vector<24x17xf32>
    %cst_97 = arith.constant 0.353553385 : f32
    %308 = vector.broadcast %cst_97 : f32 to vector<24x17xf32>
    %309 = arith.mulf %307, %308 : vector<24x17xf32>
    %cst_98 = arith.constant dense<0xFF800000> : vector<24xf32>
    %310 = vector.multi_reduction <maximumf>, %309, %cst_98 [1] : vector<24x17xf32> to vector<24xf32>
    %311 = vector.shape_cast %310 : vector<24xf32> to vector<24x1xf32>
    %312 = vector.broadcast %311 : vector<24x1xf32> to vector<24x17xf32>
    %313 = arith.subf %309, %312 : vector<24x17xf32>
    %314 = math.exp %313 : vector<24x17xf32>
    %cst_99 = arith.constant dense<0.000000e+00> : vector<24xf32>
    %315 = vector.multi_reduction <add>, %314, %cst_99 [1] : vector<24x17xf32> to vector<24xf32>
    %316 = vector.shape_cast %315 : vector<24xf32> to vector<24x1xf32>
    %317 = tpu.reciprocal %316 {approx = true} : vector<24x1xf32> -> vector<24x1xf32>
    %318 = vector.broadcast %317 : vector<24x1xf32> to vector<24x17xf32>
    %319 = arith.mulf %314, %318 : vector<24x17xf32>
    %cst_100 = arith.constant dense<0.000000e+00> : vector<24x8xf32>
    %320 = tpu.matmul %319, %306, %cst_100 {dimension_numbers = #tpu.dot_dimension_numbers<[1], [0], [0], [1], [0, 0, 1, 1], [], []>} : vector<24x17xf32>, vector<17x8xf32>, vector<24x8xf32> -> vector<24x8xf32>
    %321 = arith.truncf %320 : vector<24x8xf32> to vector<24x8xbf16>
    %322 = vector.extract_strided_slice %303 {offsets = [0, 0], sizes = [8, 32], strides = [1, 1]} : vector<32x32xbf16> to vector<8x32xbf16>
    %cst_101 = arith.constant dense<0.000000e+00> : vector<24x32xf32>
    %323 = tpu.matmul %321, %322, %cst_101 {dimension_numbers = #tpu.dot_dimension_numbers<[1], [0], [0], [1], [0, 0, 1, 1], [], []>} : vector<24x8xbf16>, vector<8x32xbf16>, vector<24x32xf32> -> vector<24x32xf32>
    %324 = vector.extract_strided_slice %301 {offsets = [0, 8], sizes = [24, 8], strides = [1, 1]} : vector<48x96xf32> to vector<24x8xf32>
    %325 = vector.extract_strided_slice %301 {offsets = [0, 40], sizes = [17, 8], strides = [1, 1]} : vector<48x96xf32> to vector<17x8xf32>
    %326 = vector.extract_strided_slice %301 {offsets = [0, 72], sizes = [17, 8], strides = [1, 1]} : vector<48x96xf32> to vector<17x8xf32>
    %cst_102 = arith.constant dense<0.000000e+00> : vector<24x17xf32>
    %327 = tpu.matmul %324, %325, %cst_102 {dimension_numbers = #tpu.dot_dimension_numbers<[1], [1], [0], [0], [0, 0, 1, 0], [], []>} : vector<24x8xf32>, vector<17x8xf32>, vector<24x17xf32> -> vector<24x17xf32>
    %cst_103 = arith.constant 0.353553385 : f32
    %328 = vector.broadcast %cst_103 : f32 to vector<24x17xf32>
    %329 = arith.mulf %327, %328 : vector<24x17xf32>
    %cst_104 = arith.constant dense<0xFF800000> : vector<24xf32>
    %330 = vector.multi_reduction <maximumf>, %329, %cst_104 [1] : vector<24x17xf32> to vector<24xf32>
    %331 = vector.shape_cast %330 : vector<24xf32> to vector<24x1xf32>
    %332 = vector.broadcast %331 : vector<24x1xf32> to vector<24x17xf32>
    %333 = arith.subf %329, %332 : vector<24x17xf32>
    %334 = math.exp %333 : vector<24x17xf32>
    %cst_105 = arith.constant dense<0.000000e+00> : vector<24xf32>
    %335 = vector.multi_reduction <add>, %334, %cst_105 [1] : vector<24x17xf32> to vector<24xf32>
    %336 = vector.shape_cast %335 : vector<24xf32> to vector<24x1xf32>
    %337 = tpu.reciprocal %336 {approx = true} : vector<24x1xf32> -> vector<24x1xf32>
    %338 = vector.broadcast %337 : vector<24x1xf32> to vector<24x17xf32>
    %339 = arith.mulf %334, %338 : vector<24x17xf32>
    %cst_106 = arith.constant dense<0.000000e+00> : vector<24x8xf32>
    %340 = tpu.matmul %339, %326, %cst_106 {dimension_numbers = #tpu.dot_dimension_numbers<[1], [0], [0], [1], [0, 0, 1, 1], [], []>} : vector<24x17xf32>, vector<17x8xf32>, vector<24x8xf32> -> vector<24x8xf32>
    %341 = arith.truncf %340 : vector<24x8xf32> to vector<24x8xbf16>
    %342 = vector.extract_strided_slice %303 {offsets = [8, 0], sizes = [8, 32], strides = [1, 1]} : vector<32x32xbf16> to vector<8x32xbf16>
    %cst_107 = arith.constant dense<0.000000e+00> : vector<24x32xf32>
    %343 = tpu.matmul %341, %342, %cst_107 {dimension_numbers = #tpu.dot_dimension_numbers<[1], [0], [0], [1], [0, 0, 1, 1], [], []>} : vector<24x8xbf16>, vector<8x32xbf16>, vector<24x32xf32> -> vector<24x32xf32>
    %344 = arith.addf %323, %343 : vector<24x32xf32>
    %345 = vector.extract_strided_slice %301 {offsets = [0, 16], sizes = [24, 8], strides = [1, 1]} : vector<48x96xf32> to vector<24x8xf32>
    %346 = vector.extract_strided_slice %301 {offsets = [0, 48], sizes = [17, 8], strides = [1, 1]} : vector<48x96xf32> to vector<17x8xf32>
    %347 = vector.extract_strided_slice %301 {offsets = [0, 80], sizes = [17, 8], strides = [1, 1]} : vector<48x96xf32> to vector<17x8xf32>
    %cst_108 = arith.constant dense<0.000000e+00> : vector<24x17xf32>
    %348 = tpu.matmul %345, %346, %cst_108 {dimension_numbers = #tpu.dot_dimension_numbers<[1], [1], [0], [0], [0, 0, 1, 0], [], []>} : vector<24x8xf32>, vector<17x8xf32>, vector<24x17xf32> -> vector<24x17xf32>
    %cst_109 = arith.constant 0.353553385 : f32
    %349 = vector.broadcast %cst_109 : f32 to vector<24x17xf32>
    %350 = arith.mulf %348, %349 : vector<24x17xf32>
    %cst_110 = arith.constant dense<0xFF800000> : vector<24xf32>
    %351 = vector.multi_reduction <maximumf>, %350, %cst_110 [1] : vector<24x17xf32> to vector<24xf32>
    %352 = vector.shape_cast %351 : vector<24xf32> to vector<24x1xf32>
    %353 = vector.broadcast %352 : vector<24x1xf32> to vector<24x17xf32>
    %354 = arith.subf %350, %353 : vector<24x17xf32>
    %355 = math.exp %354 : vector<24x17xf32>
    %cst_111 = arith.constant dense<0.000000e+00> : vector<24xf32>
    %356 = vector.multi_reduction <add>, %355, %cst_111 [1] : vector<24x17xf32> to vector<24xf32>
    %357 = vector.shape_cast %356 : vector<24xf32> to vector<24x1xf32>
    %358 = tpu.reciprocal %357 {approx = true} : vector<24x1xf32> -> vector<24x1xf32>
    %359 = vector.broadcast %358 : vector<24x1xf32> to vector<24x17xf32>
    %360 = arith.mulf %355, %359 : vector<24x17xf32>
    %cst_112 = arith.constant dense<0.000000e+00> : vector<24x8xf32>
    %361 = tpu.matmul %360, %347, %cst_112 {dimension_numbers = #tpu.dot_dimension_numbers<[1], [0], [0], [1], [0, 0, 1, 1], [], []>} : vector<24x17xf32>, vector<17x8xf32>, vector<24x8xf32> -> vector<24x8xf32>
    %362 = arith.truncf %361 : vector<24x8xf32> to vector<24x8xbf16>
    %363 = vector.extract_strided_slice %303 {offsets = [16, 0], sizes = [8, 32], strides = [1, 1]} : vector<32x32xbf16> to vector<8x32xbf16>
    %cst_113 = arith.constant dense<0.000000e+00> : vector<24x32xf32>
    %364 = tpu.matmul %362, %363, %cst_113 {dimension_numbers = #tpu.dot_dimension_numbers<[1], [0], [0], [1], [0, 0, 1, 1], [], []>} : vector<24x8xbf16>, vector<8x32xbf16>, vector<24x32xf32> -> vector<24x32xf32>
    %365 = arith.addf %344, %364 : vector<24x32xf32>
    %366 = vector.extract_strided_slice %301 {offsets = [0, 24], sizes = [24, 8], strides = [1, 1]} : vector<48x96xf32> to vector<24x8xf32>
    %367 = vector.extract_strided_slice %301 {offsets = [0, 56], sizes = [17, 8], strides = [1, 1]} : vector<48x96xf32> to vector<17x8xf32>
    %368 = vector.extract_strided_slice %301 {offsets = [0, 88], sizes = [17, 8], strides = [1, 1]} : vector<48x96xf32> to vector<17x8xf32>
    %cst_114 = arith.constant dense<0.000000e+00> : vector<24x17xf32>
    %369 = tpu.matmul %366, %367, %cst_114 {dimension_numbers = #tpu.dot_dimension_numbers<[1], [1], [0], [0], [0, 0, 1, 0], [], []>} : vector<24x8xf32>, vector<17x8xf32>, vector<24x17xf32> -> vector<24x17xf32>
    %cst_115 = arith.constant 0.353553385 : f32
    %370 = vector.broadcast %cst_115 : f32 to vector<24x17xf32>
    %371 = arith.mulf %369, %370 : vector<24x17xf32>
    %cst_116 = arith.constant dense<0xFF800000> : vector<24xf32>
    %372 = vector.multi_reduction <maximumf>, %371, %cst_116 [1] : vector<24x17xf32> to vector<24xf32>
    %373 = vector.shape_cast %372 : vector<24xf32> to vector<24x1xf32>
    %374 = vector.broadcast %373 : vector<24x1xf32> to vector<24x17xf32>
    %375 = arith.subf %371, %374 : vector<24x17xf32>
    %376 = math.exp %375 : vector<24x17xf32>
    %cst_117 = arith.constant dense<0.000000e+00> : vector<24xf32>
    %377 = vector.multi_reduction <add>, %376, %cst_117 [1] : vector<24x17xf32> to vector<24xf32>
    %378 = vector.shape_cast %377 : vector<24xf32> to vector<24x1xf32>
    %379 = tpu.reciprocal %378 {approx = true} : vector<24x1xf32> -> vector<24x1xf32>
    %380 = vector.broadcast %379 : vector<24x1xf32> to vector<24x17xf32>
    %381 = arith.mulf %376, %380 : vector<24x17xf32>
    %cst_118 = arith.constant dense<0.000000e+00> : vector<24x8xf32>
    %382 = tpu.matmul %381, %368, %cst_118 {dimension_numbers = #tpu.dot_dimension_numbers<[1], [0], [0], [1], [0, 0, 1, 1], [], []>} : vector<24x17xf32>, vector<17x8xf32>, vector<24x8xf32> -> vector<24x8xf32>
    %383 = arith.truncf %382 : vector<24x8xf32> to vector<24x8xbf16>
    %384 = vector.extract_strided_slice %303 {offsets = [24, 0], sizes = [8, 32], strides = [1, 1]} : vector<32x32xbf16> to vector<8x32xbf16>
    %cst_119 = arith.constant dense<0.000000e+00> : vector<24x32xf32>
    %385 = tpu.matmul %383, %384, %cst_119 {dimension_numbers = #tpu.dot_dimension_numbers<[1], [0], [0], [1], [0, 0, 1, 1], [], []>} : vector<24x8xbf16>, vector<8x32xbf16>, vector<24x32xf32> -> vector<24x32xf32>
    %386 = arith.addf %365, %385 : vector<24x32xf32>
    %387 = vector.extract_strided_slice %301 {offsets = [24, 0], sizes = [24, 8], strides = [1, 1]} : vector<48x96xf32> to vector<24x8xf32>
    %388 = vector.extract_strided_slice %301 {offsets = [24, 32], sizes = [17, 8], strides = [1, 1]} : vector<48x96xf32> to vector<17x8xf32>
    %389 = vector.extract_strided_slice %301 {offsets = [24, 64], sizes = [17, 8], strides = [1, 1]} : vector<48x96xf32> to vector<17x8xf32>
    %cst_120 = arith.constant dense<0.000000e+00> : vector<24x17xf32>
    %390 = tpu.matmul %387, %388, %cst_120 {dimension_numbers = #tpu.dot_dimension_numbers<[1], [1], [0], [0], [0, 0, 1, 0], [], []>} : vector<24x8xf32>, vector<17x8xf32>, vector<24x17xf32> -> vector<24x17xf32>
    %cst_121 = arith.constant 0.353553385 : f32
    %391 = vector.broadcast %cst_121 : f32 to vector<24x17xf32>
    %392 = arith.mulf %390, %391 : vector<24x17xf32>
    %cst_122 = arith.constant dense<0xFF800000> : vector<24xf32>
    %393 = vector.multi_reduction <maximumf>, %392, %cst_122 [1] : vector<24x17xf32> to vector<24xf32>
    %394 = vector.shape_cast %393 : vector<24xf32> to vector<24x1xf32>
    %395 = vector.broadcast %394 : vector<24x1xf32> to vector<24x17xf32>
    %396 = arith.subf %392, %395 : vector<24x17xf32>
    %397 = math.exp %396 : vector<24x17xf32>
    %cst_123 = arith.constant dense<0.000000e+00> : vector<24xf32>
    %398 = vector.multi_reduction <add>, %397, %cst_123 [1] : vector<24x17xf32> to vector<24xf32>
    %399 = vector.shape_cast %398 : vector<24xf32> to vector<24x1xf32>
    %400 = tpu.reciprocal %399 {approx = true} : vector<24x1xf32> -> vector<24x1xf32>
    %401 = vector.broadcast %400 : vector<24x1xf32> to vector<24x17xf32>
    %402 = arith.mulf %397, %401 : vector<24x17xf32>
    %cst_124 = arith.constant dense<0.000000e+00> : vector<24x8xf32>
    %403 = tpu.matmul %402, %389, %cst_124 {dimension_numbers = #tpu.dot_dimension_numbers<[1], [0], [0], [1], [0, 0, 1, 1], [], []>} : vector<24x17xf32>, vector<17x8xf32>, vector<24x8xf32> -> vector<24x8xf32>
    %404 = arith.truncf %403 : vector<24x8xf32> to vector<24x8xbf16>
    %405 = vector.extract_strided_slice %303 {offsets = [0, 0], sizes = [8, 32], strides = [1, 1]} : vector<32x32xbf16> to vector<8x32xbf16>
    %cst_125 = arith.constant dense<0.000000e+00> : vector<24x32xf32>
    %406 = tpu.matmul %404, %405, %cst_125 {dimension_numbers = #tpu.dot_dimension_numbers<[1], [0], [0], [1], [0, 0, 1, 1], [], []>} : vector<24x8xbf16>, vector<8x32xbf16>, vector<24x32xf32> -> vector<24x32xf32>
    %407 = vector.extract_strided_slice %301 {offsets = [24, 8], sizes = [24, 8], strides = [1, 1]} : vector<48x96xf32> to vector<24x8xf32>
    %408 = vector.extract_strided_slice %301 {offsets = [24, 40], sizes = [17, 8], strides = [1, 1]} : vector<48x96xf32> to vector<17x8xf32>
    %409 = vector.extract_strided_slice %301 {offsets = [24, 72], sizes = [17, 8], strides = [1, 1]} : vector<48x96xf32> to vector<17x8xf32>
    %cst_126 = arith.constant dense<0.000000e+00> : vector<24x17xf32>
    %410 = tpu.matmul %407, %408, %cst_126 {dimension_numbers = #tpu.dot_dimension_numbers<[1], [1], [0], [0], [0, 0, 1, 0], [], []>} : vector<24x8xf32>, vector<17x8xf32>, vector<24x17xf32> -> vector<24x17xf32>
    %cst_127 = arith.constant 0.353553385 : f32
    %411 = vector.broadcast %cst_127 : f32 to vector<24x17xf32>
    %412 = arith.mulf %410, %411 : vector<24x17xf32>
    %cst_128 = arith.constant dense<0xFF800000> : vector<24xf32>
    %413 = vector.multi_reduction <maximumf>, %412, %cst_128 [1] : vector<24x17xf32> to vector<24xf32>
    %414 = vector.shape_cast %413 : vector<24xf32> to vector<24x1xf32>
    %415 = vector.broadcast %414 : vector<24x1xf32> to vector<24x17xf32>
    %416 = arith.subf %412, %415 : vector<24x17xf32>
    %417 = math.exp %416 : vector<24x17xf32>
    %cst_129 = arith.constant dense<0.000000e+00> : vector<24xf32>
    %418 = vector.multi_reduction <add>, %417, %cst_129 [1] : vector<24x17xf32> to vector<24xf32>
    %419 = vector.shape_cast %418 : vector<24xf32> to vector<24x1xf32>
    %420 = tpu.reciprocal %419 {approx = true} : vector<24x1xf32> -> vector<24x1xf32>
    %421 = vector.broadcast %420 : vector<24x1xf32> to vector<24x17xf32>
    %422 = arith.mulf %417, %421 : vector<24x17xf32>
    %cst_130 = arith.constant dense<0.000000e+00> : vector<24x8xf32>
    %423 = tpu.matmul %422, %409, %cst_130 {dimension_numbers = #tpu.dot_dimension_numbers<[1], [0], [0], [1], [0, 0, 1, 1], [], []>} : vector<24x17xf32>, vector<17x8xf32>, vector<24x8xf32> -> vector<24x8xf32>
    %424 = arith.truncf %423 : vector<24x8xf32> to vector<24x8xbf16>
    %425 = vector.extract_strided_slice %303 {offsets = [8, 0], sizes = [8, 32], strides = [1, 1]} : vector<32x32xbf16> to vector<8x32xbf16>
    %cst_131 = arith.constant dense<0.000000e+00> : vector<24x32xf32>
    %426 = tpu.matmul %424, %425, %cst_131 {dimension_numbers = #tpu.dot_dimension_numbers<[1], [0], [0], [1], [0, 0, 1, 1], [], []>} : vector<24x8xbf16>, vector<8x32xbf16>, vector<24x32xf32> -> vector<24x32xf32>
    %427 = arith.addf %406, %426 : vector<24x32xf32>
    %428 = vector.extract_strided_slice %301 {offsets = [24, 16], sizes = [24, 8], strides = [1, 1]} : vector<48x96xf32> to vector<24x8xf32>
    %429 = vector.extract_strided_slice %301 {offsets = [24, 48], sizes = [17, 8], strides = [1, 1]} : vector<48x96xf32> to vector<17x8xf32>
    %430 = vector.extract_strided_slice %301 {offsets = [24, 80], sizes = [17, 8], strides = [1, 1]} : vector<48x96xf32> to vector<17x8xf32>
    %cst_132 = arith.constant dense<0.000000e+00> : vector<24x17xf32>
    %431 = tpu.matmul %428, %429, %cst_132 {dimension_numbers = #tpu.dot_dimension_numbers<[1], [1], [0], [0], [0, 0, 1, 0], [], []>} : vector<24x8xf32>, vector<17x8xf32>, vector<24x17xf32> -> vector<24x17xf32>
    %cst_133 = arith.constant 0.353553385 : f32
    %432 = vector.broadcast %cst_133 : f32 to vector<24x17xf32>
    %433 = arith.mulf %431, %432 : vector<24x17xf32>
    %cst_134 = arith.constant dense<0xFF800000> : vector<24xf32>
    %434 = vector.multi_reduction <maximumf>, %433, %cst_134 [1] : vector<24x17xf32> to vector<24xf32>
    %435 = vector.shape_cast %434 : vector<24xf32> to vector<24x1xf32>
    %436 = vector.broadcast %435 : vector<24x1xf32> to vector<24x17xf32>
    %437 = arith.subf %433, %436 : vector<24x17xf32>
    %438 = math.exp %437 : vector<24x17xf32>
    %cst_135 = arith.constant dense<0.000000e+00> : vector<24xf32>
    %439 = vector.multi_reduction <add>, %438, %cst_135 [1] : vector<24x17xf32> to vector<24xf32>
    %440 = vector.shape_cast %439 : vector<24xf32> to vector<24x1xf32>
    %441 = tpu.reciprocal %440 {approx = true} : vector<24x1xf32> -> vector<24x1xf32>
    %442 = vector.broadcast %441 : vector<24x1xf32> to vector<24x17xf32>
    %443 = arith.mulf %438, %442 : vector<24x17xf32>
    %cst_136 = arith.constant dense<0.000000e+00> : vector<24x8xf32>
    %444 = tpu.matmul %443, %430, %cst_136 {dimension_numbers = #tpu.dot_dimension_numbers<[1], [0], [0], [1], [0, 0, 1, 1], [], []>} : vector<24x17xf32>, vector<17x8xf32>, vector<24x8xf32> -> vector<24x8xf32>
    %445 = arith.truncf %444 : vector<24x8xf32> to vector<24x8xbf16>
    %446 = vector.extract_strided_slice %303 {offsets = [16, 0], sizes = [8, 32], strides = [1, 1]} : vector<32x32xbf16> to vector<8x32xbf16>
    %cst_137 = arith.constant dense<0.000000e+00> : vector<24x32xf32>
    %447 = tpu.matmul %445, %446, %cst_137 {dimension_numbers = #tpu.dot_dimension_numbers<[1], [0], [0], [1], [0, 0, 1, 1], [], []>} : vector<24x8xbf16>, vector<8x32xbf16>, vector<24x32xf32> -> vector<24x32xf32>
    %448 = arith.addf %427, %447 : vector<24x32xf32>
    %449 = vector.extract_strided_slice %301 {offsets = [24, 24], sizes = [24, 8], strides = [1, 1]} : vector<48x96xf32> to vector<24x8xf32>
    %450 = vector.extract_strided_slice %301 {offsets = [24, 56], sizes = [17, 8], strides = [1, 1]} : vector<48x96xf32> to vector<17x8xf32>
    %451 = vector.extract_strided_slice %301 {offsets = [24, 88], sizes = [17, 8], strides = [1, 1]} : vector<48x96xf32> to vector<17x8xf32>
    %cst_138 = arith.constant dense<0.000000e+00> : vector<24x17xf32>
    %452 = tpu.matmul %449, %450, %cst_138 {dimension_numbers = #tpu.dot_dimension_numbers<[1], [1], [0], [0], [0, 0, 1, 0], [], []>} : vector<24x8xf32>, vector<17x8xf32>, vector<24x17xf32> -> vector<24x17xf32>
    %cst_139 = arith.constant 0.353553385 : f32
    %453 = vector.broadcast %cst_139 : f32 to vector<24x17xf32>
    %454 = arith.mulf %452, %453 : vector<24x17xf32>
    %cst_140 = arith.constant dense<0xFF800000> : vector<24xf32>
    %455 = vector.multi_reduction <maximumf>, %454, %cst_140 [1] : vector<24x17xf32> to vector<24xf32>
    %456 = vector.shape_cast %455 : vector<24xf32> to vector<24x1xf32>
    %457 = vector.broadcast %456 : vector<24x1xf32> to vector<24x17xf32>
    %458 = arith.subf %454, %457 : vector<24x17xf32>
    %459 = math.exp %458 : vector<24x17xf32>
    %cst_141 = arith.constant dense<0.000000e+00> : vector<24xf32>
    %460 = vector.multi_reduction <add>, %459, %cst_141 [1] : vector<24x17xf32> to vector<24xf32>
    %461 = vector.shape_cast %460 : vector<24xf32> to vector<24x1xf32>
    %462 = tpu.reciprocal %461 {approx = true} : vector<24x1xf32> -> vector<24x1xf32>
    %463 = vector.broadcast %462 : vector<24x1xf32> to vector<24x17xf32>
    %464 = arith.mulf %459, %463 : vector<24x17xf32>
    %cst_142 = arith.constant dense<0.000000e+00> : vector<24x8xf32>
    %465 = tpu.matmul %464, %451, %cst_142 {dimension_numbers = #tpu.dot_dimension_numbers<[1], [0], [0], [1], [0, 0, 1, 1], [], []>} : vector<24x17xf32>, vector<17x8xf32>, vector<24x8xf32> -> vector<24x8xf32>
    %466 = arith.truncf %465 : vector<24x8xf32> to vector<24x8xbf16>
    %467 = vector.extract_strided_slice %303 {offsets = [24, 0], sizes = [8, 32], strides = [1, 1]} : vector<32x32xbf16> to vector<8x32xbf16>
    %cst_143 = arith.constant dense<0.000000e+00> : vector<24x32xf32>
    %468 = tpu.matmul %466, %467, %cst_143 {dimension_numbers = #tpu.dot_dimension_numbers<[1], [0], [0], [1], [0, 0, 1, 1], [], []>} : vector<24x8xbf16>, vector<8x32xbf16>, vector<24x32xf32> -> vector<24x32xf32>
    %469 = arith.addf %448, %468 : vector<24x32xf32>
    %470 = tpu.concatenate %386, %469 in 0 : vector<24x32xf32>, vector<24x32xf32> -> vector<48x32xf32>
    %471 = vector.broadcast %270 : vector<1x32xf32> to vector<48x32xf32>
    %472 = arith.addf %265, %471 : vector<48x32xf32>
    %473 = arith.addf %472, %470 : vector<48x32xf32>
    %cst_144 = arith.constant dense<0.000000e+00> : vector<48xf32>
    %474 = vector.multi_reduction <add>, %473, %cst_144 [1] : vector<48x32xf32> to vector<48xf32>
    %475 = vector.shape_cast %474 : vector<48xf32> to vector<48x1xf32>
    %cst_145 = arith.constant 3.200000e+01 : f32
    %476 = vector.broadcast %cst_145 : f32 to vector<48x1xf32>
    %477 = arith.divf %475, %476 : vector<48x1xf32>
    %478 = vector.broadcast %477 : vector<48x1xf32> to vector<48x32xf32>
    %479 = arith.subf %473, %478 : vector<48x32xf32>
    %480 = arith.mulf %479, %479 : vector<48x32xf32>
    %cst_146 = arith.constant dense<0.000000e+00> : vector<48xf32>
    %481 = vector.multi_reduction <add>, %480, %cst_146 [1] : vector<48x32xf32> to vector<48xf32>
    %482 = vector.shape_cast %481 : vector<48xf32> to vector<48x1xf32>
    %cst_147 = arith.constant 3.200000e+01 : f32
    %483 = vector.broadcast %cst_147 : f32 to vector<48x1xf32>
    %484 = arith.divf %482, %483 : vector<48x1xf32>
    %485 = vector.broadcast %477 : vector<48x1xf32> to vector<48x32xf32>
    %486 = arith.subf %473, %485 : vector<48x32xf32>
    %cst_148 = arith.constant 9.99999974E-6 : f32
    %487 = vector.broadcast %cst_148 : f32 to vector<48x1xf32>
    %488 = arith.addf %484, %487 : vector<48x1xf32>
    %489 = math.rsqrt %488 : vector<48x1xf32>
    %490 = vector.broadcast %489 : vector<48x1xf32> to vector<48x32xf32>
    %491 = arith.mulf %486, %490 : vector<48x32xf32>
    %492 = vector.broadcast %268 : vector<1x32xf32> to vector<48x32xf32>
    %493 = arith.mulf %491, %492 : vector<48x32xf32>
    %494 = vector.broadcast %269 : vector<1x32xf32> to vector<48x32xf32>
    %495 = arith.addf %493, %494 : vector<48x32xf32>
    %496 = arith.truncf %495 : vector<48x32xf32> to vector<48x32xbf16>
    %c1_149 = arith.constant 1 : index
    %c0_150 = arith.constant 0 : index
    %c0_151 = arith.constant 0 : index
    %497 = vector.load %arg7[%c1_149, %c0_150, %c0_151] : memref<2x32x128xbf16, #tpu.memory_space<vmem>>, vector<1x32x128xbf16>
    %498 = vector.shape_cast %497 : vector<1x32x128xbf16> to vector<32x128xbf16>
    %cst_152 = arith.constant dense<0.000000e+00> : vector<48x128xf32>
    %499 = tpu.matmul %496, %498, %cst_152 {dimension_numbers = #tpu.dot_dimension_numbers<[1], [0], [0], [1], [0, 0, 1, 1], [], []>} : vector<48x32xbf16>, vector<32x128xbf16>, vector<48x128xf32> -> vector<48x128xf32>
    %500 = vector.broadcast %273 : vector<1x128xf32> to vector<48x128xf32>
    %501 = arith.addf %499, %500 : vector<48x128xf32>
    %502 = arith.mulf %501, %501 : vector<48x128xf32>
    %503 = arith.mulf %501, %502 : vector<48x128xf32>
    %cst_153 = arith.constant 4.471500e-02 : f32
    %504 = vector.broadcast %cst_153 : f32 to vector<48x128xf32>
    %505 = arith.mulf %504, %503 : vector<48x128xf32>
    %506 = arith.addf %501, %505 : vector<48x128xf32>
    %cst_154 = arith.constant 0.797884583 : f32
    %507 = vector.broadcast %cst_154 : f32 to vector<48x128xf32>
    %508 = arith.mulf %507, %506 : vector<48x128xf32>
    %509 = math.tanh %508 : vector<48x128xf32>
    %cst_155 = arith.constant 1.000000e+00 : f32
    %510 = vector.broadcast %cst_155 : f32 to vector<48x128xf32>
    %511 = arith.addf %510, %509 : vector<48x128xf32>
    %cst_156 = arith.constant 5.000000e-01 : f32
    %512 = vector.broadcast %cst_156 : f32 to vector<48x128xf32>
    %513 = arith.mulf %512, %511 : vector<48x128xf32>
    %514 = arith.mulf %501, %513 : vector<48x128xf32>
    %515 = arith.truncf %514 : vector<48x128xf32> to vector<48x128xbf16>
    %c1_157 = arith.constant 1 : index
    %c0_158 = arith.constant 0 : index
    %c0_159 = arith.constant 0 : index
    %516 = vector.load %arg8[%c1_157, %c0_158, %c0_159] : memref<2x128x32xbf16, #tpu.memory_space<vmem>>, vector<1x128x32xbf16>
    %517 = vector.shape_cast %516 : vector<1x128x32xbf16> to vector<128x32xbf16>
    %cst_160 = arith.constant dense<0.000000e+00> : vector<48x32xf32>
    %518 = tpu.matmul %515, %517, %cst_160 {dimension_numbers = #tpu.dot_dimension_numbers<[1], [0], [0], [1], [0, 0, 1, 1], [], []>} : vector<48x128xbf16>, vector<128x32xbf16>, vector<48x32xf32> -> vector<48x32xf32>
    %519 = arith.addf %473, %518 : vector<48x32xf32>
    %520 = vector.broadcast %271 : vector<1x32xf32> to vector<48x32xf32>
    %521 = arith.addf %519, %520 : vector<48x32xf32>
    %522 = tpu.iota {dimensions = array<i32: 1>} : vector<2x48xi32>
    %523 = tpu.iota {dimensions = array<i32: 0>} : vector<2x48xi32>
    %c24_i32 = arith.constant 24 : i32
    %524 = vector.broadcast %c24_i32 : i32 to vector<2x48xi32>
    %525 = arith.muli %523, %524 : vector<2x48xi32>
    %526 = arith.cmpi eq, %522, %525 : vector<2x48xi32>
    %527 = arith.extui %526 : vector<2x48xi1> to vector<2x48xi32>
    %528 = arith.sitofp %527 : vector<2x48xi32> to vector<2x48xf32>
    %cst_161 = arith.constant dense<0.000000e+00> : vector<2x32xf32>
    %529 = tpu.matmul %528, %521, %cst_161 {dimension_numbers = #tpu.dot_dimension_numbers<[1], [0], [0], [1], [0, 0, 1, 1], [], []>} : vector<2x48xf32>, vector<48x32xf32>, vector<2x32xf32> -> vector<2x32xf32>
    %cst_162 = arith.constant dense<0.000000e+00> : vector<2xf32>
    %530 = vector.multi_reduction <add>, %529, %cst_162 [1] : vector<2x32xf32> to vector<2xf32>
    %531 = vector.shape_cast %530 : vector<2xf32> to vector<2x1xf32>
    %cst_163 = arith.constant 3.200000e+01 : f32
    %532 = vector.broadcast %cst_163 : f32 to vector<2x1xf32>
    %533 = arith.divf %531, %532 : vector<2x1xf32>
    %534 = vector.broadcast %533 : vector<2x1xf32> to vector<2x32xf32>
    %535 = arith.subf %529, %534 : vector<2x32xf32>
    %536 = arith.mulf %535, %535 : vector<2x32xf32>
    %cst_164 = arith.constant dense<0.000000e+00> : vector<2xf32>
    %537 = vector.multi_reduction <add>, %536, %cst_164 [1] : vector<2x32xf32> to vector<2xf32>
    %538 = vector.shape_cast %537 : vector<2xf32> to vector<2x1xf32>
    %cst_165 = arith.constant 3.200000e+01 : f32
    %539 = vector.broadcast %cst_165 : f32 to vector<2x1xf32>
    %540 = arith.divf %538, %539 : vector<2x1xf32>
    %541 = vector.broadcast %533 : vector<2x1xf32> to vector<2x32xf32>
    %542 = arith.subf %529, %541 : vector<2x32xf32>
    %cst_166 = arith.constant 9.99999974E-6 : f32
    %543 = vector.broadcast %cst_166 : f32 to vector<2x1xf32>
    %544 = arith.addf %540, %543 : vector<2x1xf32>
    %545 = math.rsqrt %544 : vector<2x1xf32>
    %546 = vector.broadcast %545 : vector<2x1xf32> to vector<2x32xf32>
    %547 = arith.mulf %542, %546 : vector<2x32xf32>
    %548 = vector.broadcast %1 : vector<1x32xf32> to vector<2x32xf32>
    %549 = arith.mulf %547, %548 : vector<2x32xf32>
    %550 = vector.broadcast %2 : vector<1x32xf32> to vector<2x32xf32>
    %551 = arith.addf %549, %550 : vector<2x32xf32>
    %552 = arith.truncf %551 : vector<2x32xf32> to vector<2x32xbf16>
    %c0_167 = arith.constant 0 : index
    %c0_168 = arith.constant 0 : index
    %553 = vector.load %arg9[%c0_167, %c0_168] : memref<32x128xbf16, #tpu.memory_space<vmem>>, vector<32x128xbf16>
    %cst_169 = arith.constant dense<0.000000e+00> : vector<2x128xf32>
    %554 = tpu.matmul %552, %553, %cst_169 {dimension_numbers = #tpu.dot_dimension_numbers<[1], [0], [0], [1], [0, 0, 1, 1], [], []>} : vector<2x32xbf16>, vector<32x128xbf16>, vector<2x128xf32> -> vector<2x128xf32>
    %555 = vector.broadcast %3 : vector<1x128xf32> to vector<2x128xf32>
    %556 = arith.addf %554, %555 : vector<2x128xf32>
    %557 = vector.shape_cast %556 : vector<2x128xf32> to vector<1x2x128xf32>
    %c0_170 = arith.constant 0 : index
    %c0_171 = arith.constant 0 : index
    %c0_172 = arith.constant 0 : index
    %558 = vector.load %arg10[%c0_170, %c0_171, %c0_172] : memref<1x2x128xf32, #tpu.memory_space<vmem>>, vector<1x2x128xf32>
    tpu.vector_store %arg10[%c0_170, %c0_171, %c0_172], %557 {strides = array<i32>} : memref<1x2x128xf32, #tpu.memory_space<vmem>>, vector<1x2x128xf32>,
    return
  }
  func.func @transform_0(%arg0: i32) -> (i32, i32, i32) {
    %c0_i32 = arith.constant 0 : i32
    %c0_i32_0 = arith.constant 0 : i32
    %c0_i32_1 = arith.constant 0 : i32
    return %arg0, %c0_i32, %c0_i32_0 : i32, i32, i32
  }
  func.func @transform_1(%arg0: i32) -> (i32, i32) {
    %c0_i32 = arith.constant 0 : i32
    %c0_i32_0 = arith.constant 0 : i32
    %c0_i32_1 = arith.constant 0 : i32
    return %c0_i32, %c0_i32_0 : i32, i32
  }
  func.func @transform_2(%arg0: i32) -> (i32, i32) {
    %c0_i32 = arith.constant 0 : i32
    %c0_i32_0 = arith.constant 0 : i32
    %c0_i32_1 = arith.constant 0 : i32
    return %c0_i32, %c0_i32_0 : i32, i32
  }
  func.func @transform_3(%arg0: i32) -> (i32, i32) {
    %c0_i32 = arith.constant 0 : i32
    %c0_i32_0 = arith.constant 0 : i32
    %c0_i32_1 = arith.constant 0 : i32
    return %c0_i32, %c0_i32_0 : i32, i32
  }
  func.func @transform_4(%arg0: i32) -> (i32, i32, i32) {
    %c0_i32 = arith.constant 0 : i32
    %c0_i32_0 = arith.constant 0 : i32
    %c0_i32_1 = arith.constant 0 : i32
    %c0_i32_2 = arith.constant 0 : i32
    return %c0_i32, %c0_i32_0, %c0_i32_1 : i32, i32, i32
  }
  func.func @transform_5(%arg0: i32) -> (i32, i32, i32) {
    %c0_i32 = arith.constant 0 : i32
    %c0_i32_0 = arith.constant 0 : i32
    %c0_i32_1 = arith.constant 0 : i32
    %c0_i32_2 = arith.constant 0 : i32
    return %c0_i32, %c0_i32_0, %c0_i32_1 : i32, i32, i32
  }
  func.func @transform_6(%arg0: i32) -> (i32, i32, i32) {
    %c0_i32 = arith.constant 0 : i32
    %c0_i32_0 = arith.constant 0 : i32
    %c0_i32_1 = arith.constant 0 : i32
    %c0_i32_2 = arith.constant 0 : i32
    return %c0_i32, %c0_i32_0, %c0_i32_1 : i32, i32, i32
  }
  func.func @transform_7(%arg0: i32) -> (i32, i32, i32) {
    %c0_i32 = arith.constant 0 : i32
    %c0_i32_0 = arith.constant 0 : i32
    %c0_i32_1 = arith.constant 0 : i32
    %c0_i32_2 = arith.constant 0 : i32
    return %c0_i32, %c0_i32_0, %c0_i32_1 : i32, i32, i32
  }
  func.func @transform_8(%arg0: i32) -> (i32, i32) {
    %c0_i32 = arith.constant 0 : i32
    %c0_i32_0 = arith.constant 0 : i32
    %c0_i32_1 = arith.constant 0 : i32
    return %c0_i32, %c0_i32_0 : i32, i32
  }
  func.func @transform_9(%arg0: i32) -> (i32, i32, i32) {
    %c0_i32 = arith.constant 0 : i32
    %c0_i32_0 = arith.constant 0 : i32
    %c0_i32_1 = arith.constant 0 : i32
    return %arg0, %c0_i32, %c0_i32_0 : i32, i32, i32
  }
}

</mosaic_0001>

<llo_original>
// kernel: vit_forward.1
$region0: #{vit_forward.1}
  #allocation0 [shape = 'u32[]', space=smem, size = 0x4, offset = 0x4, fixed_abs, tag = 'smem constant byte address 0x4 - core index']
  #allocation1 [shape = 'u32[72,128]{1,0:T(1,128)}', space=vmem, size = 0x9000, scoped, tag = 'internal scratch']
  %s0 = inlined_call_operand.vmem [shape: bf16[1,48,48], index: 0, kind: input, shape index: {}]
  %s1 = inlined_call_operand.vmem [shape: f32[48,32], index: 1, kind: input, shape index: {}]
  %s2 = inlined_call_operand.vmem [shape: f32[24,128], index: 2, kind: input, shape index: {}]
  %s3 = inlined_call_operand.vmem [shape: bf16[48,32], index: 3, kind: input, shape index: {}]
  %s4 = inlined_call_operand.vmem [shape: bf16[2,32,96], index: 4, kind: input, shape index: {}]
  %s5 = inlined_call_operand.vmem [shape: bf16[2,32,32], index: 5, kind: input, shape index: {}]
  %s6 = inlined_call_operand.vmem [shape: bf16[2,32,128], index: 6, kind: input, shape index: {}]
  %s7 = inlined_call_operand.vmem [shape: bf16[2,128,32], index: 7, kind: input, shape index: {}]
  %s8 = inlined_call_operand.vmem [shape: bf16[32,128], index: 8, kind: input, shape index: {}]
  %s9 = inlined_call_operand.hbm [shape: f32[1,2,128], index: 9, kind: output, shape index: {}]
  %s10 = sld [smem:[#allocation0]]
  $region46: #{vit_forward.1} parent=0
    _
  %s12 = ssub.s32 1, %s10
  %s13 = scalar_select 0, %s12, %s10
  $region1: #{vit_forward.1} parent=0
    #allocation2 [shape = 'u8[1024]{0}', space=vmem, size = 0x400, scoped, tag = 'output window, operand 0, single buffered']
    #allocation3 [shape = 's32[1]{0}', space=sflag, size = 0x4, scoped, tag = 'scoped memory for vit_forward.1']
    %14 = vsyncpa [#allocation3], 0
    // Predicated region
    $region2: #{vit_forward.1} parent=1 // pred_check
      _
    $region3: #{vit_forward.1} parent=1 // pred_check_branch
      %16 = sbr.rel (0) target = $region5
    $region4: #{vit_forward.1} parent=1 // pred_region
      _
    $region5: #{vit_forward.1} parent=1 // pred_fallthru
      _
    // Predicated region
    $region6: #{vit_forward.1} parent=1 // pred_check
      _
    $region7: #{vit_forward.1} parent=1 // pred_check_branch
      %18 = sbr.rel (0) target = $region9
    $region8: #{vit_forward.1} parent=1 // pred_region
      _
    $region9: #{vit_forward.1} parent=1 // pred_fallthru
      _
    // Predicated region
    $region10: #{vit_forward.1} parent=1 // pred_check
      _
    $region11: #{vit_forward.1} parent=1 // pred_check_branch
      %20 = sbr.rel (0) target = $region13
    $region12: #{vit_forward.1} parent=1 // pred_region
      _
    $region13: #{vit_forward.1} parent=1 // pred_fallthru
      _
    // Predicated region
    $region14: #{vit_forward.1} parent=1 // pred_check
      _
    $region15: #{vit_forward.1} parent=1 // pred_check_branch
      %22 = sbr.rel (0) target = $region17
    $region16: #{vit_forward.1} parent=1 // pred_region
      _
    $region17: #{vit_forward.1} parent=1 // pred_fallthru
      _
    // Predicated region
    $region18: #{vit_forward.1} parent=1 // pred_check
      _
    $region19: #{vit_forward.1} parent=1 // pred_check_branch
      %24 = sbr.rel (0) target = $region21
    $region20: #{vit_forward.1} parent=1 // pred_region
      _
    $region21: #{vit_forward.1} parent=1 // pred_fallthru
      _
    // Predicated region
    $region22: #{vit_forward.1} parent=1 // pred_check
      _
    $region23: #{vit_forward.1} parent=1 // pred_check_branch
      %26 = sbr.rel (0) target = $region25
    $region24: #{vit_forward.1} parent=1 // pred_region
      _
    $region25: #{vit_forward.1} parent=1 // pred_fallthru
      _
    // Predicated region
    $region26: #{vit_forward.1} parent=1 // pred_check
      _
    $region27: #{vit_forward.1} parent=1 // pred_check_branch
      %28 = sbr.rel (0) target = $region29
    $region28: #{vit_forward.1} parent=1 // pred_region
      _
    $region29: #{vit_forward.1} parent=1 // pred_fallthru
      _
    // Predicated region
    $region30: #{vit_forward.1} parent=1 // pred_check
      _
    $region31: #{vit_forward.1} parent=1 // pred_check_branch
      %30 = sbr.rel (0) target = $region33
    $region32: #{vit_forward.1} parent=1 // pred_region
      _
    $region33: #{vit_forward.1} parent=1 // pred_fallthru
      _
    // Predicated region
    $region34: #{vit_forward.1} parent=1 // pred_check
      _
    $region35: #{vit_forward.1} parent=1 // pred_check_branch
      %32 = sbr.rel (0) target = $region37
    $region36: #{vit_forward.1} parent=1 // pred_region
      _
    $region37: #{vit_forward.1} parent=1 // pred_fallthru
      _
    %v34 = vld [vmem:[%s2] sm:$0xff]
    %v35 = vld [vmem:[%s2 + $0x8] sm:$0xff]
    %v36 = vld [vmem:[%s2 + $0x10] sm:$0xff]
    %v37 = vld [vmem:[%s0] sm:$0xf]
    %v38 = vld [vmem:[%s0 + $0x4] sm:$0xf]
    %v39 = vld [vmem:[%s0 + $0x8] sm:$0xf]
    %v40 = vld [vmem:[%s0 + $0xc] sm:$0xf]
    %v41 = vld [vmem:[%s0 + $0x10] sm:$0xf]
    %v42 = vld [vmem:[%s0 + $0x14] sm:$0xf]
    %v43 = vld [vmem:[%s3] sm:$0xf]
    %v44 = vld [vmem:[%s3 + $0x4] sm:$0xf]
    %v45 = vld [vmem:[%s3 + $0x8] sm:$0xf]
    %v46 = vld [vmem:[%s3 + $0xc] sm:$0xf]
    %v47 = vld [vmem:[%s3 + $0x10] sm:$0xf]
    %v48 = vld [vmem:[%s3 + $0x14] sm:$0xf]
    %v49 = vld [vmem:[%s1] sm:$0xff]
    %v50 = vld [vmem:[%s1 + $0x8] sm:$0xff]
    %v51 = vld [vmem:[%s1 + $0x10] sm:$0xff]
    %v52 = vld [vmem:[%s1 + $0x18] sm:$0xff]
    %v53 = vld [vmem:[%s1 + $0x20] sm:$0xff]
    %v54 = vld [vmem:[%s1 + $0x28] sm:$0xff]
    %v61 = vunpack.c.l.b16 %v37
    %v62 = vunpack.c.l.b16 %v38
    %v63 = vunpack.c.l.b16 %v39
    %v64 = vunpack.c.l.b16 %v40
    %v65 = vunpack.c.l.b16 %v41
    %v66 = vunpack.c.l.b16 %v42
    %v67 = vpack.c.b16 %v62, %v61
    %v68 = vpack.c.b16 %v64, %v63
    %v69 = vpack.c.b16 %v66, %v65
    %v76 = vunpack.c.l.b16 %v43
    %v77 = vunpack.c.l.b16 %v44
    %v78 = vunpack.c.l.b16 %v45
    %v79 = vunpack.c.l.b16 %v46
    %v80 = vunpack.c.l.b16 %v47
    %v81 = vunpack.c.l.b16 %v48
    %v82 = vpack.c.b16 %v77, %v76
    %v83 = vpack.c.b16 %v79, %v78
    %v84 = vpack.c.b16 %v81, %v80
    %vm88 = vcmask 392192
    %v90 = vsel %vm88, %v67, 0
    %v93 = vsel %vm88, %v68, 0
    %v96 = vsel %vm88, %v69, 0
    %98 = vmatpush.bf16.msra.mxu0 0
    %99 = vmatpush.bf16.msra.mxu0 0
    %100 = vmatpush.bf16.msra.mxu0 0
    %101 = vmatpush.bf16.msra.mxu0 0
    %102 = vmatpush.bf16.msra.mxu0 0
    %103 = vmatpush.bf16.msra.mxu0 %v84
    %104 = vmatpush.bf16.msra.mxu0 %v83
    %105 = vmatpush.bf16.msra.mxu0 %v82
    %106 = vmatmul.bf16.gmra.mxu0 %v90
    %v107 = vpop.f32.mrf.mxu0
    %v108 = vadd.f32 %v49, %v107
    %v109 = vpop.f32.mrf.mxu0
    %v110 = vadd.f32 %v50, %v109
    %111 = vmatmul.bf16.gmra.mxu0 %v93
    %v112 = vpop.f32.mrf.mxu0
    %v113 = vadd.f32 %v51, %v112
    %v114 = vpop.f32.mrf.mxu0
    %v115 = vadd.f32 %v52, %v114
    %116 = vmatmul.bf16.gmra.mxu0 %v96
    %v117 = vpop.f32.mrf.mxu0
    %v118 = vadd.f32 %v53, %v117
    %v119 = vpop.f32.mrf.mxu0
    %v120 = vadd.f32 %v54, %v119
    %121 = vdwg.mxu0
    %vm122 = vcmask 261120
    %v123 = vsel %vm122, %v108, 0.0
    %124 = vadd.xlane.f32.xlu0 %v123
    %v125 = vpop.xlane.xlu0 %124
    %v126 = vsel %vm122, %v110, 0.0
    %127 = vadd.xlane.f32.xlu0 %v126
    %v128 = vpop.xlane.xlu0 %127
    %v129 = vsel %vm122, %v113, 0.0
    %130 = vadd.xlane.f32.xlu0 %v129
    %v131 = vpop.xlane.xlu0 %130
    %v132 = vsel %vm122, %v115, 0.0
    %133 = vadd.xlane.f32.xlu0 %v132
    %v134 = vpop.xlane.xlu0 %133
    %v135 = vsel %vm122, %v118, 0.0
    %136 = vadd.xlane.f32.xlu0 %v135
    %v137 = vpop.xlane.xlu0 %136
    %v138 = vsel %vm122, %v120, 0.0
    %139 = vadd.xlane.f32.xlu0 %v138
    %v140 = vpop.xlane.xlu0 %139
    %v141 = vrcp.pop 32.0
    %v142 = vmul.f32 32.0, %v141
    %v143 = vsub.f32 1.0, %v142
    %v144 = vmul.f32 %v141, %v143
    %v145 = vadd.f32 %v141, %v144
    %vm146 = vweird.f32 %v141
    %v147 = vsel %vm146, %v141, %v145
    %v148 = vmul.f32 %v125, %v147
    %v149 = vmul.f32 %v128, %v147
    %v150 = vmul.f32 %v131, %v147
    %v151 = vmul.f32 %v134, %v147
    %v152 = vmul.f32 %v137, %v147
    %v153 = vmul.f32 %v140, %v147
    %v154 = vsub.f32 %v108, %v148
    %v155 = vsub.f32 %v110, %v149
    %v156 = vsub.f32 %v113, %v150
    %v157 = vsub.f32 %v115, %v151
    %v158 = vsub.f32 %v118, %v152
    %v159 = vsub.f32 %v120, %v153
    %v160 = vmul.f32 %v154, %v154
    %v161 = vmul.f32 %v155, %v155
    %v162 = vmul.f32 %v156, %v156
    %v163 = vmul.f32 %v157, %v157
    %v164 = vmul.f32 %v158, %v158
    %v165 = vmul.f32 %v159, %v159
    %v166 = vsel %vm122, %v160, 0.0
    %167 = vadd.xlane.f32.xlu0 %v166
    %v168 = vpop.xlane.xlu0 %167
    %v169 = vsel %vm122, %v161, 0.0
    %170 = vadd.xlane.f32.xlu0 %v169
    %v171 = vpop.xlane.xlu0 %170
    %v172 = vsel %vm122, %v162, 0.0
    %173 = vadd.xlane.f32.xlu0 %v172
    %v174 = vpop.xlane.xlu0 %173
    %v175 = vsel %vm122, %v163, 0.0
    %176 = vadd.xlane.f32.xlu0 %v175
    %v177 = vpop.xlane.xlu0 %176
    %v178 = vsel %vm122, %v164, 0.0
    %179 = vadd.xlane.f32.xlu0 %v178
    %v180 = vpop.xlane.xlu0 %179
    %v181 = vsel %vm122, %v165, 0.0
    %182 = vadd.xlane.f32.xlu0 %v181
    %v183 = vpop.xlane.xlu0 %182
    %v184 = vmul.f32 %v168, %v147
    %v185 = vmul.f32 %v171, %v147
    %v186 = vmul.f32 %v174, %v147
    %v187 = vmul.f32 %v177, %v147
    %v188 = vmul.f32 %v180, %v147
    %v189 = vmul.f32 %v183, %v147
    %v190 = vadd.f32 %v184, 1e-05
    %v191 = vadd.f32 %v185, 1e-05
    %v192 = vadd.f32 %v186, 1e-05
    %v193 = vadd.f32 %v187, 1e-05
    %v194 = vadd.f32 %v188, 1e-05
    %v195 = vadd.f32 %v189, 1e-05
    %v196 = vrsqrt.pop %v190
    %v197 = vmul.f32 %v196, %v190
    %v198 = vmul.f32 %v197, %v196
    %v199 = vmul.f32 0.5, %v198
    %v200 = vsub.f32 1.5, %v199
    %v201 = vmul.f32 %v196, %v200
    %vm202 = vweird.f32 %v190
    %vm203 = vweird.f32 %v196
    %vm204 = vmor %vm202, %vm203
    %v205 = vsel %vm204, %v196, %v201
    %v206 = vrsqrt.pop %v191
    %v207 = vmul.f32 %v206, %v191
    %v208 = vmul.f32 %v207, %v206
    %v209 = vmul.f32 0.5, %v208
    %v210 = vsub.f32 1.5, %v209
    %v211 = vmul.f32 %v206, %v210
    %vm212 = vweird.f32 %v191
    %vm213 = vweird.f32 %v206
    %vm214 = vmor %vm212, %vm213
    %v215 = vsel %vm214, %v206, %v211
    %v216 = vrsqrt.pop %v192
    %v217 = vmul.f32 %v216, %v192
    %v218 = vmul.f32 %v217, %v216
    %v219 = vmul.f32 0.5, %v218
    %v220 = vsub.f32 1.5, %v219
    %v221 = vmul.f32 %v216, %v220
    %vm222 = vweird.f32 %v192
    %vm223 = vweird.f32 %v216
    %vm224 = vmor %vm222, %vm223
    %v225 = vsel %vm224, %v216, %v221
    %v226 = vrsqrt.pop %v193
    %v227 = vmul.f32 %v226, %v193
    %v228 = vmul.f32 %v227, %v226
    %v229 = vmul.f32 0.5, %v228
    %v230 = vsub.f32 1.5, %v229
    %v231 = vmul.f32 %v226, %v230
    %vm232 = vweird.f32 %v193
    %vm233 = vweird.f32 %v226
    %vm234 = vmor %vm232, %vm233
    %v235 = vsel %vm234, %v226, %v231
    %v236 = vrsqrt.pop %v194
    %v237 = vmul.f32 %v236, %v194
    %v238 = vmul.f32 %v237, %v236
    %v239 = vmul.f32 0.5, %v238
    %v240 = vsub.f32 1.5, %v239
    %v241 = vmul.f32 %v236, %v240
    %vm242 = vweird.f32 %v194
    %vm243 = vweird.f32 %v236
    %vm244 = vmor %vm242, %vm243
    %v245 = vsel %vm244, %v236, %v241
    %v246 = vrsqrt.pop %v195
    %v247 = vmul.f32 %v246, %v195
    %v248 = vmul.f32 %v247, %v246
    %v249 = vmul.f32 0.5, %v248
    %v250 = vsub.f32 1.5, %v249
    %v251 = vmul.f32 %v246, %v250
    %vm252 = vweird.f32 %v195
    %vm253 = vweird.f32 %v246
    %vm254 = vmor %vm252, %vm253
    %v255 = vsel %vm254, %v246, %v251
    %v256 = vmul.f32 %v154, %v205
    %v257 = vmul.f32 %v155, %v215
    %v258 = vmul.f32 %v156, %v225
    %v259 = vmul.f32 %v157, %v235
    %v260 = vmul.f32 %v158, %v245
    %v261 = vmul.f32 %v159, %v255
    %v262 = vperm.slane %v34, 3
    %v263 = vmul.f32 %v256, %v262
    %v264 = vmul.f32 %v257, %v262
    %v265 = vmul.f32 %v258, %v262
    %v266 = vmul.f32 %v259, %v262
    %v267 = vmul.f32 %v260, %v262
    %v268 = vmul.f32 %v261, %v262
    %v269 = vperm.slane %v34, 4
    %v270 = vadd.f32 %v263, %v269
    %v271 = vadd.f32 %v264, %v269
    %v272 = vadd.f32 %v265, %v269
    %v273 = vadd.f32 %v266, %v269
    %v274 = vadd.f32 %v267, %v269
    %v275 = vadd.f32 %v268, %v269
    %v276 = vpack.c.bf16 %v271, %v270
    %v277 = vpack.c.bf16 %v273, %v272
    %v278 = vpack.c.bf16 %v275, %v274
    %v279 = vld [vmem:[%s4] sm:$0xf]
    %v280 = vld [vmem:[%s4 + $0x4] sm:$0xf]
    %v281 = vld [vmem:[%s4 + $0x8] sm:$0xf]
    %v282 = vld [vmem:[%s4 + $0xc] sm:$0xf]
    %v283 = vperm.slane %v35, 1
    %v288 = vunpack.c.l.b16 %v279
    %v289 = vunpack.c.l.b16 %v280
    %v290 = vunpack.c.l.b16 %v281
    %v291 = vunpack.c.l.b16 %v282
    %v292 = vpack.c.b16 %v289, %v288
    %v293 = vpack.c.b16 %v291, %v290
    %v297 = vsel %vm122, %v276, 0
    %v300 = vsel %vm122, %v277, 0
    %v303 = vsel %vm122, %v278, 0
    %305 = vmatpush.bf16.msra.mxu0 0
    %306 = vmatpush.bf16.msra.mxu0 0
    %307 = vmatpush.bf16.msra.mxu0 0
    %308 = vmatpush.bf16.msra.mxu0 0
    %309 = vmatpush.bf16.msra.mxu0 0
    %310 = vmatpush.bf16.msra.mxu0 0
    %311 = vmatpush.bf16.msra.mxu0 %v293
    %312 = vmatpush.bf16.msra.mxu0 %v292
    %313 = vmatmul.bf16.gmra.mxu0 %v297
    %v314 = vpop.f32.mrf.mxu0
    %v315 = vadd.f32 %v283, %v314
    %v316 = vpop.f32.mrf.mxu0
    %v317 = vadd.f32 %v283, %v316
    %318 = vmatmul.bf16.gmra.mxu0 %v300
    %v319 = vpop.f32.mrf.mxu0
    %v320 = vadd.f32 %v283, %v319
    %v321 = vpop.f32.mrf.mxu0
    %v322 = vadd.f32 %v283, %v321
    %323 = vmatmul.bf16.gmra.mxu0 %v303
    %v324 = vpop.f32.mrf.mxu0
    %v325 = vadd.f32 %v283, %v324
    %v326 = vpop.f32.mrf.mxu0
    %v327 = vadd.f32 %v283, %v326
    %328 = vdwg.mxu0
    %v329 = vld [vmem:[%s5] sm:$0xf]
    %v330 = vld [vmem:[%s5 + $0x4] sm:$0xf]
    %v331 = vld [vmem:[%s5 + $0x8] sm:$0xf]
    %v332 = vld [vmem:[%s5 + $0xc] sm:$0xf]
    %336 = vrot.lane.b32.xlu0 %v315, 96
    %v337 = vpop.permute.xlu0 %336
    %338 = vrot.lane.b32.xlu0 %v317, 96
    %v339 = vpop.permute.xlu0 %338
    %340 = vrot.lane.b32.xlu0 %v320, 96
    %v341 = vpop.permute.xlu0 %340
    %vm342 = vcmask 64512
    %v343 = vsel %vm342, %v315, 0
    %v345 = vsel %vm342, %v317, 0
    %v347 = vsel %vm342, %v320, 0
    %v349 = vsel %vm342, %v337, 0
    %v351 = vsel %vm342, %v339, 0
    %v353 = vsel %vm342, %v341, 0
    %355 = vmatpush.xpose.msra.mxu0 0.0
    %356 = vmatpush.xpose.msra.mxu0 0.0
    %357 = vmatpush.xpose.msra.mxu0 0.0
    %358 = vmatpush.xpose.msra.mxu0 0.0
    %359 = vmatpush.xpose.msra.mxu0 0.0
    %360 = vmatpush.xpose.msra.mxu0 0.0
    %361 = vmatpush.xpose.msra.mxu0 0.0
    %362 = vmatpush.xpose.msra.mxu0 0.0
    %363 = vmatpush.xpose.msra.mxu0 0.0
    %364 = vmatpush.xpose.msra.mxu0 0.0
    %365 = vmatpush.xpose.msra.mxu0 0.0
    %366 = vmatpush.xpose.msra.mxu0 0.0
    %367 = vmatpush.xpose.msra.mxu0 0.0
    %368 = vmatpush.xpose.msra.mxu0 %v353
    %369 = vmatpush.xpose.msra.mxu0 %v351
    %370 = vmatpush.xpose.msra.mxu0 %v349
    %371 = vmatmul.f32.gmra.mxu0 %v343
    %v372 = vpop.f32.mrf.mxu0
    %v373 = vadd.f32 0.0, %v372
    %374 = vmatmul.f32.gmra.mxu0 %v345
    %v375 = vpop.f32.mrf.mxu0
    %v376 = vadd.f32 0.0, %v375
    %377 = vmatmul.f32.gmra.mxu0 %v347
    %v378 = vpop.f32.mrf.mxu0
    %v379 = vadd.f32 0.0, %v378
    %380 = vdwg.mxu0
    %v381 = vmul.f32 %v373, 0.35355338
    %v382 = vmul.f32 %v376, 0.35355338
    %v383 = vmul.f32 %v379, 0.35355338
    %vm384 = vcmask 138240
    %v385 = vsel %vm384, %v381, -inf
    %386 = vmax.xlane.f32.xlu0 %v385
    %v387 = vpop.xlane.xlu0 %386
    %v388 = vsel %vm384, %v382, -inf
    %389 = vmax.xlane.f32.xlu0 %v388
    %v390 = vpop.xlane.xlu0 %389
    %v391 = vsel %vm384, %v383, -inf
    %392 = vmax.xlane.f32.xlu0 %v391
    %v393 = vpop.xlane.xlu0 %392
    %v394 = vsub.f32 %v381, %v387
    %v395 = vsub.f32 %v382, %v390
    %v396 = vsub.f32 %v383, %v393
    %v397 = vmul.f32 %v394, 1.442695
    %v398 = vpow.pop %v397
    %v399 = vmul.f32 %v395, 1.442695
    %v400 = vpow.pop %v399
    %v401 = vmul.f32 %v396, 1.442695
    %v402 = vpow.pop %v401
    %v403 = vsel %vm384, %v398, 0.0
    %404 = vadd.xlane.f32.xlu0 %v403
    %v405 = vpop.xlane.xlu0 %404
    %v406 = vsel %vm384, %v400, 0.0
    %407 = vadd.xlane.f32.xlu0 %v406
    %v408 = vpop.xlane.xlu0 %407
    %v409 = vsel %vm384, %v402, 0.0
    %410 = vadd.xlane.f32.xlu0 %v409
    %v411 = vpop.xlane.xlu0 %410
    %v412 = vrcp.pop %v405
    %v413 = vrcp.pop %v408
    %v414 = vrcp.pop %v411
    %v415 = vmul.f32 %v398, %v412
    %v416 = vmul.f32 %v400, %v413
    %v417 = vmul.f32 %v402, %v414
    %418 = vrot.lane.b32.xlu0 %v315, 64
    %v419 = vpop.permute.xlu0 %418
    %420 = vrot.lane.b32.xlu0 %v317, 64
    %v421 = vpop.permute.xlu0 %420
    %422 = vrot.lane.b32.xlu0 %v320, 64
    %v423 = vpop.permute.xlu0 %422
    %v427 = vsel %vm384, %v415, 0
    %v430 = vsel %vm384, %v416, 0
    %v433 = vsel %vm384, %v417, 0
    %vm435 = vcmask 1040384
    %v436 = vsel %vm435, %v423, 0
    %438 = vmatpush.msra.mxu0 0.0
    %439 = vmatpush.msra.mxu0 0.0
    %440 = vmatpush.msra.mxu0 0.0
    %441 = vmatpush.msra.mxu0 0.0
    %442 = vmatpush.msra.mxu0 0.0
    %443 = vmatpush.msra.mxu0 0.0
    %444 = vmatpush.msra.mxu0 0.0
    %445 = vmatpush.msra.mxu0 0.0
    %446 = vmatpush.msra.mxu0 0.0
    %447 = vmatpush.msra.mxu0 0.0
    %448 = vmatpush.msra.mxu0 0.0
    %449 = vmatpush.msra.mxu0 0.0
    %450 = vmatpush.msra.mxu0 0.0
    %451 = vmatpush.msra.mxu0 %v436
    %452 = vmatpush.msra.mxu0 %v421
    %453 = vmatpush.msra.mxu0 %v419
    %454 = vmatmul.f32.gmra.mxu0 %v427
    %v455 = vpop.f32.mrf.mxu0
    %v456 = vadd.f32 0.0, %v455
    %457 = vmatmul.f32.gmra.mxu0 %v430
    %v458 = vpop.f32.mrf.mxu0
    %v459 = vadd.f32 0.0, %v458
    %460 = vmatmul.f32.gmra.mxu0 %v433
    %v461 = vpop.f32.mrf.mxu0
    %v462 = vadd.f32 0.0, %v461
    %463 = vdwg.mxu0
    %v464 = vpack.c.bf16 %v459, %v456
    %v465 = vpack.c.bf16 %v462, %v462
    %466 = vrot.lane.b32.xlu0 %v315, 120
    %v467 = vpop.permute.xlu0 %466
    %468 = vrot.lane.b32.xlu0 %v317, 120
    %v469 = vpop.permute.xlu0 %468
    %470 = vrot.lane.b32.xlu0 %v320, 120
    %v471 = vpop.permute.xlu0 %470
    %472 = vrot.lane.b32.xlu0 %v315, 88
    %v473 = vpop.permute.xlu0 %472
    %474 = vrot.lane.b32.xlu0 %v317, 88
    %v475 = vpop.permute.xlu0 %474
    %476 = vrot.lane.b32.xlu0 %v320, 88
    %v477 = vpop.permute.xlu0 %476
    %v478 = vsel %vm342, %v467, 0
    %v480 = vsel %vm342, %v469, 0
    %v482 = vsel %vm342, %v471, 0
    %v484 = vsel %vm342, %v473, 0
    %v486 = vsel %vm342, %v475, 0
    %v488 = vsel %vm342, %v477, 0
    %490 = vmatpush.xpose.msra.mxu0 0.0
    %491 = vmatpush.xpose.msra.mxu0 0.0
    %492 = vmatpush.xpose.msra.mxu0 0.0
    %493 = vmatpush.xpose.msra.mxu0 0.0
    %494 = vmatpush.xpose.msra.mxu0 0.0
    %495 = vmatpush.xpose.msra.mxu0 0.0
    %496 = vmatpush.xpose.msra.mxu0 0.0
    %497 = vmatpush.xpose.msra.mxu0 0.0
    %498 = vmatpush.xpose.msra.mxu0 0.0
    %499 = vmatpush.xpose.msra.mxu0 0.0
    %500 = vmatpush.xpose.msra.mxu0 0.0
    %501 = vmatpush.xpose.msra.mxu0 0.0
    %502 = vmatpush.xpose.msra.mxu0 0.0
    %503 = vmatpush.xpose.msra.mxu0 %v488
    %504 = vmatpush.xpose.msra.mxu0 %v486
    %505 = vmatpush.xpose.msra.mxu0 %v484
    %506 = vmatmul.f32.gmra.mxu0 %v478
    %v507 = vpop.f32.mrf.mxu0
    %v508 = vadd.f32 0.0, %v507
    %509 = vmatmul.f32.gmra.mxu0 %v480
    %v510 = vpop.f32.mrf.mxu0
    %v511 = vadd.f32 0.0, %v510
    %512 = vmatmul.f32.gmra.mxu0 %v482
    %v513 = vpop.f32.mrf.mxu0
    %v514 = vadd.f32 0.0, %v513
    %515 = vdwg.mxu0
    %v516 = vmul.f32 %v508, 0.35355338
    %v517 = vmul.f32 %v511, 0.35355338
    %v518 = vmul.f32 %v514, 0.35355338
    %v519 = vsel %vm384, %v516, -inf
    %520 = vmax.xlane.f32.xlu0 %v519
    %v521 = vpop.xlane.xlu0 %520
    %v522 = vsel %vm384, %v517, -inf
    %523 = vmax.xlane.f32.xlu0 %v522
    %v524 = vpop.xlane.xlu0 %523
    %v525 = vsel %vm384, %v518, -inf
    %526 = vmax.xlane.f32.xlu0 %v525
    %v527 = vpop.xlane.xlu0 %526
    %v528 = vsub.f32 %v516, %v521
    %v529 = vsub.f32 %v517, %v524
    %v530 = vsub.f32 %v518, %v527
    %v531 = vmul.f32 %v528, 1.442695
    %v532 = vpow.pop %v531
    %v533 = vmul.f32 %v529, 1.442695
    %v534 = vpow.pop %v533
    %v535 = vmul.f32 %v530, 1.442695
    %v536 = vpow.pop %v535
    %v537 = vsel %vm384, %v532, 0.0
    %538 = vadd.xlane.f32.xlu0 %v537
    %v539 = vpop.xlane.xlu0 %538
    %v540 = vsel %vm384, %v534, 0.0
    %541 = vadd.xlane.f32.xlu0 %v540
    %v542 = vpop.xlane.xlu0 %541
    %v543 = vsel %vm384, %v536, 0.0
    %544 = vadd.xlane.f32.xlu0 %v543
    %v545 = vpop.xlane.xlu0 %544
    %v546 = vrcp.pop %v539
    %v547 = vrcp.pop %v542
    %v548 = vrcp.pop %v545
    %v549 = vmul.f32 %v532, %v546
    %v550 = vmul.f32 %v534, %v547
    %v551 = vmul.f32 %v536, %v548
    %552 = vrot.lane.b32.xlu0 %v315, 56
    %v553 = vpop.permute.xlu0 %552
    %554 = vrot.lane.b32.xlu0 %v317, 56
    %v555 = vpop.permute.xlu0 %554
    %556 = vrot.lane.b32.xlu0 %v320, 56
    %v557 = vpop.permute.xlu0 %556
    %v561 = vsel %vm384, %v549, 0
    %v564 = vsel %vm384, %v550, 0
    %v567 = vsel %vm384, %v551, 0
    %v569 = vsel %vm435, %v557, 0
    %571 = vmatpush.msra.mxu0 0.0
    %572 = vmatpush.msra.mxu0 0.0
    %573 = vmatpush.msra.mxu0 0.0
    %574 = vmatpush.msra.mxu0 0.0
    %575 = vmatpush.msra.mxu0 0.0
    %576 = vmatpush.msra.mxu0 0.0
    %577 = vmatpush.msra.mxu0 0.0
    %578 = vmatpush.msra.mxu0 0.0
    %579 = vmatpush.msra.mxu0 0.0
    %580 = vmatpush.msra.mxu0 0.0
    %581 = vmatpush.msra.mxu0 0.0
    %582 = vmatpush.msra.mxu0 0.0
    %583 = vmatpush.msra.mxu0 0.0
    %584 = vmatpush.msra.mxu0 %v569
    %585 = vmatpush.msra.mxu0 %v555
    %586 = vmatpush.msra.mxu0 %v553
    %587 = vmatmul.f32.gmra.mxu0 %v561
    %v588 = vpop.f32.mrf.mxu0
    %v589 = vadd.f32 0.0, %v588
    %590 = vmatmul.f32.gmra.mxu0 %v564
    %v591 = vpop.f32.mrf.mxu0
    %v592 = vadd.f32 0.0, %v591
    %593 = vmatmul.f32.gmra.mxu0 %v567
    %v594 = vpop.f32.mrf.mxu0
    %v595 = vadd.f32 0.0, %v594
    %596 = vdwg.mxu0
    %v597 = vpack.c.bf16 %v592, %v589
    %v598 = vpack.c.bf16 %v595, %v595
    %v600 = vsel %vm342, %v597, 0
    %v603 = vsel %vm342, %v598, 0
    %vm605 = vcmask 1043456
    %v607 = vsel %vm605, %v330, 0
    %609 = vmatpush.bf16.msra.mxu0 0
    %610 = vmatpush.bf16.msra.mxu0 0
    %611 = vmatpush.bf16.msra.mxu0 0
    %612 = vmatpush.bf16.msra.mxu0 0
    %613 = vmatpush.bf16.msra.mxu0 0
    %614 = vmatpush.bf16.msra.mxu0 0
    %615 = vmatpush.bf16.msra.mxu0 0
    %616 = vmatpush.bf16.msra.mxu0 %v607
    %617 = vmatmul.bf16.gmra.mxu0 %v600
    %v618 = vpop.f32.mrf.mxu0
    %v619 = vadd.f32 0.0, %v618
    %v620 = vpop.f32.mrf.mxu0
    %v621 = vadd.f32 0.0, %v620
    %622 = vmatmul.bf16.gmra.mxu0 %v603
    %v623 = vpop.f32.mrf.mxu0
    %v624 = vadd.f32 0.0, %v623
    %v625 = vpop.f32.mrf.mxu0
    %626 = vdwg.mxu0
    %v628 = vsel %vm342, %v464, 0
    %v631 = vsel %vm342, %v465, 0
    %v634 = vsel %vm605, %v329, 0
    %636 = vmatpush.bf16.msra.mxu0 0
    %637 = vmatpush.bf16.msra.mxu0 0
    %638 = vmatpush.bf16.msra.mxu0 0
    %639 = vmatpush.bf16.msra.mxu0 0
    %640 = vmatpush.bf16.msra.mxu0 0
    %641 = vmatpush.bf16.msra.mxu0 0
    %642 = vmatpush.bf16.msra.mxu0 0
    %643 = vmatpush.bf16.msra.mxu0 %v634
    %644 = vmatmul.bf16.gmra.mxu0 %v628
    %v645 = vpop.f32.mrf.mxu0
    %v646 = vadd.f32 %v619, %v645
    %v647 = vpop.f32.mrf.mxu0
    %v648 = vadd.f32 %v621, %v647
    %649 = vmatmul.bf16.gmra.mxu0 %v631
    %v650 = vpop.f32.mrf.mxu0
    %v651 = vadd.f32 %v624, %v650
    %v652 = vpop.f32.mrf.mxu0
    %653 = vdwg.mxu0
    %654 = vrot.lane.b32.xlu0 %v315, 112
    %v655 = vpop.permute.xlu0 %654
    %656 = vrot.lane.b32.xlu0 %v317, 112
    %v657 = vpop.permute.xlu0 %656
    %658 = vrot.lane.b32.xlu0 %v320, 112
    %v659 = vpop.permute.xlu0 %658
    %660 = vrot.lane.b32.xlu0 %v315, 80
    %v661 = vpop.permute.xlu0 %660
    %662 = vrot.lane.b32.xlu0 %v317, 80
    %v663 = vpop.permute.xlu0 %662
    %664 = vrot.lane.b32.xlu0 %v320, 80
    %v665 = vpop.permute.xlu0 %664
    %v666 = vsel %vm342, %v655, 0
    %v668 = vsel %vm342, %v657, 0
    %v670 = vsel %vm342, %v659, 0
    %v672 = vsel %vm342, %v661, 0
    %v674 = vsel %vm342, %v663, 0
    %v676 = vsel %vm342, %v665, 0
    %678 = vmatpush.xpose.msra.mxu0 0.0
    %679 = vmatpush.xpose.msra.mxu0 0.0
    %680 = vmatpush.xpose.msra.mxu0 0.0
    %681 = vmatpush.xpose.msra.mxu0 0.0
    %682 = vmatpush.xpose.msra.mxu0 0.0
    %683 = vmatpush.xpose.msra.mxu0 0.0
    %684 = vmatpush.xpose.msra.mxu0 0.0
    %685 = vmatpush.xpose.msra.mxu0 0.0
    %686 = vmatpush.xpose.msra.mxu0 0.0
    %687 = vmatpush.xpose.msra.mxu0 0.0
    %688 = vmatpush.xpose.msra.mxu0 0.0
    %689 = vmatpush.xpose.msra.mxu0 0.0
    %690 = vmatpush.xpose.msra.mxu0 0.0
    %691 = vmatpush.xpose.msra.mxu0 %v676
    %692 = vmatpush.xpose.msra.mxu0 %v674
    %693 = vmatpush.xpose.msra.mxu0 %v672
    %694 = vmatmul.f32.gmra.mxu0 %v666
    %v695 = vpop.f32.mrf.mxu0
    %v696 = vadd.f32 0.0, %v695
    %697 = vmatmul.f32.gmra.mxu0 %v668
    %v698 = vpop.f32.mrf.mxu0
    %v699 = vadd.f32 0.0, %v698
    %700 = vmatmul.f32.gmra.mxu0 %v670
    %v701 = vpop.f32.mrf.mxu0
    %v702 = vadd.f32 0.0, %v701
    %703 = vdwg.mxu0
    %v704 = vmul.f32 %v696, 0.35355338
    %v705 = vmul.f32 %v699, 0.35355338
    %v706 = vmul.f32 %v702, 0.35355338
    %v707 = vsel %vm384, %v704, -inf
    %708 = vmax.xlane.f32.xlu0 %v707
    %v709 = vpop.xlane.xlu0 %708
    %v710 = vsel %vm384, %v705, -inf
    %711 = vmax.xlane.f32.xlu0 %v710
    %v712 = vpop.xlane.xlu0 %711
    %v713 = vsel %vm384, %v706, -inf
    %714 = vmax.xlane.f32.xlu0 %v713
    %v715 = vpop.xlane.xlu0 %714
    %v716 = vsub.f32 %v704, %v709
    %v717 = vsub.f32 %v705, %v712
    %v718 = vsub.f32 %v706, %v715
    %v719 = vmul.f32 %v716, 1.442695
    %v720 = vpow.pop %v719
    %v721 = vmul.f32 %v717, 1.442695
    %v722 = vpow.pop %v721
    %v723 = vmul.f32 %v718, 1.442695
    %v724 = vpow.pop %v723
    %v725 = vsel %vm384, %v720, 0.0
    %726 = vadd.xlane.f32.xlu0 %v725
    %v727 = vpop.xlane.xlu0 %726
    %v728 = vsel %vm384, %v722, 0.0
    %729 = vadd.xlane.f32.xlu0 %v728
    %v730 = vpop.xlane.xlu0 %729
    %v731 = vsel %vm384, %v724, 0.0
    %732 = vadd.xlane.f32.xlu0 %v731
    %v733 = vpop.xlane.xlu0 %732
    %v734 = vrcp.pop %v727
    %v735 = vrcp.pop %v730
    %v736 = vrcp.pop %v733
    %v737 = vmul.f32 %v720, %v734
    %v738 = vmul.f32 %v722, %v735
    %v739 = vmul.f32 %v724, %v736
    %740 = vrot.lane.b32.xlu0 %v315, 48
    %v741 = vpop.permute.xlu0 %740
    %742 = vrot.lane.b32.xlu0 %v317, 48
    %v743 = vpop.permute.xlu0 %742
    %744 = vrot.lane.b32.xlu0 %v320, 48
    %v745 = vpop.permute.xlu0 %744
    %v749 = vsel %vm384, %v737, 0
    %v752 = vsel %vm384, %v738, 0
    %v755 = vsel %vm384, %v739, 0
    %v757 = vsel %vm435, %v745, 0
    %759 = vmatpush.msra.mxu0 0.0
    %760 = vmatpush.msra.mxu0 0.0
    %761 = vmatpush.msra.mxu0 0.0
    %762 = vmatpush.msra.mxu0 0.0
    %763 = vmatpush.msra.mxu0 0.0
    %764 = vmatpush.msra.mxu0 0.0
    %765 = vmatpush.msra.mxu0 0.0
    %766 = vmatpush.msra.mxu0 0.0
    %767 = vmatpush.msra.mxu0 0.0
    %768 = vmatpush.msra.mxu0 0.0
    %769 = vmatpush.msra.mxu0 0.0
    %770 = vmatpush.msra.mxu0 0.0
    %771 = vmatpush.msra.mxu0 0.0
    %772 = vmatpush.msra.mxu0 %v757
    %773 = vmatpush.msra.mxu0 %v743
    %774 = vmatpush.msra.mxu0 %v741
    %775 = vmatmul.f32.gmra.mxu0 %v749
    %v776 = vpop.f32.mrf.mxu0
    %v777 = vadd.f32 0.0, %v776
    %778 = vmatmul.f32.gmra.mxu0 %v752
    %v779 = vpop.f32.mrf.mxu0
    %v780 = vadd.f32 0.0, %v779
    %781 = vmatmul.f32.gmra.mxu0 %v755
    %v782 = vpop.f32.mrf.mxu0
    %v783 = vadd.f32 0.0, %v782
    %784 = vdwg.mxu0
    %v785 = vpack.c.bf16 %v780, %v777
    %v786 = vpack.c.bf16 %v783, %v783
    %v788 = vsel %vm342, %v785, 0
    %v791 = vsel %vm342, %v786, 0
    %v794 = vsel %vm605, %v331, 0
    %796 = vmatpush.bf16.msra.mxu0 0
    %797 = vmatpush.bf16.msra.mxu0 0
    %798 = vmatpush.bf16.msra.mxu0 0
    %799 = vmatpush.bf16.msra.mxu0 0
    %800 = vmatpush.bf16.msra.mxu0 0
    %801 = vmatpush.bf16.msra.mxu0 0
    %802 = vmatpush.bf16.msra.mxu0 0
    %803 = vmatpush.bf16.msra.mxu0 %v794
    %804 = vmatmul.bf16.gmra.mxu0 %v788
    %v805 = vpop.f32.mrf.mxu0
    %v806 = vadd.f32 0.0, %v805
    %v807 = vpop.f32.mrf.mxu0
    %v808 = vadd.f32 0.0, %v807
    %809 = vmatmul.bf16.gmra.mxu0 %v791
    %v810 = vpop.f32.mrf.mxu0
    %v811 = vadd.f32 0.0, %v810
    %v812 = vpop.f32.mrf.mxu0
    %813 = vdwg.mxu0
    %v814 = vadd.f32 %v646, %v806
    %v815 = vadd.f32 %v648, %v808
    %v816 = vadd.f32 %v651, %v811
    %817 = vrot.lane.b32.xlu0 %v315, 104
    %v818 = vpop.permute.xlu0 %817
    %819 = vrot.lane.b32.xlu0 %v317, 104
    %v820 = vpop.permute.xlu0 %819
    %821 = vrot.lane.b32.xlu0 %v320, 104
    %v822 = vpop.permute.xlu0 %821
    %823 = vrot.lane.b32.xlu0 %v315, 72
    %v824 = vpop.permute.xlu0 %823
    %825 = vrot.lane.b32.xlu0 %v317, 72
    %v826 = vpop.permute.xlu0 %825
    %827 = vrot.lane.b32.xlu0 %v320, 72
    %v828 = vpop.permute.xlu0 %827
    %v829 = vsel %vm342, %v818, 0
    %v831 = vsel %vm342, %v820, 0
    %v833 = vsel %vm342, %v822, 0
    %v835 = vsel %vm342, %v824, 0
    %v837 = vsel %vm342, %v826, 0
    %v839 = vsel %vm342, %v828, 0
    %841 = vmatpush.xpose.msra.mxu0 0.0
    %842 = vmatpush.xpose.msra.mxu0 0.0
    %843 = vmatpush.xpose.msra.mxu0 0.0
    %844 = vmatpush.xpose.msra.mxu0 0.0
    %845 = vmatpush.xpose.msra.mxu0 0.0
    %846 = vmatpush.xpose.msra.mxu0 0.0
    %847 = vmatpush.xpose.msra.mxu0 0.0
    %848 = vmatpush.xpose.msra.mxu0 0.0
    %849 = vmatpush.xpose.msra.mxu0 0.0
    %850 = vmatpush.xpose.msra.mxu0 0.0
    %851 = vmatpush.xpose.msra.mxu0 0.0
    %852 = vmatpush.xpose.msra.mxu0 0.0
    %853 = vmatpush.xpose.msra.mxu0 0.0
    %854 = vmatpush.xpose.msra.mxu0 %v839
    %855 = vmatpush.xpose.msra.mxu0 %v837
    %856 = vmatpush.xpose.msra.mxu0 %v835
    %857 = vmatmul.f32.gmra.mxu0 %v829
    %v858 = vpop.f32.mrf.mxu0
    %v859 = vadd.f32 0.0, %v858
    %860 = vmatmul.f32.gmra.mxu0 %v831
    %v861 = vpop.f32.mrf.mxu0
    %v862 = vadd.f32 0.0, %v861
    %863 = vmatmul.f32.gmra.mxu0 %v833
    %v864 = vpop.f32.mrf.mxu0
    %v865 = vadd.f32 0.0, %v864
    %866 = vdwg.mxu0
    %v867 = vmul.f32 %v859, 0.35355338
    %v868 = vmul.f32 %v862, 0.35355338
    %v869 = vmul.f32 %v865, 0.35355338
    %v870 = vsel %vm384, %v867, -inf
    %871 = vmax.xlane.f32.xlu0 %v870
    %v872 = vpop.xlane.xlu0 %871
    %v873 = vsel %vm384, %v868, -inf
    %874 = vmax.xlane.f32.xlu0 %v873
    %v875 = vpop.xlane.xlu0 %874
    %v876 = vsel %vm384, %v869, -inf
    %877 = vmax.xlane.f32.xlu0 %v876
    %v878 = vpop.xlane.xlu0 %877
    %v879 = vsub.f32 %v867, %v872
    %v880 = vsub.f32 %v868, %v875
    %v881 = vsub.f32 %v869, %v878
    %v882 = vmul.f32 %v879, 1.442695
    %v883 = vpow.pop %v882
    %v884 = vmul.f32 %v880, 1.442695
    %v885 = vpow.pop %v884
    %v886 = vmul.f32 %v881, 1.442695
    %v887 = vpow.pop %v886
    %v888 = vsel %vm384, %v883, 0.0
    %889 = vadd.xlane.f32.xlu0 %v888
    %v890 = vpop.xlane.xlu0 %889
    %v891 = vsel %vm384, %v885, 0.0
    %892 = vadd.xlane.f32.xlu0 %v891
    %v893 = vpop.xlane.xlu0 %892
    %v894 = vsel %vm384, %v887, 0.0
    %895 = vadd.xlane.f32.xlu0 %v894
    %v896 = vpop.xlane.xlu0 %895
    %v897 = vrcp.pop %v890
    %v898 = vrcp.pop %v893
    %v899 = vrcp.pop %v896
    %v900 = vmul.f32 %v883, %v897
    %v901 = vmul.f32 %v885, %v898
    %v902 = vmul.f32 %v887, %v899
    %903 = vrot.lane.b32.xlu0 %v315, 40
    %v904 = vpop.permute.xlu0 %903
    %905 = vrot.lane.b32.xlu0 %v317, 40
    %v906 = vpop.permute.xlu0 %905
    %907 = vrot.lane.b32.xlu0 %v320, 40
    %v908 = vpop.permute.xlu0 %907
    %v912 = vsel %vm384, %v900, 0
    %v915 = vsel %vm384, %v901, 0
    %v918 = vsel %vm384, %v902, 0
    %v920 = vsel %vm435, %v908, 0
    %922 = vmatpush.msra.mxu0 0.0
    %923 = vmatpush.msra.mxu0 0.0
    %924 = vmatpush.msra.mxu0 0.0
    %925 = vmatpush.msra.mxu0 0.0
    %926 = vmatpush.msra.mxu0 0.0
    %927 = vmatpush.msra.mxu0 0.0
    %928 = vmatpush.msra.mxu0 0.0
    %929 = vmatpush.msra.mxu0 0.0
    %930 = vmatpush.msra.mxu0 0.0
    %931 = vmatpush.msra.mxu0 0.0
    %932 = vmatpush.msra.mxu0 0.0
    %933 = vmatpush.msra.mxu0 0.0
    %934 = vmatpush.msra.mxu0 0.0
    %935 = vmatpush.msra.mxu0 %v920
    %936 = vmatpush.msra.mxu0 %v906
    %937 = vmatpush.msra.mxu0 %v904
    %938 = vmatmul.f32.gmra.mxu0 %v912
    %v939 = vpop.f32.mrf.mxu0
    %v940 = vadd.f32 0.0, %v939
    %941 = vmatmul.f32.gmra.mxu0 %v915
    %v942 = vpop.f32.mrf.mxu0
    %v943 = vadd.f32 0.0, %v942
    %944 = vmatmul.f32.gmra.mxu0 %v918
    %v945 = vpop.f32.mrf.mxu0
    %v946 = vadd.f32 0.0, %v945
    %947 = vdwg.mxu0
    %v948 = vpack.c.bf16 %v943, %v940
    %v949 = vpack.c.bf16 %v946, %v946
    %v951 = vsel %vm342, %v948, 0
    %v954 = vsel %vm342, %v949, 0
    %v957 = vsel %vm605, %v332, 0
    %959 = vmatpush.bf16.msra.mxu0 0
    %960 = vmatpush.bf16.msra.mxu0 0
    %961 = vmatpush.bf16.msra.mxu0 0
    %962 = vmatpush.bf16.msra.mxu0 0
    %963 = vmatpush.bf16.msra.mxu0 0
    %964 = vmatpush.bf16.msra.mxu0 0
    %965 = vmatpush.bf16.msra.mxu0 0
    %966 = vmatpush.bf16.msra.mxu0 %v957
    %967 = vmatmul.bf16.gmra.mxu0 %v951
    %v968 = vpop.f32.mrf.mxu0
    %v969 = vadd.f32 0.0, %v968
    %v970 = vpop.f32.mrf.mxu0
    %v971 = vadd.f32 0.0, %v970
    %972 = vmatmul.bf16.gmra.mxu0 %v954
    %v973 = vpop.f32.mrf.mxu0
    %v974 = vadd.f32 0.0, %v973
    %v975 = vpop.f32.mrf.mxu0
    %976 = vdwg.mxu0
    %v977 = vadd.f32 %v814, %v969
    %v978 = vadd.f32 %v815, %v971
    %v979 = vadd.f32 %v816, %v974
    %983 = vrot.lane.b32.xlu0 %v322, 96
    %v984 = vpop.permute.xlu0 %983
    %985 = vrot.lane.b32.xlu0 %v325, 96
    %v986 = vpop.permute.xlu0 %985
    %987 = vrot.lane.b32.xlu0 %v327, 96
    %v988 = vpop.permute.xlu0 %987
    %v989 = vsel %vm342, %v322, 0
    %v991 = vsel %vm342, %v325, 0
    %v993 = vsel %vm342, %v327, 0
    %v995 = vsel %vm342, %v984, 0
    %v997 = vsel %vm342, %v986, 0
    %v999 = vsel %vm342, %v988, 0
    %1001 = vmatpush.xpose.msra.mxu0 0.0
    %1002 = vmatpush.xpose.msra.mxu0 0.0
    %1003 = vmatpush.xpose.msra.mxu0 0.0
    %1004 = vmatpush.xpose.msra.mxu0 0.0
    %1005 = vmatpush.xpose.msra.mxu0 0.0
    %1006 = vmatpush.xpose.msra.mxu0 0.0
    %1007 = vmatpush.xpose.msra.mxu0 0.0
    %1008 = vmatpush.xpose.msra.mxu0 0.0
    %1009 = vmatpush.xpose.msra.mxu0 0.0
    %1010 = vmatpush.xpose.msra.mxu0 0.0
    %1011 = vmatpush.xpose.msra.mxu0 0.0
    %1012 = vmatpush.xpose.msra.mxu0 0.0
    %1013 = vmatpush.xpose.msra.mxu0 0.0
    %1014 = vmatpush.xpose.msra.mxu0 %v999
    %1015 = vmatpush.xpose.msra.mxu0 %v997
    %1016 = vmatpush.xpose.msra.mxu0 %v995
    %1017 = vmatmul.f32.gmra.mxu0 %v989
    %v1018 = vpop.f32.mrf.mxu0
    %v1019 = vadd.f32 0.0, %v1018
    %1020 = vmatmul.f32.gmra.mxu0 %v991
    %v1021 = vpop.f32.mrf.mxu0
    %v1022 = vadd.f32 0.0, %v1021
    %1023 = vmatmul.f32.gmra.mxu0 %v993
    %v1024 = vpop.f32.mrf.mxu0
    %v1025 = vadd.f32 0.0, %v1024
    %1026 = vdwg.mxu0
    %v1027 = vmul.f32 %v1019, 0.35355338
    %v1028 = vmul.f32 %v1022, 0.35355338
    %v1029 = vmul.f32 %v1025, 0.35355338
    %v1030 = vsel %vm384, %v1027, -inf
    %1031 = vmax.xlane.f32.xlu0 %v1030
    %v1032 = vpop.xlane.xlu0 %1031
    %v1033 = vsel %vm384, %v1028, -inf
    %1034 = vmax.xlane.f32.xlu0 %v1033
    %v1035 = vpop.xlane.xlu0 %1034
    %v1036 = vsel %vm384, %v1029, -inf
    %1037 = vmax.xlane.f32.xlu0 %v1036
    %v1038 = vpop.xlane.xlu0 %1037
    %v1039 = vsub.f32 %v1027, %v1032
    %v1040 = vsub.f32 %v1028, %v1035
    %v1041 = vsub.f32 %v1029, %v1038
    %v1042 = vmul.f32 %v1039, 1.442695
    %v1043 = vpow.pop %v1042
    %v1044 = vmul.f32 %v1040, 1.442695
    %v1045 = vpow.pop %v1044
    %v1046 = vmul.f32 %v1041, 1.442695
    %v1047 = vpow.pop %v1046
    %v1048 = vsel %vm384, %v1043, 0.0
    %1049 = vadd.xlane.f32.xlu0 %v1048
    %v1050 = vpop.xlane.xlu0 %1049
    %v1051 = vsel %vm384, %v1045, 0.0
    %1052 = vadd.xlane.f32.xlu0 %v1051
    %v1053 = vpop.xlane.xlu0 %1052
    %v1054 = vsel %vm384, %v1047, 0.0
    %1055 = vadd.xlane.f32.xlu0 %v1054
    %v1056 = vpop.xlane.xlu0 %1055
    %v1057 = vrcp.pop %v1050
    %v1058 = vrcp.pop %v1053
    %v1059 = vrcp.pop %v1056
    %v1060 = vmul.f32 %v1043, %v1057
    %v1061 = vmul.f32 %v1045, %v1058
    %v1062 = vmul.f32 %v1047, %v1059
    %1063 = vrot.lane.b32.xlu0 %v322, 64
    %v1064 = vpop.permute.xlu0 %1063
    %1065 = vrot.lane.b32.xlu0 %v325, 64
    %v1066 = vpop.permute.xlu0 %1065
    %1067 = vrot.lane.b32.xlu0 %v327, 64
    %v1068 = vpop.permute.xlu0 %1067
    %v1072 = vsel %vm384, %v1060, 0
    %v1075 = vsel %vm384, %v1061, 0
    %v1078 = vsel %vm384, %v1062, 0
    %v1080 = vsel %vm435, %v1068, 0
    %1082 = vmatpush.msra.mxu0 0.0
    %1083 = vmatpush.msra.mxu0 0.0
    %1084 = vmatpush.msra.mxu0 0.0
    %1085 = vmatpush.msra.mxu0 0.0
    %1086 = vmatpush.msra.mxu0 0.0
    %1087 = vmatpush.msra.mxu0 0.0
    %1088 = vmatpush.msra.mxu0 0.0
    %1089 = vmatpush.msra.mxu0 0.0
    %1090 = vmatpush.msra.mxu0 0.0
    %1091 = vmatpush.msra.mxu0 0.0
    %1092 = vmatpush.msra.mxu0 0.0
    %1093 = vmatpush.msra.mxu0 0.0
    %1094 = vmatpush.msra.mxu0 0.0
    %1095 = vmatpush.msra.mxu0 %v1080
    %1096 = vmatpush.msra.mxu0 %v1066
    %1097 = vmatpush.msra.mxu0 %v1064
    %1098 = vmatmul.f32.gmra.mxu0 %v1072
    %v1099 = vpop.f32.mrf.mxu0
    %v1100 = vadd.f32 0.0, %v1099
    %1101 = vmatmul.f32.gmra.mxu0 %v1075
    %v1102 = vpop.f32.mrf.mxu0
    %v1103 = vadd.f32 0.0, %v1102
    %1104 = vmatmul.f32.gmra.mxu0 %v1078
    %v1105 = vpop.f32.mrf.mxu0
    %v1106 = vadd.f32 0.0, %v1105
    %1107 = vdwg.mxu0
    %v1108 = vpack.c.bf16 %v1103, %v1100
    %v1109 = vpack.c.bf16 %v1106, %v1106
    %1110 = vrot.lane.b32.xlu0 %v322, 120
    %v1111 = vpop.permute.xlu0 %1110
    %1112 = vrot.lane.b32.xlu0 %v325, 120
    %v1113 = vpop.permute.xlu0 %1112
    %1114 = vrot.lane.b32.xlu0 %v327, 120
    %v1115 = vpop.permute.xlu0 %1114
    %1116 = vrot.lane.b32.xlu0 %v322, 88
    %v1117 = vpop.permute.xlu0 %1116
    %1118 = vrot.lane.b32.xlu0 %v325, 88
    %v1119 = vpop.permute.xlu0 %1118
    %1120 = vrot.lane.b32.xlu0 %v327, 88
    %v1121 = vpop.permute.xlu0 %1120
    %v1122 = vsel %vm342, %v1111, 0
    %v1124 = vsel %vm342, %v1113, 0
    %v1126 = vsel %vm342, %v1115, 0
    %v1128 = vsel %vm342, %v1117, 0
    %v1130 = vsel %vm342, %v1119, 0
    %v1132 = vsel %vm342, %v1121, 0
    %1134 = vmatpush.xpose.msra.mxu0 0.0
    %1135 = vmatpush.xpose.msra.mxu0 0.0
    %1136 = vmatpush.xpose.msra.mxu0 0.0
    %1137 = vmatpush.xpose.msra.mxu0 0.0
    %1138 = vmatpush.xpose.msra.mxu0 0.0
    %1139 = vmatpush.xpose.msra.mxu0 0.0
    %1140 = vmatpush.xpose.msra.mxu0 0.0
    %1141 = vmatpush.xpose.msra.mxu0 0.0
    %1142 = vmatpush.xpose.msra.mxu0 0.0
    %1143 = vmatpush.xpose.msra.mxu0 0.0
    %1144 = vmatpush.xpose.msra.mxu0 0.0
    %1145 = vmatpush.xpose.msra.mxu0 0.0
    %1146 = vmatpush.xpose.msra.mxu0 0.0
    %1147 = vmatpush.xpose.msra.mxu0 %v1132
    %1148 = vmatpush.xpose.msra.mxu0 %v1130
    %1149 = vmatpush.xpose.msra.mxu0 %v1128
    %1150 = vmatmul.f32.gmra.mxu0 %v1122
    %v1151 = vpop.f32.mrf.mxu0
    %v1152 = vadd.f32 0.0, %v1151
    %1153 = vmatmul.f32.gmra.mxu0 %v1124
    %v1154 = vpop.f32.mrf.mxu0
    %v1155 = vadd.f32 0.0, %v1154
    %1156 = vmatmul.f32.gmra.mxu0 %v1126
    %v1157 = vpop.f32.mrf.mxu0
    %v1158 = vadd.f32 0.0, %v1157
    %1159 = vdwg.mxu0
    %v1160 = vmul.f32 %v1152, 0.35355338
    %v1161 = vmul.f32 %v1155, 0.35355338
    %v1162 = vmul.f32 %v1158, 0.35355338
    %v1163 = vsel %vm384, %v1160, -inf
    %1164 = vmax.xlane.f32.xlu0 %v1163
    %v1165 = vpop.xlane.xlu0 %1164
    %v1166 = vsel %vm384, %v1161, -inf
    %1167 = vmax.xlane.f32.xlu0 %v1166
    %v1168 = vpop.xlane.xlu0 %1167
    %v1169 = vsel %vm384, %v1162, -inf
    %1170 = vmax.xlane.f32.xlu0 %v1169
    %v1171 = vpop.xlane.xlu0 %1170
    %v1172 = vsub.f32 %v1160, %v1165
    %v1173 = vsub.f32 %v1161, %v1168
    %v1174 = vsub.f32 %v1162, %v1171
    %v1175 = vmul.f32 %v1172, 1.442695
    %v1176 = vpow.pop %v1175
    %v1177 = vmul.f32 %v1173, 1.442695
    %v1178 = vpow.pop %v1177
    %v1179 = vmul.f32 %v1174, 1.442695
    %v1180 = vpow.pop %v1179
    %v1181 = vsel %vm384, %v1176, 0.0
    %1182 = vadd.xlane.f32.xlu0 %v1181
    %v1183 = vpop.xlane.xlu0 %1182
    %v1184 = vsel %vm384, %v1178, 0.0
    %1185 = vadd.xlane.f32.xlu0 %v1184
    %v1186 = vpop.xlane.xlu0 %1185
    %v1187 = vsel %vm384, %v1180, 0.0
    %1188 = vadd.xlane.f32.xlu0 %v1187
    %v1189 = vpop.xlane.xlu0 %1188
    %v1190 = vrcp.pop %v1183
    %v1191 = vrcp.pop %v1186
    %v1192 = vrcp.pop %v1189
    %v1193 = vmul.f32 %v1176, %v1190
    %v1194 = vmul.f32 %v1178, %v1191
    %v1195 = vmul.f32 %v1180, %v1192
    %1196 = vrot.lane.b32.xlu0 %v322, 56
    %v1197 = vpop.permute.xlu0 %1196
    %1198 = vrot.lane.b32.xlu0 %v325, 56
    %v1199 = vpop.permute.xlu0 %1198
    %1200 = vrot.lane.b32.xlu0 %v327, 56
    %v1201 = vpop.permute.xlu0 %1200
    %v1205 = vsel %vm384, %v1193, 0
    %v1208 = vsel %vm384, %v1194, 0
    %v1211 = vsel %vm384, %v1195, 0
    %v1213 = vsel %vm435, %v1201, 0
    %1215 = vmatpush.msra.mxu0 0.0
    %1216 = vmatpush.msra.mxu0 0.0
    %1217 = vmatpush.msra.mxu0 0.0
    %1218 = vmatpush.msra.mxu0 0.0
    %1219 = vmatpush.msra.mxu0 0.0
    %1220 = vmatpush.msra.mxu0 0.0
    %1221 = vmatpush.msra.mxu0 0.0
    %1222 = vmatpush.msra.mxu0 0.0
    %1223 = vmatpush.msra.mxu0 0.0
    %1224 = vmatpush.msra.mxu0 0.0
    %1225 = vmatpush.msra.mxu0 0.0
    %1226 = vmatpush.msra.mxu0 0.0
    %1227 = vmatpush.msra.mxu0 0.0
    %1228 = vmatpush.msra.mxu0 %v1213
    %1229 = vmatpush.msra.mxu0 %v1199
    %1230 = vmatpush.msra.mxu0 %v1197
    %1231 = vmatmul.f32.gmra.mxu0 %v1205
    %v1232 = vpop.f32.mrf.mxu0
    %v1233 = vadd.f32 0.0, %v1232
    %1234 = vmatmul.f32.gmra.mxu0 %v1208
    %v1235 = vpop.f32.mrf.mxu0
    %v1236 = vadd.f32 0.0, %v1235
    %1237 = vmatmul.f32.gmra.mxu0 %v1211
    %v1238 = vpop.f32.mrf.mxu0
    %v1239 = vadd.f32 0.0, %v1238
    %1240 = vdwg.mxu0
    %v1241 = vpack.c.bf16 %v1236, %v1233
    %v1242 = vpack.c.bf16 %v1239, %v1239
    %v1244 = vsel %vm342, %v1241, 0
    %v1247 = vsel %vm342, %v1242, 0
    %1249 = vmatpush.bf16.msra.mxu0 0
    %1250 = vmatpush.bf16.msra.mxu0 0
    %1251 = vmatpush.bf16.msra.mxu0 0
    %1252 = vmatpush.bf16.msra.mxu0 0
    %1253 = vmatpush.bf16.msra.mxu0 0
    %1254 = vmatpush.bf16.msra.mxu0 0
    %1255 = vmatpush.bf16.msra.mxu0 0
    %1256 = vmatpush.bf16.msra.mxu0 %v607
    %1257 = vmatmul.bf16.gmra.mxu0 %v1244
    %v1258 = vpop.f32.mrf.mxu0
    %v1259 = vadd.f32 0.0, %v1258
    %v1260 = vpop.f32.mrf.mxu0
    %v1261 = vadd.f32 0.0, %v1260
    %1262 = vmatmul.bf16.gmra.mxu0 %v1247
    %v1263 = vpop.f32.mrf.mxu0
    %v1264 = vadd.f32 0.0, %v1263
    %v1265 = vpop.f32.mrf.mxu0
    %1266 = vdwg.mxu0
    %v1268 = vsel %vm342, %v1108, 0
    %v1271 = vsel %vm342, %v1109, 0
    %1273 = vmatpush.bf16.msra.mxu0 0
    %1274 = vmatpush.bf16.msra.mxu0 0
    %1275 = vmatpush.bf16.msra.mxu0 0
    %1276 = vmatpush.bf16.msra.mxu0 0
    %1277 = vmatpush.bf16.msra.mxu0 0
    %1278 = vmatpush.bf16.msra.mxu0 0
    %1279 = vmatpush.bf16.msra.mxu0 0
    %1280 = vmatpush.bf16.msra.mxu0 %v634
    %1281 = vmatmul.bf16.gmra.mxu0 %v1268
    %v1282 = vpop.f32.mrf.mxu0
    %v1283 = vadd.f32 %v1259, %v1282
    %v1284 = vpop.f32.mrf.mxu0
    %v1285 = vadd.f32 %v1261, %v1284
    %1286 = vmatmul.bf16.gmra.mxu0 %v1271
    %v1287 = vpop.f32.mrf.mxu0
    %v1288 = vadd.f32 %v1264, %v1287
    %v1289 = vpop.f32.mrf.mxu0
    %1290 = vdwg.mxu0
    %1291 = vrot.lane.b32.xlu0 %v322, 112
    %v1292 = vpop.permute.xlu0 %1291
    %1293 = vrot.lane.b32.xlu0 %v325, 112
    %v1294 = vpop.permute.xlu0 %1293
    %1295 = vrot.lane.b32.xlu0 %v327, 112
    %v1296 = vpop.permute.xlu0 %1295
    %1297 = vrot.lane.b32.xlu0 %v322, 80
    %v1298 = vpop.permute.xlu0 %1297
    %1299 = vrot.lane.b32.xlu0 %v325, 80
    %v1300 = vpop.permute.xlu0 %1299
    %1301 = vrot.lane.b32.xlu0 %v327, 80
    %v1302 = vpop.permute.xlu0 %1301
    %v1303 = vsel %vm342, %v1292, 0
    %v1305 = vsel %vm342, %v1294, 0
    %v1307 = vsel %vm342, %v1296, 0
    %v1309 = vsel %vm342, %v1298, 0
    %v1311 = vsel %vm342, %v1300, 0
    %v1313 = vsel %vm342, %v1302, 0
    %1315 = vmatpush.xpose.msra.mxu0 0.0
    %1316 = vmatpush.xpose.msra.mxu0 0.0
    %1317 = vmatpush.xpose.msra.mxu0 0.0
    %1318 = vmatpush.xpose.msra.mxu0 0.0
    %1319 = vmatpush.xpose.msra.mxu0 0.0
    %1320 = vmatpush.xpose.msra.mxu0 0.0
    %1321 = vmatpush.xpose.msra.mxu0 0.0
    %1322 = vmatpush.xpose.msra.mxu0 0.0
    %1323 = vmatpush.xpose.msra.mxu0 0.0
    %1324 = vmatpush.xpose.msra.mxu0 0.0
    %1325 = vmatpush.xpose.msra.mxu0 0.0
    %1326 = vmatpush.xpose.msra.mxu0 0.0
    %1327 = vmatpush.xpose.msra.mxu0 0.0
    %1328 = vmatpush.xpose.msra.mxu0 %v1313
    %1329 = vmatpush.xpose.msra.mxu0 %v1311
    %1330 = vmatpush.xpose.msra.mxu0 %v1309
    %1331 = vmatmul.f32.gmra.mxu0 %v1303
    %v1332 = vpop.f32.mrf.mxu0
    %v1333 = vadd.f32 0.0, %v1332
    %1334 = vmatmul.f32.gmra.mxu0 %v1305
    %v1335 = vpop.f32.mrf.mxu0
    %v1336 = vadd.f32 0.0, %v1335
    %1337 = vmatmul.f32.gmra.mxu0 %v1307
    %v1338 = vpop.f32.mrf.mxu0
    %v1339 = vadd.f32 0.0, %v1338
    %1340 = vdwg.mxu0
    %v1341 = vmul.f32 %v1333, 0.35355338
    %v1342 = vmul.f32 %v1336, 0.35355338
    %v1343 = vmul.f32 %v1339, 0.35355338
    %v1344 = vsel %vm384, %v1341, -inf
    %1345 = vmax.xlane.f32.xlu0 %v1344
    %v1346 = vpop.xlane.xlu0 %1345
    %v1347 = vsel %vm384, %v1342, -inf
    %1348 = vmax.xlane.f32.xlu0 %v1347
    %v1349 = vpop.xlane.xlu0 %1348
    %v1350 = vsel %vm384, %v1343, -inf
    %1351 = vmax.xlane.f32.xlu0 %v1350
    %v1352 = vpop.xlane.xlu0 %1351
    %v1353 = vsub.f32 %v1341, %v1346
    %v1354 = vsub.f32 %v1342, %v1349
    %v1355 = vsub.f32 %v1343, %v1352
    %v1356 = vmul.f32 %v1353, 1.442695
    %v1357 = vpow.pop %v1356
    %v1358 = vmul.f32 %v1354, 1.442695
    %v1359 = vpow.pop %v1358
    %v1360 = vmul.f32 %v1355, 1.442695
    %v1361 = vpow.pop %v1360
    %v1362 = vsel %vm384, %v1357, 0.0
    %1363 = vadd.xlane.f32.xlu0 %v1362
    %v1364 = vpop.xlane.xlu0 %1363
    %v1365 = vsel %vm384, %v1359, 0.0
    %1366 = vadd.xlane.f32.xlu0 %v1365
    %v1367 = vpop.xlane.xlu0 %1366
    %v1368 = vsel %vm384, %v1361, 0.0
    %1369 = vadd.xlane.f32.xlu0 %v1368
    %v1370 = vpop.xlane.xlu0 %1369
    %v1371 = vrcp.pop %v1364
    %v1372 = vrcp.pop %v1367
    %v1373 = vrcp.pop %v1370
    %v1374 = vmul.f32 %v1357, %v1371
    %v1375 = vmul.f32 %v1359, %v1372
    %v1376 = vmul.f32 %v1361, %v1373
    %1377 = vrot.lane.b32.xlu0 %v322, 48
    %v1378 = vpop.permute.xlu0 %1377
    %1379 = vrot.lane.b32.xlu0 %v325, 48
    %v1380 = vpop.permute.xlu0 %1379
    %1381 = vrot.lane.b32.xlu0 %v327, 48
    %v1382 = vpop.permute.xlu0 %1381
    %v1386 = vsel %vm384, %v1374, 0
    %v1389 = vsel %vm384, %v1375, 0
    %v1392 = vsel %vm384, %v1376, 0
    %v1394 = vsel %vm435, %v1382, 0
    %1396 = vmatpush.msra.mxu0 0.0
    %1397 = vmatpush.msra.mxu0 0.0
    %1398 = vmatpush.msra.mxu0 0.0
    %1399 = vmatpush.msra.mxu0 0.0
    %1400 = vmatpush.msra.mxu0 0.0
    %1401 = vmatpush.msra.mxu0 0.0
    %1402 = vmatpush.msra.mxu0 0.0
    %1403 = vmatpush.msra.mxu0 0.0
    %1404 = vmatpush.msra.mxu0 0.0
    %1405 = vmatpush.msra.mxu0 0.0
    %1406 = vmatpush.msra.mxu0 0.0
    %1407 = vmatpush.msra.mxu0 0.0
    %1408 = vmatpush.msra.mxu0 0.0
    %1409 = vmatpush.msra.mxu0 %v1394
    %1410 = vmatpush.msra.mxu0 %v1380
    %1411 = vmatpush.msra.mxu0 %v1378
    %1412 = vmatmul.f32.gmra.mxu0 %v1386
    %v1413 = vpop.f32.mrf.mxu0
    %v1414 = vadd.f32 0.0, %v1413
    %1415 = vmatmul.f32.gmra.mxu0 %v1389
    %v1416 = vpop.f32.mrf.mxu0
    %v1417 = vadd.f32 0.0, %v1416
    %1418 = vmatmul.f32.gmra.mxu0 %v1392
    %v1419 = vpop.f32.mrf.mxu0
    %v1420 = vadd.f32 0.0, %v1419
    %1421 = vdwg.mxu0
    %v1422 = vpack.c.bf16 %v1417, %v1414
    %v1423 = vpack.c.bf16 %v1420, %v1420
    %v1425 = vsel %vm342, %v1422, 0
    %v1428 = vsel %vm342, %v1423, 0
    %1430 = vmatpush.bf16.msra.mxu0 0
    %1431 = vmatpush.bf16.msra.mxu0 0
    %1432 = vmatpush.bf16.msra.mxu0 0
    %1433 = vmatpush.bf16.msra.mxu0 0
    %1434 = vmatpush.bf16.msra.mxu0 0
    %1435 = vmatpush.bf16.msra.mxu0 0
    %1436 = vmatpush.bf16.msra.mxu0 0
    %1437 = vmatpush.bf16.msra.mxu0 %v794
    %1438 = vmatmul.bf16.gmra.mxu0 %v1425
    %v1439 = vpop.f32.mrf.mxu0
    %v1440 = vadd.f32 0.0, %v1439
    %v1441 = vpop.f32.mrf.mxu0
    %v1442 = vadd.f32 0.0, %v1441
    %1443 = vmatmul.bf16.gmra.mxu0 %v1428
    %v1444 = vpop.f32.mrf.mxu0
    %v1445 = vadd.f32 0.0, %v1444
    %v1446 = vpop.f32.mrf.mxu0
    %1447 = vdwg.mxu0
    %v1448 = vadd.f32 %v1283, %v1440
    %v1449 = vadd.f32 %v1285, %v1442
    %v1450 = vadd.f32 %v1288, %v1445
    %1451 = vrot.lane.b32.xlu0 %v322, 104
    %v1452 = vpop.permute.xlu0 %1451
    %1453 = vrot.lane.b32.xlu0 %v325, 104
    %v1454 = vpop.permute.xlu0 %1453
    %1455 = vrot.lane.b32.xlu0 %v327, 104
    %v1456 = vpop.permute.xlu0 %1455
    %1457 = vrot.lane.b32.xlu0 %v322, 72
    %v1458 = vpop.permute.xlu0 %1457
    %1459 = vrot.lane.b32.xlu0 %v325, 72
    %v1460 = vpop.permute.xlu0 %1459
    %1461 = vrot.lane.b32.xlu0 %v327, 72
    %v1462 = vpop.permute.xlu0 %1461
    %v1463 = vsel %vm342, %v1452, 0
    %v1465 = vsel %vm342, %v1454, 0
    %v1467 = vsel %vm342, %v1456, 0
    %v1469 = vsel %vm342, %v1458, 0
    %v1471 = vsel %vm342, %v1460, 0
    %v1473 = vsel %vm342, %v1462, 0
    %1475 = vmatpush.xpose.msra.mxu0 0.0
    %1476 = vmatpush.xpose.msra.mxu0 0.0
    %1477 = vmatpush.xpose.msra.mxu0 0.0
    %1478 = vmatpush.xpose.msra.mxu0 0.0
    %1479 = vmatpush.xpose.msra.mxu0 0.0
    %1480 = vmatpush.xpose.msra.mxu0 0.0
    %1481 = vmatpush.xpose.msra.mxu0 0.0
    %1482 = vmatpush.xpose.msra.mxu0 0.0
    %1483 = vmatpush.xpose.msra.mxu0 0.0
    %1484 = vmatpush.xpose.msra.mxu0 0.0
    %1485 = vmatpush.xpose.msra.mxu0 0.0
    %1486 = vmatpush.xpose.msra.mxu0 0.0
    %1487 = vmatpush.xpose.msra.mxu0 0.0
    %1488 = vmatpush.xpose.msra.mxu0 %v1473
    %1489 = vmatpush.xpose.msra.mxu0 %v1471
    %1490 = vmatpush.xpose.msra.mxu0 %v1469
    %1491 = vmatmul.f32.gmra.mxu0 %v1463
    %v1492 = vpop.f32.mrf.mxu0
    %v1493 = vadd.f32 0.0, %v1492
    %1494 = vmatmul.f32.gmra.mxu0 %v1465
    %v1495 = vpop.f32.mrf.mxu0
    %v1496 = vadd.f32 0.0, %v1495
    %1497 = vmatmul.f32.gmra.mxu0 %v1467
    %v1498 = vpop.f32.mrf.mxu0
    %v1499 = vadd.f32 0.0, %v1498
    %1500 = vdwg.mxu0
    %v1501 = vmul.f32 %v1493, 0.35355338
    %v1502 = vmul.f32 %v1496, 0.35355338
    %v1503 = vmul.f32 %v1499, 0.35355338
    %v1504 = vsel %vm384, %v1501, -inf
    %1505 = vmax.xlane.f32.xlu0 %v1504
    %v1506 = vpop.xlane.xlu0 %1505
    %v1507 = vsel %vm384, %v1502, -inf
    %1508 = vmax.xlane.f32.xlu0 %v1507
    %v1509 = vpop.xlane.xlu0 %1508
    %v1510 = vsel %vm384, %v1503, -inf
    %1511 = vmax.xlane.f32.xlu0 %v1510
    %v1512 = vpop.xlane.xlu0 %1511
    %v1513 = vsub.f32 %v1501, %v1506
    %v1514 = vsub.f32 %v1502, %v1509
    %v1515 = vsub.f32 %v1503, %v1512
    %v1516 = vmul.f32 %v1513, 1.442695
    %v1517 = vpow.pop %v1516
    %v1518 = vmul.f32 %v1514, 1.442695
    %v1519 = vpow.pop %v1518
    %v1520 = vmul.f32 %v1515, 1.442695
    %v1521 = vpow.pop %v1520
    %v1522 = vsel %vm384, %v1517, 0.0
    %1523 = vadd.xlane.f32.xlu0 %v1522
    %v1524 = vpop.xlane.xlu0 %1523
    %v1525 = vsel %vm384, %v1519, 0.0
    %1526 = vadd.xlane.f32.xlu0 %v1525
    %v1527 = vpop.xlane.xlu0 %1526
    %v1528 = vsel %vm384, %v1521, 0.0
    %1529 = vadd.xlane.f32.xlu0 %v1528
    %v1530 = vpop.xlane.xlu0 %1529
    %v1531 = vrcp.pop %v1524
    %v1532 = vrcp.pop %v1527
    %v1533 = vrcp.pop %v1530
    %v1534 = vmul.f32 %v1517, %v1531
    %v1535 = vmul.f32 %v1519, %v1532
    %v1536 = vmul.f32 %v1521, %v1533
    %1537 = vrot.lane.b32.xlu0 %v322, 40
    %v1538 = vpop.permute.xlu0 %1537
    %1539 = vrot.lane.b32.xlu0 %v325, 40
    %v1540 = vpop.permute.xlu0 %1539
    %1541 = vrot.lane.b32.xlu0 %v327, 40
    %v1542 = vpop.permute.xlu0 %1541
    %v1546 = vsel %vm384, %v1534, 0
    %v1549 = vsel %vm384, %v1535, 0
    %v1552 = vsel %vm384, %v1536, 0
    %v1554 = vsel %vm435, %v1542, 0
    %1556 = vmatpush.msra.mxu0 0.0
    %1557 = vmatpush.msra.mxu0 0.0
    %1558 = vmatpush.msra.mxu0 0.0
    %1559 = vmatpush.msra.mxu0 0.0
    %1560 = vmatpush.msra.mxu0 0.0
    %1561 = vmatpush.msra.mxu0 0.0
    %1562 = vmatpush.msra.mxu0 0.0
    %1563 = vmatpush.msra.mxu0 0.0
    %1564 = vmatpush.msra.mxu0 0.0
    %1565 = vmatpush.msra.mxu0 0.0
    %1566 = vmatpush.msra.mxu0 0.0
    %1567 = vmatpush.msra.mxu0 0.0
    %1568 = vmatpush.msra.mxu0 0.0
    %1569 = vmatpush.msra.mxu0 %v1554
    %1570 = vmatpush.msra.mxu0 %v1540
    %1571 = vmatpush.msra.mxu0 %v1538
    %1572 = vmatmul.f32.gmra.mxu0 %v1546
    %v1573 = vpop.f32.mrf.mxu0
    %v1574 = vadd.f32 0.0, %v1573
    %1575 = vmatmul.f32.gmra.mxu0 %v1549
    %v1576 = vpop.f32.mrf.mxu0
    %v1577 = vadd.f32 0.0, %v1576
    %1578 = vmatmul.f32.gmra.mxu0 %v1552
    %v1579 = vpop.f32.mrf.mxu0
    %v1580 = vadd.f32 0.0, %v1579
    %1581 = vdwg.mxu0
    %v1582 = vpack.c.bf16 %v1577, %v1574
    %v1583 = vpack.c.bf16 %v1580, %v1580
    %v1585 = vsel %vm342, %v1582, 0
    %v1588 = vsel %vm342, %v1583, 0
    %1590 = vmatpush.bf16.msra.mxu0 0
    %1591 = vmatpush.bf16.msra.mxu0 0
    %1592 = vmatpush.bf16.msra.mxu0 0
    %1593 = vmatpush.bf16.msra.mxu0 0
    %1594 = vmatpush.bf16.msra.mxu0 0
    %1595 = vmatpush.bf16.msra.mxu0 0
    %1596 = vmatpush.bf16.msra.mxu0 0
    %1597 = vmatpush.bf16.msra.mxu0 %v957
    %1598 = vmatmul.bf16.gmra.mxu0 %v1585
    %v1599 = vpop.f32.mrf.mxu0
    %v1600 = vadd.f32 0.0, %v1599
    %v1601 = vpop.f32.mrf.mxu0
    %v1602 = vadd.f32 0.0, %v1601
    %1603 = vmatmul.bf16.gmra.mxu0 %v1588
    %v1604 = vpop.f32.mrf.mxu0
    %v1605 = vadd.f32 0.0, %v1604
    %v1606 = vpop.f32.mrf.mxu0
    %1607 = vdwg.mxu0
    %v1608 = vadd.f32 %v1448, %v1600
    %v1609 = vadd.f32 %v1449, %v1602
    %v1610 = vadd.f32 %v1450, %v1605
    %v1611 = vperm.slane %v34, 7
    %v1612 = vadd.f32 %v108, %v1611
    %v1613 = vadd.f32 %v110, %v1611
    %v1614 = vadd.f32 %v113, %v1611
    %v1615 = vadd.f32 %v115, %v1611
    %v1616 = vadd.f32 %v118, %v1611
    %v1617 = vadd.f32 %v120, %v1611
    %v1618 = vadd.f32 %v1612, %v977
    %v1619 = vadd.f32 %v1613, %v978
    %v1620 = vadd.f32 %v1614, %v979
    %v1621 = vadd.f32 %v1615, %v1608
    %v1622 = vadd.f32 %v1616, %v1609
    %v1623 = vadd.f32 %v1617, %v1610
    %v1624 = vsel %vm122, %v1618, 0.0
    %1625 = vadd.xlane.f32.xlu0 %v1624
    %v1626 = vpop.xlane.xlu0 %1625
    %v1627 = vsel %vm122, %v1619, 0.0
    %1628 = vadd.xlane.f32.xlu0 %v1627
    %v1629 = vpop.xlane.xlu0 %1628
    %v1630 = vsel %vm122, %v1620, 0.0
    %1631 = vadd.xlane.f32.xlu0 %v1630
    %v1632 = vpop.xlane.xlu0 %1631
    %v1633 = vsel %vm122, %v1621, 0.0
    %1634 = vadd.xlane.f32.xlu0 %v1633
    %v1635 = vpop.xlane.xlu0 %1634
    %v1636 = vsel %vm122, %v1622, 0.0
    %1637 = vadd.xlane.f32.xlu0 %v1636
    %v1638 = vpop.xlane.xlu0 %1637
    %v1639 = vsel %vm122, %v1623, 0.0
    %1640 = vadd.xlane.f32.xlu0 %v1639
    %v1641 = vpop.xlane.xlu0 %1640
    %v1642 = vmul.f32 %v1626, %v147
    %v1643 = vmul.f32 %v1629, %v147
    %v1644 = vmul.f32 %v1632, %v147
    %v1645 = vmul.f32 %v1635, %v147
    %v1646 = vmul.f32 %v1638, %v147
    %v1647 = vmul.f32 %v1641, %v147
    %v1648 = vsub.f32 %v1618, %v1642
    %v1649 = vsub.f32 %v1619, %v1643
    %v1650 = vsub.f32 %v1620, %v1644
    %v1651 = vsub.f32 %v1621, %v1645
    %v1652 = vsub.f32 %v1622, %v1646
    %v1653 = vsub.f32 %v1623, %v1647
    %v1654 = vmul.f32 %v1648, %v1648
    %v1655 = vmul.f32 %v1649, %v1649
    %v1656 = vmul.f32 %v1650, %v1650
    %v1657 = vmul.f32 %v1651, %v1651
    %v1658 = vmul.f32 %v1652, %v1652
    %v1659 = vmul.f32 %v1653, %v1653
    %v1660 = vsel %vm122, %v1654, 0.0
    %1661 = vadd.xlane.f32.xlu0 %v1660
    %v1662 = vpop.xlane.xlu0 %1661
    %v1663 = vsel %vm122, %v1655, 0.0
    %1664 = vadd.xlane.f32.xlu0 %v1663
    %v1665 = vpop.xlane.xlu0 %1664
    %v1666 = vsel %vm122, %v1656, 0.0
    %1667 = vadd.xlane.f32.xlu0 %v1666
    %v1668 = vpop.xlane.xlu0 %1667
    %v1669 = vsel %vm122, %v1657, 0.0
    %1670 = vadd.xlane.f32.xlu0 %v1669
    %v1671 = vpop.xlane.xlu0 %1670
    %v1672 = vsel %vm122, %v1658, 0.0
    %1673 = vadd.xlane.f32.xlu0 %v1672
    %v1674 = vpop.xlane.xlu0 %1673
    %v1675 = vsel %vm122, %v1659, 0.0
    %1676 = vadd.xlane.f32.xlu0 %v1675
    %v1677 = vpop.xlane.xlu0 %1676
    %v1678 = vmul.f32 %v1662, %v147
    %v1679 = vmul.f32 %v1665, %v147
    %v1680 = vmul.f32 %v1668, %v147
    %v1681 = vmul.f32 %v1671, %v147
    %v1682 = vmul.f32 %v1674, %v147
    %v1683 = vmul.f32 %v1677, %v147
    %v1684 = vadd.f32 %v1678, 1e-05
    %v1685 = vadd.f32 %v1679, 1e-05
    %v1686 = vadd.f32 %v1680, 1e-05
    %v1687 = vadd.f32 %v1681, 1e-05
    %v1688 = vadd.f32 %v1682, 1e-05
    %v1689 = vadd.f32 %v1683, 1e-05
    %v1690 = vrsqrt.pop %v1684
    %v1691 = vmul.f32 %v1690, %v1684
    %v1692 = vmul.f32 %v1691, %v1690
    %v1693 = vmul.f32 0.5, %v1692
    %v1694 = vsub.f32 1.5, %v1693
    %v1695 = vmul.f32 %v1690, %v1694
    %vm1696 = vweird.f32 %v1684
    %vm1697 = vweird.f32 %v1690
    %vm1698 = vmor %vm1696, %vm1697
    %v1699 = vsel %vm1698, %v1690, %v1695
    %v1700 = vrsqrt.pop %v1685
    %v1701 = vmul.f32 %v1700, %v1685
    %v1702 = vmul.f32 %v1701, %v1700
    %v1703 = vmul.f32 0.5, %v1702
    %v1704 = vsub.f32 1.5, %v1703
    %v1705 = vmul.f32 %v1700, %v1704
    %vm1706 = vweird.f32 %v1685
    %vm1707 = vweird.f32 %v1700
    %vm1708 = vmor %vm1706, %vm1707
    %v1709 = vsel %vm1708, %v1700, %v1705
    %v1710 = vrsqrt.pop %v1686
    %v1711 = vmul.f32 %v1710, %v1686
    %v1712 = vmul.f32 %v1711, %v1710
    %v1713 = vmul.f32 0.5, %v1712
    %v1714 = vsub.f32 1.5, %v1713
    %v1715 = vmul.f32 %v1710, %v1714
    %vm1716 = vweird.f32 %v1686
    %vm1717 = vweird.f32 %v1710
    %vm1718 = vmor %vm1716, %vm1717
    %v1719 = vsel %vm1718, %v1710, %v1715
    %v1720 = vrsqrt.pop %v1687
    %v1721 = vmul.f32 %v1720, %v1687
    %v1722 = vmul.f32 %v1721, %v1720
    %v1723 = vmul.f32 0.5, %v1722
    %v1724 = vsub.f32 1.5, %v1723
    %v1725 = vmul.f32 %v1720, %v1724
    %vm1726 = vweird.f32 %v1687
    %vm1727 = vweird.f32 %v1720
    %vm1728 = vmor %vm1726, %vm1727
    %v1729 = vsel %vm1728, %v1720, %v1725
    %v1730 = vrsqrt.pop %v1688
    %v1731 = vmul.f32 %v1730, %v1688
    %v1732 = vmul.f32 %v1731, %v1730
    %v1733 = vmul.f32 0.5, %v1732
    %v1734 = vsub.f32 1.5, %v1733
    %v1735 = vmul.f32 %v1730, %v1734
    %vm1736 = vweird.f32 %v1688
    %vm1737 = vweird.f32 %v1730
    %vm1738 = vmor %vm1736, %vm1737
    %v1739 = vsel %vm1738, %v1730, %v1735
    %v1740 = vrsqrt.pop %v1689
    %v1741 = vmul.f32 %v1740, %v1689
    %v1742 = vmul.f32 %v1741, %v1740
    %v1743 = vmul.f32 0.5, %v1742
    %v1744 = vsub.f32 1.5, %v1743
    %v1745 = vmul.f32 %v1740, %v1744
    %vm1746 = vweird.f32 %v1689
    %vm1747 = vweird.f32 %v1740
    %vm1748 = vmor %vm1746, %vm1747
    %v1749 = vsel %vm1748, %v1740, %v1745
    %v1750 = vmul.f32 %v1648, %v1699
    %v1751 = vmul.f32 %v1649, %v1709
    %v1752 = vmul.f32 %v1650, %v1719
    %v1753 = vmul.f32 %v1651, %v1729
    %v1754 = vmul.f32 %v1652, %v1739
    %v1755 = vmul.f32 %v1653, %v1749
    %v1756 = vperm.slane %v34, 5
    %v1757 = vmul.f32 %v1750, %v1756
    %v1758 = vmul.f32 %v1751, %v1756
    %v1759 = vmul.f32 %v1752, %v1756
    %v1760 = vmul.f32 %v1753, %v1756
    %v1761 = vmul.f32 %v1754, %v1756
    %v1762 = vmul.f32 %v1755, %v1756
    %v1763 = vperm.slane %v34, 6
    %v1764 = vadd.f32 %v1757, %v1763
    %v1765 = vadd.f32 %v1758, %v1763
    %v1766 = vadd.f32 %v1759, %v1763
    %v1767 = vadd.f32 %v1760, %v1763
    %v1768 = vadd.f32 %v1761, %v1763
    %v1769 = vadd.f32 %v1762, %v1763
    %v1770 = vpack.c.bf16 %v1765, %v1764
    %v1771 = vpack.c.bf16 %v1767, %v1766
    %v1772 = vpack.c.bf16 %v1769, %v1768
    %v1773 = vld [vmem:[%s6] sm:$0xf]
    %v1774 = vld [vmem:[%s6 + $0x4] sm:$0xf]
    %v1775 = vld [vmem:[%s6 + $0x8] sm:$0xf]
    %v1776 = vld [vmem:[%s6 + $0xc] sm:$0xf]
    %v1777 = vperm.slane %v35, 2
    %v1782 = vunpack.c.l.b16 %v1773
    %v1783 = vunpack.c.l.b16 %v1774
    %v1784 = vunpack.c.l.b16 %v1775
    %v1785 = vunpack.c.l.b16 %v1776
    %v1786 = vpack.c.b16 %v1783, %v1782
    %v1787 = vpack.c.b16 %v1785, %v1784
    %v1791 = vsel %vm122, %v1770, 0
    %v1794 = vsel %vm122, %v1771, 0
    %v1797 = vsel %vm122, %v1772, 0
    %1799 = vmatpush.bf16.msra.mxu0 0
    %1800 = vmatpush.bf16.msra.mxu0 0
    %1801 = vmatpush.bf16.msra.mxu0 0
    %1802 = vmatpush.bf16.msra.mxu0 0
    %1803 = vmatpush.bf16.msra.mxu0 0
    %1804 = vmatpush.bf16.msra.mxu0 0
    %1805 = vmatpush.bf16.msra.mxu0 %v1787
    %1806 = vmatpush.bf16.msra.mxu0 %v1786
    %1807 = vmatmul.bf16.gmra.mxu0 %v1791
    %v1808 = vpop.f32.mrf.mxu0
    %v1809 = vadd.f32 %v1777, %v1808
    %v1810 = vpop.f32.mrf.mxu0
    %v1811 = vadd.f32 %v1777, %v1810
    %1812 = vmatmul.bf16.gmra.mxu0 %v1794
    %v1813 = vpop.f32.mrf.mxu0
    %v1814 = vadd.f32 %v1777, %v1813
    %v1815 = vpop.f32.mrf.mxu0
    %v1816 = vadd.f32 %v1777, %v1815
    %1817 = vmatmul.bf16.gmra.mxu0 %v1797
    %v1818 = vpop.f32.mrf.mxu0
    %v1819 = vadd.f32 %v1777, %v1818
    %v1820 = vpop.f32.mrf.mxu0
    %v1821 = vadd.f32 %v1777, %v1820
    %1822 = vdwg.mxu0
    %v1823 = vmul.f32 %v1809, %v1809
    %v1824 = vmul.f32 %v1811, %v1811
    %v1825 = vmul.f32 %v1814, %v1814
    %v1826 = vmul.f32 %v1816, %v1816
    %v1827 = vmul.f32 %v1819, %v1819
    %v1828 = vmul.f32 %v1821, %v1821
    %v1829 = vmul.f32 %v1809, %v1823
    %v1830 = vmul.f32 %v1811, %v1824
    %v1831 = vmul.f32 %v1814, %v1825
    %v1832 = vmul.f32 %v1816, %v1826
    %v1833 = vmul.f32 %v1819, %v1827
    %v1834 = vmul.f32 %v1821, %v1828
    %v1835 = vmul.f32 %v1829, 0.044715
    %v1836 = vmul.f32 %v1830, 0.044715
    %v1837 = vmul.f32 %v1831, 0.044715
    %v1838 = vmul.f32 %v1832, 0.044715
    %v1839 = vmul.f32 %v1833, 0.044715
    %v1840 = vmul.f32 %v1834, 0.044715
    %v1841 = vadd.f32 %v1809, %v1835
    %v1842 = vadd.f32 %v1811, %v1836
    %v1843 = vadd.f32 %v1814, %v1837
    %v1844 = vadd.f32 %v1816, %v1838
    %v1845 = vadd.f32 %v1819, %v1839
    %v1846 = vadd.f32 %v1821, %v1840
    %v1847 = vmul.f32 %v1841, 0.7978846
    %v1848 = vmul.f32 %v1842, 0.7978846
    %v1849 = vmul.f32 %v1843, 0.7978846
    %v1850 = vmul.f32 %v1844, 0.7978846
    %v1851 = vmul.f32 %v1845, 0.7978846
    %v1852 = vmul.f32 %v1846, 0.7978846
    %v1853 = vtanh.pop %v1847
    %v1854 = vtanh.pop %v1848
    %v1855 = vtanh.pop %v1849
    %v1856 = vtanh.pop %v1850
    %v1857 = vtanh.pop %v1851
    %v1858 = vtanh.pop %v1852
    %v1859 = vadd.f32 %v1853, 1.0
    %v1860 = vadd.f32 %v1854, 1.0
    %v1861 = vadd.f32 %v1855, 1.0
    %v1862 = vadd.f32 %v1856, 1.0
    %v1863 = vadd.f32 %v1857, 1.0
    %v1864 = vadd.f32 %v1858, 1.0
    %v1865 = vmul.f32 %v1859, 0.5
    %v1866 = vmul.f32 %v1860, 0.5
    %v1867 = vmul.f32 %v1861, 0.5
    %v1868 = vmul.f32 %v1862, 0.5
    %v1869 = vmul.f32 %v1863, 0.5
    %v1870 = vmul.f32 %v1864, 0.5
    %v1871 = vmul.f32 %v1809, %v1865
    %v1872 = vmul.f32 %v1811, %v1866
    %v1873 = vmul.f32 %v1814, %v1867
    %v1874 = vmul.f32 %v1816, %v1868
    %v1875 = vmul.f32 %v1819, %v1869
    %v1876 = vmul.f32 %v1821, %v1870
    %v1877 = vpack.c.bf16 %v1872, %v1871
    %v1878 = vpack.c.bf16 %v1874, %v1873
    %v1879 = vpack.c.bf16 %v1876, %v1875
    %v1880 = vld [vmem:[%s7] sm:$0xf]
    %v1881 = vld [vmem:[%s7 + $0x4] sm:$0xf]
    %v1882 = vld [vmem:[%s7 + $0x8] sm:$0xf]
    %v1883 = vld [vmem:[%s7 + $0xc] sm:$0xf]
    %v1884 = vld [vmem:[%s7 + $0x10] sm:$0xf]
    %v1885 = vld [vmem:[%s7 + $0x14] sm:$0xf]
    %v1886 = vld [vmem:[%s7 + $0x18] sm:$0xf]
    %v1887 = vld [vmem:[%s7 + $0x1c] sm:$0xf]
    %v1888 = vld [vmem:[%s7 + $0x20] sm:$0xf]
    %v1889 = vld [vmem:[%s7 + $0x24] sm:$0xf]
    %v1890 = vld [vmem:[%s7 + $0x28] sm:$0xf]
    %v1891 = vld [vmem:[%s7 + $0x2c] sm:$0xf]
    %v1892 = vld [vmem:[%s7 + $0x30] sm:$0xf]
    %v1893 = vld [vmem:[%s7 + $0x34] sm:$0xf]
    %v1894 = vld [vmem:[%s7 + $0x38] sm:$0xf]
    %v1895 = vld [vmem:[%s7 + $0x3c] sm:$0xf]
    %v1912 = vunpack.c.l.b16 %v1880
    %v1913 = vunpack.c.l.b16 %v1881
    %v1914 = vunpack.c.l.b16 %v1882
    %v1915 = vunpack.c.l.b16 %v1883
    %v1916 = vunpack.c.l.b16 %v1884
    %v1917 = vunpack.c.l.b16 %v1885
    %v1918 = vunpack.c.l.b16 %v1886
    %v1919 = vunpack.c.l.b16 %v1887
    %v1920 = vunpack.c.l.b16 %v1888
    %v1921 = vunpack.c.l.b16 %v1889
    %v1922 = vunpack.c.l.b16 %v1890
    %v1923 = vunpack.c.l.b16 %v1891
    %v1924 = vunpack.c.l.b16 %v1892
    %v1925 = vunpack.c.l.b16 %v1893
    %v1926 = vunpack.c.l.b16 %v1894
    %v1927 = vunpack.c.l.b16 %v1895
    %v1928 = vpack.c.b16 %v1913, %v1912
    %v1929 = vpack.c.b16 %v1915, %v1914
    %v1930 = vpack.c.b16 %v1917, %v1916
    %v1931 = vpack.c.b16 %v1919, %v1918
    %v1932 = vpack.c.b16 %v1921, %v1920
    %v1933 = vpack.c.b16 %v1923, %v1922
    %v1934 = vpack.c.b16 %v1925, %v1924
    %v1935 = vpack.c.b16 %v1927, %v1926
    %1944 = vmatpush.bf16.msra.mxu0 %v1935
    %1945 = vmatpush.bf16.msra.mxu0 %v1934
    %1946 = vmatpush.bf16.msra.mxu0 %v1933
    %1947 = vmatpush.bf16.msra.mxu0 %v1932
    %1948 = vmatpush.bf16.msra.mxu0 %v1931
    %1949 = vmatpush.bf16.msra.mxu0 %v1930
    %1950 = vmatpush.bf16.msra.mxu0 %v1929
    %1951 = vmatpush.bf16.msra.mxu0 %v1928
    %1952 = vmatmul.bf16.gmra.mxu0 %v1877
    %v1953 = vpop.f32.mrf.mxu0
    %v1954 = vadd.f32 0.0, %v1953
    %v1955 = vpop.f32.mrf.mxu0
    %v1956 = vadd.f32 0.0, %v1955
    %1957 = vmatmul.bf16.gmra.mxu0 %v1878
    %v1958 = vpop.f32.mrf.mxu0
    %v1959 = vadd.f32 0.0, %v1958
    %v1960 = vpop.f32.mrf.mxu0
    %v1961 = vadd.f32 0.0, %v1960
    %1962 = vmatmul.bf16.gmra.mxu0 %v1879
    %v1963 = vpop.f32.mrf.mxu0
    %v1964 = vadd.f32 0.0, %v1963
    %v1965 = vpop.f32.mrf.mxu0
    %v1966 = vadd.f32 0.0, %v1965
    %1967 = vdwg.mxu0
    %v1968 = vadd.f32 %v1618, %v1954
    %v1969 = vadd.f32 %v1619, %v1956
    %v1970 = vadd.f32 %v1620, %v1959
    %v1971 = vadd.f32 %v1621, %v1961
    %v1972 = vadd.f32 %v1622, %v1964
    %v1973 = vadd.f32 %v1623, %v1966
    %v1974 = vperm.slane %v35, 0
    %v1975 = vadd.f32 %v1968, %v1974
    %v1976 = vadd.f32 %v1969, %v1974
    %v1977 = vadd.f32 %v1970, %v1974
    %v1978 = vadd.f32 %v1971, %v1974
    %v1979 = vadd.f32 %v1972, %v1974
    %v1980 = vadd.f32 %v1973, %v1974
    %v1981 = vsel %vm122, %v1975, 0.0
    %1982 = vadd.xlane.f32.xlu0 %v1981
    %v1983 = vpop.xlane.xlu0 %1982
    %v1984 = vsel %vm122, %v1976, 0.0
    %1985 = vadd.xlane.f32.xlu0 %v1984
    %v1986 = vpop.xlane.xlu0 %1985
    %v1987 = vsel %vm122, %v1977, 0.0
    %1988 = vadd.xlane.f32.xlu0 %v1987
    %v1989 = vpop.xlane.xlu0 %1988
    %v1990 = vsel %vm122, %v1978, 0.0
    %1991 = vadd.xlane.f32.xlu0 %v1990
    %v1992 = vpop.xlane.xlu0 %1991
    %v1993 = vsel %vm122, %v1979, 0.0
    %1994 = vadd.xlane.f32.xlu0 %v1993
    %v1995 = vpop.xlane.xlu0 %1994
    %v1996 = vsel %vm122, %v1980, 0.0
    %1997 = vadd.xlane.f32.xlu0 %v1996
    %v1998 = vpop.xlane.xlu0 %1997
    %v1999 = vmul.f32 %v1983, %v147
    %v2000 = vmul.f32 %v1986, %v147
    %v2001 = vmul.f32 %v1989, %v147
    %v2002 = vmul.f32 %v1992, %v147
    %v2003 = vmul.f32 %v1995, %v147
    %v2004 = vmul.f32 %v1998, %v147
    %v2005 = vsub.f32 %v1975, %v1999
    %v2006 = vsub.f32 %v1976, %v2000
    %v2007 = vsub.f32 %v1977, %v2001
    %v2008 = vsub.f32 %v1978, %v2002
    %v2009 = vsub.f32 %v1979, %v2003
    %v2010 = vsub.f32 %v1980, %v2004
    %v2011 = vmul.f32 %v2005, %v2005
    %v2012 = vmul.f32 %v2006, %v2006
    %v2013 = vmul.f32 %v2007, %v2007
    %v2014 = vmul.f32 %v2008, %v2008
    %v2015 = vmul.f32 %v2009, %v2009
    %v2016 = vmul.f32 %v2010, %v2010
    %v2017 = vsel %vm122, %v2011, 0.0
    %2018 = vadd.xlane.f32.xlu0 %v2017
    %v2019 = vpop.xlane.xlu0 %2018
    %v2020 = vsel %vm122, %v2012, 0.0
    %2021 = vadd.xlane.f32.xlu0 %v2020
    %v2022 = vpop.xlane.xlu0 %2021
    %v2023 = vsel %vm122, %v2013, 0.0
    %2024 = vadd.xlane.f32.xlu0 %v2023
    %v2025 = vpop.xlane.xlu0 %2024
    %v2026 = vsel %vm122, %v2014, 0.0
    %2027 = vadd.xlane.f32.xlu0 %v2026
    %v2028 = vpop.xlane.xlu0 %2027
    %v2029 = vsel %vm122, %v2015, 0.0
    %2030 = vadd.xlane.f32.xlu0 %v2029
    %v2031 = vpop.xlane.xlu0 %2030
    %v2032 = vsel %vm122, %v2016, 0.0
    %2033 = vadd.xlane.f32.xlu0 %v2032
    %v2034 = vpop.xlane.xlu0 %2033
    %v2035 = vmul.f32 %v2019, %v147
    %v2036 = vmul.f32 %v2022, %v147
    %v2037 = vmul.f32 %v2025, %v147
    %v2038 = vmul.f32 %v2028, %v147
    %v2039 = vmul.f32 %v2031, %v147
    %v2040 = vmul.f32 %v2034, %v147
    %v2041 = vadd.f32 %v2035, 1e-05
    %v2042 = vadd.f32 %v2036, 1e-05
    %v2043 = vadd.f32 %v2037, 1e-05
    %v2044 = vadd.f32 %v2038, 1e-05
    %v2045 = vadd.f32 %v2039, 1e-05
    %v2046 = vadd.f32 %v2040, 1e-05
    %v2047 = vrsqrt.pop %v2041
    %v2048 = vmul.f32 %v2047, %v2041
    %v2049 = vmul.f32 %v2048, %v2047
    %v2050 = vmul.f32 0.5, %v2049
    %v2051 = vsub.f32 1.5, %v2050
    %v2052 = vmul.f32 %v2047, %v2051
    %vm2053 = vweird.f32 %v2041
    %vm2054 = vweird.f32 %v2047
    %vm2055 = vmor %vm2053, %vm2054
    %v2056 = vsel %vm2055, %v2047, %v2052
    %v2057 = vrsqrt.pop %v2042
    %v2058 = vmul.f32 %v2057, %v2042
    %v2059 = vmul.f32 %v2058, %v2057
    %v2060 = vmul.f32 0.5, %v2059
    %v2061 = vsub.f32 1.5, %v2060
    %v2062 = vmul.f32 %v2057, %v2061
    %vm2063 = vweird.f32 %v2042
    %vm2064 = vweird.f32 %v2057
    %vm2065 = vmor %vm2063, %vm2064
    %v2066 = vsel %vm2065, %v2057, %v2062
    %v2067 = vrsqrt.pop %v2043
    %v2068 = vmul.f32 %v2067, %v2043
    %v2069 = vmul.f32 %v2068, %v2067
    %v2070 = vmul.f32 0.5, %v2069
    %v2071 = vsub.f32 1.5, %v2070
    %v2072 = vmul.f32 %v2067, %v2071
    %vm2073 = vweird.f32 %v2043
    %vm2074 = vweird.f32 %v2067
    %vm2075 = vmor %vm2073, %vm2074
    %v2076 = vsel %vm2075, %v2067, %v2072
    %v2077 = vrsqrt.pop %v2044
    %v2078 = vmul.f32 %v2077, %v2044
    %v2079 = vmul.f32 %v2078, %v2077
    %v2080 = vmul.f32 0.5, %v2079
    %v2081 = vsub.f32 1.5, %v2080
    %v2082 = vmul.f32 %v2077, %v2081
    %vm2083 = vweird.f32 %v2044
    %vm2084 = vweird.f32 %v2077
    %vm2085 = vmor %vm2083, %vm2084
    %v2086 = vsel %vm2085, %v2077, %v2082
    %v2087 = vrsqrt.pop %v2045
    %v2088 = vmul.f32 %v2087, %v2045
    %v2089 = vmul.f32 %v2088, %v2087
    %v2090 = vmul.f32 0.5, %v2089
    %v2091 = vsub.f32 1.5, %v2090
    %v2092 = vmul.f32 %v2087, %v2091
    %vm2093 = vweird.f32 %v2045
    %vm2094 = vweird.f32 %v2087
    %vm2095 = vmor %vm2093, %vm2094
    %v2096 = vsel %vm2095, %v2087, %v2092
    %v2097 = vrsqrt.pop %v2046
    %v2098 = vmul.f32 %v2097, %v2046
    %v2099 = vmul.f32 %v2098, %v2097
    %v2100 = vmul.f32 0.5, %v2099
    %v2101 = vsub.f32 1.5, %v2100
    %v2102 = vmul.f32 %v2097, %v2101
    %vm2103 = vweird.f32 %v2046
    %vm2104 = vweird.f32 %v2097
    %vm2105 = vmor %vm2103, %vm2104
    %v2106 = vsel %vm2105, %v2097, %v2102
    %v2107 = vmul.f32 %v2005, %v2056
    %v2108 = vmul.f32 %v2006, %v2066
    %v2109 = vmul.f32 %v2007, %v2076
    %v2110 = vmul.f32 %v2008, %v2086
    %v2111 = vmul.f32 %v2009, %v2096
    %v2112 = vmul.f32 %v2010, %v2106
    %v2113 = vperm.slane %v35, 3
    %v2114 = vmul.f32 %v2107, %v2113
    %v2115 = vmul.f32 %v2108, %v2113
    %v2116 = vmul.f32 %v2109, %v2113
    %v2117 = vmul.f32 %v2110, %v2113
    %v2118 = vmul.f32 %v2111, %v2113
    %v2119 = vmul.f32 %v2112, %v2113
    %v2120 = vperm.slane %v35, 4
    %v2121 = vadd.f32 %v2114, %v2120
    %v2122 = vadd.f32 %v2115, %v2120
    %v2123 = vadd.f32 %v2116, %v2120
    %v2124 = vadd.f32 %v2117, %v2120
    %v2125 = vadd.f32 %v2118, %v2120
    %v2126 = vadd.f32 %v2119, %v2120
    %v2127 = vpack.c.bf16 %v2122, %v2121
    %v2128 = vpack.c.bf16 %v2124, %v2123
    %v2129 = vpack.c.bf16 %v2126, %v2125
    %s2130 = scalar_lea.vmem %s4, 16
    %v2131 = vld [vmem:[%s2130] sm:$0xf]
    %v2132 = vld [vmem:[%s2130 + $0x4] sm:$0xf]
    %v2133 = vld [vmem:[%s2130 + $0x8] sm:$0xf]
    %v2134 = vld [vmem:[%s2130 + $0xc] sm:$0xf]
    %v2135 = vperm.slane %v36, 1
    %v2140 = vunpack.c.l.b16 %v2131
    %v2141 = vunpack.c.l.b16 %v2132
    %v2142 = vunpack.c.l.b16 %v2133
    %v2143 = vunpack.c.l.b16 %v2134
    %v2144 = vpack.c.b16 %v2141, %v2140
    %v2145 = vpack.c.b16 %v2143, %v2142
    %v2149 = vsel %vm122, %v2127, 0
    %v2152 = vsel %vm122, %v2128, 0
    %v2155 = vsel %vm122, %v2129, 0
    %2157 = vmatpush.bf16.msra.mxu0 0
    %2158 = vmatpush.bf16.msra.mxu0 0
    %2159 = vmatpush.bf16.msra.mxu0 0
    %2160 = vmatpush.bf16.msra.mxu0 0
    %2161 = vmatpush.bf16.msra.mxu0 0
    %2162 = vmatpush.bf16.msra.mxu0 0
    %2163 = vmatpush.bf16.msra.mxu0 %v2145
    %2164 = vmatpush.bf16.msra.mxu0 %v2144
    %2165 = vmatmul.bf16.gmra.mxu0 %v2149
    %v2166 = vpop.f32.mrf.mxu0
    %v2167 = vadd.f32 %v2135, %v2166
    %v2168 = vpop.f32.mrf.mxu0
    %v2169 = vadd.f32 %v2135, %v2168
    %2170 = vmatmul.bf16.gmra.mxu0 %v2152
    %v2171 = vpop.f32.mrf.mxu0
    %v2172 = vadd.f32 %v2135, %v2171
    %v2173 = vpop.f32.mrf.mxu0
    %v2174 = vadd.f32 %v2135, %v2173
    %2175 = vmatmul.bf16.gmra.mxu0 %v2155
    %v2176 = vpop.f32.mrf.mxu0
    %v2177 = vadd.f32 %v2135, %v2176
    %v2178 = vpop.f32.mrf.mxu0
    %v2179 = vadd.f32 %v2135, %v2178
    %2180 = vdwg.mxu0
    %s2181 = scalar_lea.vmem %s5, 16
    %v2182 = vld [vmem:[%s2181] sm:$0xf]
    %v2183 = vld [vmem:[%s2181 + $0x4] sm:$0xf]
    %v2184 = vld [vmem:[%s2181 + $0x8] sm:$0xf]
    %v2185 = vld [vmem:[%s2181 + $0xc] sm:$0xf]
    %2189 = vrot.lane.b32.xlu0 %v2167, 96
    %v2190 = vpop.permute.xlu0 %2189
    %2191 = vrot.lane.b32.xlu0 %v2169, 96
    %v2192 = vpop.permute.xlu0 %2191
    %2193 = vrot.lane.b32.xlu0 %v2172, 96
    %v2194 = vpop.permute.xlu0 %2193
    %v2195 = vsel %vm342, %v2167, 0
    %v2197 = vsel %vm342, %v2169, 0
    %v2199 = vsel %vm342, %v2172, 0
    %v2201 = vsel %vm342, %v2190, 0
    %v2203 = vsel %vm342, %v2192, 0
    %v2205 = vsel %vm342, %v2194, 0
    %2207 = vmatpush.xpose.msra.mxu0 0.0
    %2208 = vmatpush.xpose.msra.mxu0 0.0
    %2209 = vmatpush.xpose.msra.mxu0 0.0
    %2210 = vmatpush.xpose.msra.mxu0 0.0
    %2211 = vmatpush.xpose.msra.mxu0 0.0
    %2212 = vmatpush.xpose.msra.mxu0 0.0
    %2213 = vmatpush.xpose.msra.mxu0 0.0
    %2214 = vmatpush.xpose.msra.mxu0 0.0
    %2215 = vmatpush.xpose.msra.mxu0 0.0
    %2216 = vmatpush.xpose.msra.mxu0 0.0
    %2217 = vmatpush.xpose.msra.mxu0 0.0
    %2218 = vmatpush.xpose.msra.mxu0 0.0
    %2219 = vmatpush.xpose.msra.mxu0 0.0
    %2220 = vmatpush.xpose.msra.mxu0 %v2205
    %2221 = vmatpush.xpose.msra.mxu0 %v2203
    %2222 = vmatpush.xpose.msra.mxu0 %v2201
    %2223 = vmatmul.f32.gmra.mxu0 %v2195
    %v2224 = vpop.f32.mrf.mxu0
    %v2225 = vadd.f32 0.0, %v2224
    %2226 = vmatmul.f32.gmra.mxu0 %v2197
    %v2227 = vpop.f32.mrf.mxu0
    %v2228 = vadd.f32 0.0, %v2227
    %2229 = vmatmul.f32.gmra.mxu0 %v2199
    %v2230 = vpop.f32.mrf.mxu0
    %v2231 = vadd.f32 0.0, %v2230
    %2232 = vdwg.mxu0
    %v2233 = vmul.f32 %v2225, 0.35355338
    %v2234 = vmul.f32 %v2228, 0.35355338
    %v2235 = vmul.f32 %v2231, 0.35355338
    %v2236 = vsel %vm384, %v2233, -inf
    %2237 = vmax.xlane.f32.xlu0 %v2236
    %v2238 = vpop.xlane.xlu0 %2237
    %v2239 = vsel %vm384, %v2234, -inf
    %2240 = vmax.xlane.f32.xlu0 %v2239
    %v2241 = vpop.xlane.xlu0 %2240
    %v2242 = vsel %vm384, %v2235, -inf
    %2243 = vmax.xlane.f32.xlu0 %v2242
    %v2244 = vpop.xlane.xlu0 %2243
    %v2245 = vsub.f32 %v2233, %v2238
    %v2246 = vsub.f32 %v2234, %v2241
    %v2247 = vsub.f32 %v2235, %v2244
    %v2248 = vmul.f32 %v2245, 1.442695
    %v2249 = vpow.pop %v2248
    %v2250 = vmul.f32 %v2246, 1.442695
    %v2251 = vpow.pop %v2250
    %v2252 = vmul.f32 %v2247, 1.442695
    %v2253 = vpow.pop %v2252
    %v2254 = vsel %vm384, %v2249, 0.0
    %2255 = vadd.xlane.f32.xlu0 %v2254
    %v2256 = vpop.xlane.xlu0 %2255
    %v2257 = vsel %vm384, %v2251, 0.0
    %2258 = vadd.xlane.f32.xlu0 %v2257
    %v2259 = vpop.xlane.xlu0 %2258
    %v2260 = vsel %vm384, %v2253, 0.0
    %2261 = vadd.xlane.f32.xlu0 %v2260
    %v2262 = vpop.xlane.xlu0 %2261
    %v2263 = vrcp.pop %v2256
    %v2264 = vrcp.pop %v2259
    %v2265 = vrcp.pop %v2262
    %v2266 = vmul.f32 %v2249, %v2263
    %v2267 = vmul.f32 %v2251, %v2264
    %v2268 = vmul.f32 %v2253, %v2265
    %2269 = vrot.lane.b32.xlu0 %v2167, 64
    %v2270 = vpop.permute.xlu0 %2269
    %2271 = vrot.lane.b32.xlu0 %v2169, 64
    %v2272 = vpop.permute.xlu0 %2271
    %2273 = vrot.lane.b32.xlu0 %v2172, 64
    %v2274 = vpop.permute.xlu0 %2273
    %v2278 = vsel %vm384, %v2266, 0
    %v2281 = vsel %vm384, %v2267, 0
    %v2284 = vsel %vm384, %v2268, 0
    %v2286 = vsel %vm435, %v2274, 0
    %2288 = vmatpush.msra.mxu0 0.0
    %2289 = vmatpush.msra.mxu0 0.0
    %2290 = vmatpush.msra.mxu0 0.0
    %2291 = vmatpush.msra.mxu0 0.0
    %2292 = vmatpush.msra.mxu0 0.0
    %2293 = vmatpush.msra.mxu0 0.0
    %2294 = vmatpush.msra.mxu0 0.0
    %2295 = vmatpush.msra.mxu0 0.0
    %2296 = vmatpush.msra.mxu0 0.0
    %2297 = vmatpush.msra.mxu0 0.0
    %2298 = vmatpush.msra.mxu0 0.0
    %2299 = vmatpush.msra.mxu0 0.0
    %2300 = vmatpush.msra.mxu0 0.0
    %2301 = vmatpush.msra.mxu0 %v2286
    %2302 = vmatpush.msra.mxu0 %v2272
    %2303 = vmatpush.msra.mxu0 %v2270
    %2304 = vmatmul.f32.gmra.mxu0 %v2278
    %v2305 = vpop.f32.mrf.mxu0
    %v2306 = vadd.f32 0.0, %v2305
    %2307 = vmatmul.f32.gmra.mxu0 %v2281
    %v2308 = vpop.f32.mrf.mxu0
    %v2309 = vadd.f32 0.0, %v2308
    %2310 = vmatmul.f32.gmra.mxu0 %v2284
    %v2311 = vpop.f32.mrf.mxu0
    %v2312 = vadd.f32 0.0, %v2311
    %2313 = vdwg.mxu0
    %v2314 = vpack.c.bf16 %v2309, %v2306
    %v2315 = vpack.c.bf16 %v2312, %v2312
    %2316 = vrot.lane.b32.xlu0 %v2167, 120
    %v2317 = vpop.permute.xlu0 %2316
    %2318 = vrot.lane.b32.xlu0 %v2169, 120
    %v2319 = vpop.permute.xlu0 %2318
    %2320 = vrot.lane.b32.xlu0 %v2172, 120
    %v2321 = vpop.permute.xlu0 %2320
    %2322 = vrot.lane.b32.xlu0 %v2167, 88
    %v2323 = vpop.permute.xlu0 %2322
    %2324 = vrot.lane.b32.xlu0 %v2169, 88
    %v2325 = vpop.permute.xlu0 %2324
    %2326 = vrot.lane.b32.xlu0 %v2172, 88
    %v2327 = vpop.permute.xlu0 %2326
    %v2328 = vsel %vm342, %v2317, 0
    %v2330 = vsel %vm342, %v2319, 0
    %v2332 = vsel %vm342, %v2321, 0
    %v2334 = vsel %vm342, %v2323, 0
    %v2336 = vsel %vm342, %v2325, 0
    %v2338 = vsel %vm342, %v2327, 0
    %2340 = vmatpush.xpose.msra.mxu0 0.0
    %2341 = vmatpush.xpose.msra.mxu0 0.0
    %2342 = vmatpush.xpose.msra.mxu0 0.0
    %2343 = vmatpush.xpose.msra.mxu0 0.0
    %2344 = vmatpush.xpose.msra.mxu0 0.0
    %2345 = vmatpush.xpose.msra.mxu0 0.0
    %2346 = vmatpush.xpose.msra.mxu0 0.0
    %2347 = vmatpush.xpose.msra.mxu0 0.0
    %2348 = vmatpush.xpose.msra.mxu0 0.0
    %2349 = vmatpush.xpose.msra.mxu0 0.0
    %2350 = vmatpush.xpose.msra.mxu0 0.0
    %2351 = vmatpush.xpose.msra.mxu0 0.0
    %2352 = vmatpush.xpose.msra.mxu0 0.0
    %2353 = vmatpush.xpose.msra.mxu0 %v2338
    %2354 = vmatpush.xpose.msra.mxu0 %v2336
    %2355 = vmatpush.xpose.msra.mxu0 %v2334
    %2356 = vmatmul.f32.gmra.mxu0 %v2328
    %v2357 = vpop.f32.mrf.mxu0
    %v2358 = vadd.f32 0.0, %v2357
    %2359 = vmatmul.f32.gmra.mxu0 %v2330
    %v2360 = vpop.f32.mrf.mxu0
    %v2361 = vadd.f32 0.0, %v2360
    %2362 = vmatmul.f32.gmra.mxu0 %v2332
    %v2363 = vpop.f32.mrf.mxu0
    %v2364 = vadd.f32 0.0, %v2363
    %2365 = vdwg.mxu0
    %v2366 = vmul.f32 %v2358, 0.35355338
    %v2367 = vmul.f32 %v2361, 0.35355338
    %v2368 = vmul.f32 %v2364, 0.35355338
    %v2369 = vsel %vm384, %v2366, -inf
    %2370 = vmax.xlane.f32.xlu0 %v2369
    %v2371 = vpop.xlane.xlu0 %2370
    %v2372 = vsel %vm384, %v2367, -inf
    %2373 = vmax.xlane.f32.xlu0 %v2372
    %v2374 = vpop.xlane.xlu0 %2373
    %v2375 = vsel %vm384, %v2368, -inf
    %2376 = vmax.xlane.f32.xlu0 %v2375
    %v2377 = vpop.xlane.xlu0 %2376
    %v2378 = vsub.f32 %v2366, %v2371
    %v2379 = vsub.f32 %v2367, %v2374
    %v2380 = vsub.f32 %v2368, %v2377
    %v2381 = vmul.f32 %v2378, 1.442695
    %v2382 = vpow.pop %v2381
    %v2383 = vmul.f32 %v2379, 1.442695
    %v2384 = vpow.pop %v2383
    %v2385 = vmul.f32 %v2380, 1.442695
    %v2386 = vpow.pop %v2385
    %v2387 = vsel %vm384, %v2382, 0.0
    %2388 = vadd.xlane.f32.xlu0 %v2387
    %v2389 = vpop.xlane.xlu0 %2388
    %v2390 = vsel %vm384, %v2384, 0.0
    %2391 = vadd.xlane.f32.xlu0 %v2390
    %v2392 = vpop.xlane.xlu0 %2391
    %v2393 = vsel %vm384, %v2386, 0.0
    %2394 = vadd.xlane.f32.xlu0 %v2393
    %v2395 = vpop.xlane.xlu0 %2394
    %v2396 = vrcp.pop %v2389
    %v2397 = vrcp.pop %v2392
    %v2398 = vrcp.pop %v2395
    %v2399 = vmul.f32 %v2382, %v2396
    %v2400 = vmul.f32 %v2384, %v2397
    %v2401 = vmul.f32 %v2386, %v2398
    %2402 = vrot.lane.b32.xlu0 %v2167, 56
    %v2403 = vpop.permute.xlu0 %2402
    %2404 = vrot.lane.b32.xlu0 %v2169, 56
    %v2405 = vpop.permute.xlu0 %2404
    %2406 = vrot.lane.b32.xlu0 %v2172, 56
    %v2407 = vpop.permute.xlu0 %2406
    %v2411 = vsel %vm384, %v2399, 0
    %v2414 = vsel %vm384, %v2400, 0
    %v2417 = vsel %vm384, %v2401, 0
    %v2419 = vsel %vm435, %v2407, 0
    %2421 = vmatpush.msra.mxu0 0.0
    %2422 = vmatpush.msra.mxu0 0.0
    %2423 = vmatpush.msra.mxu0 0.0
    %2424 = vmatpush.msra.mxu0 0.0
    %2425 = vmatpush.msra.mxu0 0.0
    %2426 = vmatpush.msra.mxu0 0.0
    %2427 = vmatpush.msra.mxu0 0.0
    %2428 = vmatpush.msra.mxu0 0.0
    %2429 = vmatpush.msra.mxu0 0.0
    %2430 = vmatpush.msra.mxu0 0.0
    %2431 = vmatpush.msra.mxu0 0.0
    %2432 = vmatpush.msra.mxu0 0.0
    %2433 = vmatpush.msra.mxu0 0.0
    %2434 = vmatpush.msra.mxu0 %v2419
    %2435 = vmatpush.msra.mxu0 %v2405
    %2436 = vmatpush.msra.mxu0 %v2403
    %2437 = vmatmul.f32.gmra.mxu0 %v2411
    %v2438 = vpop.f32.mrf.mxu0
    %v2439 = vadd.f32 0.0, %v2438
    %2440 = vmatmul.f32.gmra.mxu0 %v2414
    %v2441 = vpop.f32.mrf.mxu0
    %v2442 = vadd.f32 0.0, %v2441
    %2443 = vmatmul.f32.gmra.mxu0 %v2417
    %v2444 = vpop.f32.mrf.mxu0
    %v2445 = vadd.f32 0.0, %v2444
    %2446 = vdwg.mxu0
    %v2447 = vpack.c.bf16 %v2442, %v2439
    %v2448 = vpack.c.bf16 %v2445, %v2445
    %v2450 = vsel %vm342, %v2447, 0
    %v2453 = vsel %vm342, %v2448, 0
    %v2456 = vsel %vm605, %v2183, 0
    %2458 = vmatpush.bf16.msra.mxu0 0
    %2459 = vmatpush.bf16.msra.mxu0 0
    %2460 = vmatpush.bf16.msra.mxu0 0
    %2461 = vmatpush.bf16.msra.mxu0 0
    %2462 = vmatpush.bf16.msra.mxu0 0
    %2463 = vmatpush.bf16.msra.mxu0 0
    %2464 = vmatpush.bf16.msra.mxu0 0
    %2465 = vmatpush.bf16.msra.mxu0 %v2456
    %2466 = vmatmul.bf16.gmra.mxu0 %v2450
    %v2467 = vpop.f32.mrf.mxu0
    %v2468 = vadd.f32 0.0, %v2467
    %v2469 = vpop.f32.mrf.mxu0
    %v2470 = vadd.f32 0.0, %v2469
    %2471 = vmatmul.bf16.gmra.mxu0 %v2453
    %v2472 = vpop.f32.mrf.mxu0
    %v2473 = vadd.f32 0.0, %v2472
    %v2474 = vpop.f32.mrf.mxu0
    %2475 = vdwg.mxu0
    %v2477 = vsel %vm342, %v2314, 0
    %v2480 = vsel %vm342, %v2315, 0
    %v2483 = vsel %vm605, %v2182, 0
    %2485 = vmatpush.bf16.msra.mxu0 0
    %2486 = vmatpush.bf16.msra.mxu0 0
    %2487 = vmatpush.bf16.msra.mxu0 0
    %2488 = vmatpush.bf16.msra.mxu0 0
    %2489 = vmatpush.bf16.msra.mxu0 0
    %2490 = vmatpush.bf16.msra.mxu0 0
    %2491 = vmatpush.bf16.msra.mxu0 0
    %2492 = vmatpush.bf16.msra.mxu0 %v2483
    %2493 = vmatmul.bf16.gmra.mxu0 %v2477
    %v2494 = vpop.f32.mrf.mxu0
    %v2495 = vadd.f32 %v2468, %v2494
    %v2496 = vpop.f32.mrf.mxu0
    %v2497 = vadd.f32 %v2470, %v2496
    %2498 = vmatmul.bf16.gmra.mxu0 %v2480
    %v2499 = vpop.f32.mrf.mxu0
    %v2500 = vadd.f32 %v2473, %v2499
    %v2501 = vpop.f32.mrf.mxu0
    %2502 = vdwg.mxu0
    %2503 = vrot.lane.b32.xlu0 %v2167, 112
    %v2504 = vpop.permute.xlu0 %2503
    %2505 = vrot.lane.b32.xlu0 %v2169, 112
    %v2506 = vpop.permute.xlu0 %2505
    %2507 = vrot.lane.b32.xlu0 %v2172, 112
    %v2508 = vpop.permute.xlu0 %2507
    %2509 = vrot.lane.b32.xlu0 %v2167, 80
    %v2510 = vpop.permute.xlu0 %2509
    %2511 = vrot.lane.b32.xlu0 %v2169, 80
    %v2512 = vpop.permute.xlu0 %2511
    %2513 = vrot.lane.b32.xlu0 %v2172, 80
    %v2514 = vpop.permute.xlu0 %2513
    %v2515 = vsel %vm342, %v2504, 0
    %v2517 = vsel %vm342, %v2506, 0
    %v2519 = vsel %vm342, %v2508, 0
    %v2521 = vsel %vm342, %v2510, 0
    %v2523 = vsel %vm342, %v2512, 0
    %v2525 = vsel %vm342, %v2514, 0
    %2527 = vmatpush.xpose.msra.mxu0 0.0
    %2528 = vmatpush.xpose.msra.mxu0 0.0
    %2529 = vmatpush.xpose.msra.mxu0 0.0
    %2530 = vmatpush.xpose.msra.mxu0 0.0
    %2531 = vmatpush.xpose.msra.mxu0 0.0
    %2532 = vmatpush.xpose.msra.mxu0 0.0
    %2533 = vmatpush.xpose.msra.mxu0 0.0
    %2534 = vmatpush.xpose.msra.mxu0 0.0
    %2535 = vmatpush.xpose.msra.mxu0 0.0
    %2536 = vmatpush.xpose.msra.mxu0 0.0
    %2537 = vmatpush.xpose.msra.mxu0 0.0
    %2538 = vmatpush.xpose.msra.mxu0 0.0
    %2539 = vmatpush.xpose.msra.mxu0 0.0
    %2540 = vmatpush.xpose.msra.mxu0 %v2525
    %2541 = vmatpush.xpose.msra.mxu0 %v2523
    %2542 = vmatpush.xpose.msra.mxu0 %v2521
    %2543 = vmatmul.f32.gmra.mxu0 %v2515
    %v2544 = vpop.f32.mrf.mxu0
    %v2545 = vadd.f32 0.0, %v2544
    %2546 = vmatmul.f32.gmra.mxu0 %v2517
    %v2547 = vpop.f32.mrf.mxu0
    %v2548 = vadd.f32 0.0, %v2547
    %2549 = vmatmul.f32.gmra.mxu0 %v2519
    %v2550 = vpop.f32.mrf.mxu0
    %v2551 = vadd.f32 0.0, %v2550
    %2552 = vdwg.mxu0
    %v2553 = vmul.f32 %v2545, 0.35355338
    %v2554 = vmul.f32 %v2548, 0.35355338
    %v2555 = vmul.f32 %v2551, 0.35355338
    %v2556 = vsel %vm384, %v2553, -inf
    %2557 = vmax.xlane.f32.xlu0 %v2556
    %v2558 = vpop.xlane.xlu0 %2557
    %v2559 = vsel %vm384, %v2554, -inf
    %2560 = vmax.xlane.f32.xlu0 %v2559
    %v2561 = vpop.xlane.xlu0 %2560
    %v2562 = vsel %vm384, %v2555, -inf
    %2563 = vmax.xlane.f32.xlu0 %v2562
    %v2564 = vpop.xlane.xlu0 %2563
    %v2565 = vsub.f32 %v2553, %v2558
    %v2566 = vsub.f32 %v2554, %v2561
    %v2567 = vsub.f32 %v2555, %v2564
    %v2568 = vmul.f32 %v2565, 1.442695
    %v2569 = vpow.pop %v2568
    %v2570 = vmul.f32 %v2566, 1.442695
    %v2571 = vpow.pop %v2570
    %v2572 = vmul.f32 %v2567, 1.442695
    %v2573 = vpow.pop %v2572
    %v2574 = vsel %vm384, %v2569, 0.0
    %2575 = vadd.xlane.f32.xlu0 %v2574
    %v2576 = vpop.xlane.xlu0 %2575
    %v2577 = vsel %vm384, %v2571, 0.0
    %2578 = vadd.xlane.f32.xlu0 %v2577
    %v2579 = vpop.xlane.xlu0 %2578
    %v2580 = vsel %vm384, %v2573, 0.0
    %2581 = vadd.xlane.f32.xlu0 %v2580
    %v2582 = vpop.xlane.xlu0 %2581
    %v2583 = vrcp.pop %v2576
    %v2584 = vrcp.pop %v2579
    %v2585 = vrcp.pop %v2582
    %v2586 = vmul.f32 %v2569, %v2583
    %v2587 = vmul.f32 %v2571, %v2584
    %v2588 = vmul.f32 %v2573, %v2585
    %2589 = vrot.lane.b32.xlu0 %v2167, 48
    %v2590 = vpop.permute.xlu0 %2589
    %2591 = vrot.lane.b32.xlu0 %v2169, 48
    %v2592 = vpop.permute.xlu0 %2591
    %2593 = vrot.lane.b32.xlu0 %v2172, 48
    %v2594 = vpop.permute.xlu0 %2593
    %v2598 = vsel %vm384, %v2586, 0
    %v2601 = vsel %vm384, %v2587, 0
    %v2604 = vsel %vm384, %v2588, 0
    %v2606 = vsel %vm435, %v2594, 0
    %2608 = vmatpush.msra.mxu0 0.0
    %2609 = vmatpush.msra.mxu0 0.0
    %2610 = vmatpush.msra.mxu0 0.0
    %2611 = vmatpush.msra.mxu0 0.0
    %2612 = vmatpush.msra.mxu0 0.0
    %2613 = vmatpush.msra.mxu0 0.0
    %2614 = vmatpush.msra.mxu0 0.0
    %2615 = vmatpush.msra.mxu0 0.0
    %2616 = vmatpush.msra.mxu0 0.0
    %2617 = vmatpush.msra.mxu0 0.0
    %2618 = vmatpush.msra.mxu0 0.0
    %2619 = vmatpush.msra.mxu0 0.0
    %2620 = vmatpush.msra.mxu0 0.0
    %2621 = vmatpush.msra.mxu0 %v2606
    %2622 = vmatpush.msra.mxu0 %v2592
    %2623 = vmatpush.msra.mxu0 %v2590
    %2624 = vmatmul.f32.gmra.mxu0 %v2598
    %v2625 = vpop.f32.mrf.mxu0
    %v2626 = vadd.f32 0.0, %v2625
    %2627 = vmatmul.f32.gmra.mxu0 %v2601
    %v2628 = vpop.f32.mrf.mxu0
    %v2629 = vadd.f32 0.0, %v2628
    %2630 = vmatmul.f32.gmra.mxu0 %v2604
    %v2631 = vpop.f32.mrf.mxu0
    %v2632 = vadd.f32 0.0, %v2631
    %2633 = vdwg.mxu0
    %v2634 = vpack.c.bf16 %v2629, %v2626
    %v2635 = vpack.c.bf16 %v2632, %v2632
    %v2637 = vsel %vm342, %v2634, 0
    %v2640 = vsel %vm342, %v2635, 0
    %v2643 = vsel %vm605, %v2184, 0
    %2645 = vmatpush.bf16.msra.mxu0 0
    %2646 = vmatpush.bf16.msra.mxu0 0
    %2647 = vmatpush.bf16.msra.mxu0 0
    %2648 = vmatpush.bf16.msra.mxu0 0
    %2649 = vmatpush.bf16.msra.mxu0 0
    %2650 = vmatpush.bf16.msra.mxu0 0
    %2651 = vmatpush.bf16.msra.mxu0 0
    %2652 = vmatpush.bf16.msra.mxu0 %v2643
    %2653 = vmatmul.bf16.gmra.mxu0 %v2637
    %v2654 = vpop.f32.mrf.mxu0
    %v2655 = vadd.f32 0.0, %v2654
    %v2656 = vpop.f32.mrf.mxu0
    %v2657 = vadd.f32 0.0, %v2656
    %2658 = vmatmul.bf16.gmra.mxu0 %v2640
    %v2659 = vpop.f32.mrf.mxu0
    %v2660 = vadd.f32 0.0, %v2659
    %v2661 = vpop.f32.mrf.mxu0
    %2662 = vdwg.mxu0
    %v2663 = vadd.f32 %v2495, %v2655
    %v2664 = vadd.f32 %v2497, %v2657
    %v2665 = vadd.f32 %v2500, %v2660
    %2666 = vrot.lane.b32.xlu0 %v2167, 104
    %v2667 = vpop.permute.xlu0 %2666
    %2668 = vrot.lane.b32.xlu0 %v2169, 104
    %v2669 = vpop.permute.xlu0 %2668
    %2670 = vrot.lane.b32.xlu0 %v2172, 104
    %v2671 = vpop.permute.xlu0 %2670
    %2672 = vrot.lane.b32.xlu0 %v2167, 72
    %v2673 = vpop.permute.xlu0 %2672
    %2674 = vrot.lane.b32.xlu0 %v2169, 72
    %v2675 = vpop.permute.xlu0 %2674
    %2676 = vrot.lane.b32.xlu0 %v2172, 72
    %v2677 = vpop.permute.xlu0 %2676
    %v2678 = vsel %vm342, %v2667, 0
    %v2680 = vsel %vm342, %v2669, 0
    %v2682 = vsel %vm342, %v2671, 0
    %v2684 = vsel %vm342, %v2673, 0
    %v2686 = vsel %vm342, %v2675, 0
    %v2688 = vsel %vm342, %v2677, 0
    %2690 = vmatpush.xpose.msra.mxu0 0.0
    %2691 = vmatpush.xpose.msra.mxu0 0.0
    %2692 = vmatpush.xpose.msra.mxu0 0.0
    %2693 = vmatpush.xpose.msra.mxu0 0.0
    %2694 = vmatpush.xpose.msra.mxu0 0.0
    %2695 = vmatpush.xpose.msra.mxu0 0.0
    %2696 = vmatpush.xpose.msra.mxu0 0.0
    %2697 = vmatpush.xpose.msra.mxu0 0.0
    %2698 = vmatpush.xpose.msra.mxu0 0.0
    %2699 = vmatpush.xpose.msra.mxu0 0.0
    %2700 = vmatpush.xpose.msra.mxu0 0.0
    %2701 = vmatpush.xpose.msra.mxu0 0.0
    %2702 = vmatpush.xpose.msra.mxu0 0.0
    %2703 = vmatpush.xpose.msra.mxu0 %v2688
    %2704 = vmatpush.xpose.msra.mxu0 %v2686
    %2705 = vmatpush.xpose.msra.mxu0 %v2684
    %2706 = vmatmul.f32.gmra.mxu0 %v2678
    %v2707 = vpop.f32.mrf.mxu0
    %v2708 = vadd.f32 0.0, %v2707
    %2709 = vmatmul.f32.gmra.mxu0 %v2680
    %v2710 = vpop.f32.mrf.mxu0
    %v2711 = vadd.f32 0.0, %v2710
    %2712 = vmatmul.f32.gmra.mxu0 %v2682
    %v2713 = vpop.f32.mrf.mxu0
    %v2714 = vadd.f32 0.0, %v2713
    %2715 = vdwg.mxu0
    %v2716 = vmul.f32 %v2708, 0.35355338
    %v2717 = vmul.f32 %v2711, 0.35355338
    %v2718 = vmul.f32 %v2714, 0.35355338
    %v2719 = vsel %vm384, %v2716, -inf
    %2720 = vmax.xlane.f32.xlu0 %v2719
    %v2721 = vpop.xlane.xlu0 %2720
    %v2722 = vsel %vm384, %v2717, -inf
    %2723 = vmax.xlane.f32.xlu0 %v2722
    %v2724 = vpop.xlane.xlu0 %2723
    %v2725 = vsel %vm384, %v2718, -inf
    %2726 = vmax.xlane.f32.xlu0 %v2725
    %v2727 = vpop.xlane.xlu0 %2726
    %v2728 = vsub.f32 %v2716, %v2721
    %v2729 = vsub.f32 %v2717, %v2724
    %v2730 = vsub.f32 %v2718, %v2727
    %v2731 = vmul.f32 %v2728, 1.442695
    %v2732 = vpow.pop %v2731
    %v2733 = vmul.f32 %v2729, 1.442695
    %v2734 = vpow.pop %v2733
    %v2735 = vmul.f32 %v2730, 1.442695
    %v2736 = vpow.pop %v2735
    %v2737 = vsel %vm384, %v2732, 0.0
    %2738 = vadd.xlane.f32.xlu0 %v2737
    %v2739 = vpop.xlane.xlu0 %2738
    %v2740 = vsel %vm384, %v2734, 0.0
    %2741 = vadd.xlane.f32.xlu0 %v2740
    %v2742 = vpop.xlane.xlu0 %2741
    %v2743 = vsel %vm384, %v2736, 0.0
    %2744 = vadd.xlane.f32.xlu0 %v2743
    %v2745 = vpop.xlane.xlu0 %2744
    %v2746 = vrcp.pop %v2739
    %v2747 = vrcp.pop %v2742
    %v2748 = vrcp.pop %v2745
    %v2749 = vmul.f32 %v2732, %v2746
    %v2750 = vmul.f32 %v2734, %v2747
    %v2751 = vmul.f32 %v2736, %v2748
    %2752 = vrot.lane.b32.xlu0 %v2167, 40
    %v2753 = vpop.permute.xlu0 %2752
    %2754 = vrot.lane.b32.xlu0 %v2169, 40
    %v2755 = vpop.permute.xlu0 %2754
    %2756 = vrot.lane.b32.xlu0 %v2172, 40
    %v2757 = vpop.permute.xlu0 %2756
    %v2761 = vsel %vm384, %v2749, 0
    %v2764 = vsel %vm384, %v2750, 0
    %v2767 = vsel %vm384, %v2751, 0
    %v2769 = vsel %vm435, %v2757, 0
    %2771 = vmatpush.msra.mxu0 0.0
    %2772 = vmatpush.msra.mxu0 0.0
    %2773 = vmatpush.msra.mxu0 0.0
    %2774 = vmatpush.msra.mxu0 0.0
    %2775 = vmatpush.msra.mxu0 0.0
    %2776 = vmatpush.msra.mxu0 0.0
    %2777 = vmatpush.msra.mxu0 0.0
    %2778 = vmatpush.msra.mxu0 0.0
    %2779 = vmatpush.msra.mxu0 0.0
    %2780 = vmatpush.msra.mxu0 0.0
    %2781 = vmatpush.msra.mxu0 0.0
    %2782 = vmatpush.msra.mxu0 0.0
    %2783 = vmatpush.msra.mxu0 0.0
    %2784 = vmatpush.msra.mxu0 %v2769
    %2785 = vmatpush.msra.mxu0 %v2755
    %2786 = vmatpush.msra.mxu0 %v2753
    %2787 = vmatmul.f32.gmra.mxu0 %v2761
    %v2788 = vpop.f32.mrf.mxu0
    %v2789 = vadd.f32 0.0, %v2788
    %2790 = vmatmul.f32.gmra.mxu0 %v2764
    %v2791 = vpop.f32.mrf.mxu0
    %v2792 = vadd.f32 0.0, %v2791
    %2793 = vmatmul.f32.gmra.mxu0 %v2767
    %v2794 = vpop.f32.mrf.mxu0
    %v2795 = vadd.f32 0.0, %v2794
    %2796 = vdwg.mxu0
    %v2797 = vpack.c.bf16 %v2792, %v2789
    %v2798 = vpack.c.bf16 %v2795, %v2795
    %v2800 = vsel %vm342, %v2797, 0
    %v2803 = vsel %vm342, %v2798, 0
    %v2806 = vsel %vm605, %v2185, 0
    %2808 = vmatpush.bf16.msra.mxu0 0
    %2809 = vmatpush.bf16.msra.mxu0 0
    %2810 = vmatpush.bf16.msra.mxu0 0
    %2811 = vmatpush.bf16.msra.mxu0 0
    %2812 = vmatpush.bf16.msra.mxu0 0
    %2813 = vmatpush.bf16.msra.mxu0 0
    %2814 = vmatpush.bf16.msra.mxu0 0
    %2815 = vmatpush.bf16.msra.mxu0 %v2806
    %2816 = vmatmul.bf16.gmra.mxu0 %v2800
    %v2817 = vpop.f32.mrf.mxu0
    %v2818 = vadd.f32 0.0, %v2817
    %v2819 = vpop.f32.mrf.mxu0
    %v2820 = vadd.f32 0.0, %v2819
    %2821 = vmatmul.bf16.gmra.mxu0 %v2803
    %v2822 = vpop.f32.mrf.mxu0
    %v2823 = vadd.f32 0.0, %v2822
    %v2824 = vpop.f32.mrf.mxu0
    %2825 = vdwg.mxu0
    %v2826 = vadd.f32 %v2663, %v2818
    %v2827 = vadd.f32 %v2664, %v2820
    %v2828 = vadd.f32 %v2665, %v2823
    %2832 = vrot.lane.b32.xlu0 %v2174, 96
    %v2833 = vpop.permute.xlu0 %2832
    %2834 = vrot.lane.b32.xlu0 %v2177, 96
    %v2835 = vpop.permute.xlu0 %2834
    %2836 = vrot.lane.b32.xlu0 %v2179, 96
    %v2837 = vpop.permute.xlu0 %2836
    %v2838 = vsel %vm342, %v2174, 0
    %v2840 = vsel %vm342, %v2177, 0
    %v2842 = vsel %vm342, %v2179, 0
    %v2844 = vsel %vm342, %v2833, 0
    %v2846 = vsel %vm342, %v2835, 0
    %v2848 = vsel %vm342, %v2837, 0
    %2850 = vmatpush.xpose.msra.mxu0 0.0
    %2851 = vmatpush.xpose.msra.mxu0 0.0
    %2852 = vmatpush.xpose.msra.mxu0 0.0
    %2853 = vmatpush.xpose.msra.mxu0 0.0
    %2854 = vmatpush.xpose.msra.mxu0 0.0
    %2855 = vmatpush.xpose.msra.mxu0 0.0
    %2856 = vmatpush.xpose.msra.mxu0 0.0
    %2857 = vmatpush.xpose.msra.mxu0 0.0
    %2858 = vmatpush.xpose.msra.mxu0 0.0
    %2859 = vmatpush.xpose.msra.mxu0 0.0
    %2860 = vmatpush.xpose.msra.mxu0 0.0
    %2861 = vmatpush.xpose.msra.mxu0 0.0
    %2862 = vmatpush.xpose.msra.mxu0 0.0
    %2863 = vmatpush.xpose.msra.mxu0 %v2848
    %2864 = vmatpush.xpose.msra.mxu0 %v2846
    %2865 = vmatpush.xpose.msra.mxu0 %v2844
    %2866 = vmatmul.f32.gmra.mxu0 %v2838
    %v2867 = vpop.f32.mrf.mxu0
    %v2868 = vadd.f32 0.0, %v2867
    %2869 = vmatmul.f32.gmra.mxu0 %v2840
    %v2870 = vpop.f32.mrf.mxu0
    %v2871 = vadd.f32 0.0, %v2870
    %2872 = vmatmul.f32.gmra.mxu0 %v2842
    %v2873 = vpop.f32.mrf.mxu0
    %v2874 = vadd.f32 0.0, %v2873
    %2875 = vdwg.mxu0
    %v2876 = vmul.f32 %v2868, 0.35355338
    %v2877 = vmul.f32 %v2871, 0.35355338
    %v2878 = vmul.f32 %v2874, 0.35355338
    %v2879 = vsel %vm384, %v2876, -inf
    %2880 = vmax.xlane.f32.xlu0 %v2879
    %v2881 = vpop.xlane.xlu0 %2880
    %v2882 = vsel %vm384, %v2877, -inf
    %2883 = vmax.xlane.f32.xlu0 %v2882
    %v2884 = vpop.xlane.xlu0 %2883
    %v2885 = vsel %vm384, %v2878, -inf
    %2886 = vmax.xlane.f32.xlu0 %v2885
    %v2887 = vpop.xlane.xlu0 %2886
    %v2888 = vsub.f32 %v2876, %v2881
    %v2889 = vsub.f32 %v2877, %v2884
    %v2890 = vsub.f32 %v2878, %v2887
    %v2891 = vmul.f32 %v2888, 1.442695
    %v2892 = vpow.pop %v2891
    %v2893 = vmul.f32 %v2889, 1.442695
    %v2894 = vpow.pop %v2893
    %v2895 = vmul.f32 %v2890, 1.442695
    %v2896 = vpow.pop %v2895
    %v2897 = vsel %vm384, %v2892, 0.0
    %2898 = vadd.xlane.f32.xlu0 %v2897
    %v2899 = vpop.xlane.xlu0 %2898
    %v2900 = vsel %vm384, %v2894, 0.0
    %2901 = vadd.xlane.f32.xlu0 %v2900
    %v2902 = vpop.xlane.xlu0 %2901
    %v2903 = vsel %vm384, %v2896, 0.0
    %2904 = vadd.xlane.f32.xlu0 %v2903
    %v2905 = vpop.xlane.xlu0 %2904
    %v2906 = vrcp.pop %v2899
    %v2907 = vrcp.pop %v2902
    %v2908 = vrcp.pop %v2905
    %v2909 = vmul.f32 %v2892, %v2906
    %v2910 = vmul.f32 %v2894, %v2907
    %v2911 = vmul.f32 %v2896, %v2908
    %2912 = vrot.lane.b32.xlu0 %v2174, 64
    %v2913 = vpop.permute.xlu0 %2912
    %2914 = vrot.lane.b32.xlu0 %v2177, 64
    %v2915 = vpop.permute.xlu0 %2914
    %2916 = vrot.lane.b32.xlu0 %v2179, 64
    %v2917 = vpop.permute.xlu0 %2916
    %v2921 = vsel %vm384, %v2909, 0
    %v2924 = vsel %vm384, %v2910, 0
    %v2927 = vsel %vm384, %v2911, 0
    %v2929 = vsel %vm435, %v2917, 0
    %2931 = vmatpush.msra.mxu0 0.0
    %2932 = vmatpush.msra.mxu0 0.0
    %2933 = vmatpush.msra.mxu0 0.0
    %2934 = vmatpush.msra.mxu0 0.0
    %2935 = vmatpush.msra.mxu0 0.0
    %2936 = vmatpush.msra.mxu0 0.0
    %2937 = vmatpush.msra.mxu0 0.0
    %2938 = vmatpush.msra.mxu0 0.0
    %2939 = vmatpush.msra.mxu0 0.0
    %2940 = vmatpush.msra.mxu0 0.0
    %2941 = vmatpush.msra.mxu0 0.0
    %2942 = vmatpush.msra.mxu0 0.0
    %2943 = vmatpush.msra.mxu0 0.0
    %2944 = vmatpush.msra.mxu0 %v2929
    %2945 = vmatpush.msra.mxu0 %v2915
    %2946 = vmatpush.msra.mxu0 %v2913
    %2947 = vmatmul.f32.gmra.mxu0 %v2921
    %v2948 = vpop.f32.mrf.mxu0
    %v2949 = vadd.f32 0.0, %v2948
    %2950 = vmatmul.f32.gmra.mxu0 %v2924
    %v2951 = vpop.f32.mrf.mxu0
    %v2952 = vadd.f32 0.0, %v2951
    %2953 = vmatmul.f32.gmra.mxu0 %v2927
    %v2954 = vpop.f32.mrf.mxu0
    %v2955 = vadd.f32 0.0, %v2954
    %2956 = vdwg.mxu0
    %v2957 = vpack.c.bf16 %v2952, %v2949
    %v2958 = vpack.c.bf16 %v2955, %v2955
    %2959 = vrot.lane.b32.xlu0 %v2174, 120
    %v2960 = vpop.permute.xlu0 %2959
    %2961 = vrot.lane.b32.xlu0 %v2177, 120
    %v2962 = vpop.permute.xlu0 %2961
    %2963 = vrot.lane.b32.xlu0 %v2179, 120
    %v2964 = vpop.permute.xlu0 %2963
    %2965 = vrot.lane.b32.xlu0 %v2174, 88
    %v2966 = vpop.permute.xlu0 %2965
    %2967 = vrot.lane.b32.xlu0 %v2177, 88
    %v2968 = vpop.permute.xlu0 %2967
    %2969 = vrot.lane.b32.xlu0 %v2179, 88
    %v2970 = vpop.permute.xlu0 %2969
    %v2971 = vsel %vm342, %v2960, 0
    %v2973 = vsel %vm342, %v2962, 0
    %v2975 = vsel %vm342, %v2964, 0
    %v2977 = vsel %vm342, %v2966, 0
    %v2979 = vsel %vm342, %v2968, 0
    %v2981 = vsel %vm342, %v2970, 0
    %2983 = vmatpush.xpose.msra.mxu0 0.0
    %2984 = vmatpush.xpose.msra.mxu0 0.0
    %2985 = vmatpush.xpose.msra.mxu0 0.0
    %2986 = vmatpush.xpose.msra.mxu0 0.0
    %2987 = vmatpush.xpose.msra.mxu0 0.0
    %2988 = vmatpush.xpose.msra.mxu0 0.0
    %2989 = vmatpush.xpose.msra.mxu0 0.0
    %2990 = vmatpush.xpose.msra.mxu0 0.0
    %2991 = vmatpush.xpose.msra.mxu0 0.0
    %2992 = vmatpush.xpose.msra.mxu0 0.0
    %2993 = vmatpush.xpose.msra.mxu0 0.0
    %2994 = vmatpush.xpose.msra.mxu0 0.0
    %2995 = vmatpush.xpose.msra.mxu0 0.0
    %2996 = vmatpush.xpose.msra.mxu0 %v2981
    %2997 = vmatpush.xpose.msra.mxu0 %v2979
    %2998 = vmatpush.xpose.msra.mxu0 %v2977
    %2999 = vmatmul.f32.gmra.mxu0 %v2971
    %v3000 = vpop.f32.mrf.mxu0
    %v3001 = vadd.f32 0.0, %v3000
    %3002 = vmatmul.f32.gmra.mxu0 %v2973
    %v3003 = vpop.f32.mrf.mxu0
    %v3004 = vadd.f32 0.0, %v3003
    %3005 = vmatmul.f32.gmra.mxu0 %v2975
    %v3006 = vpop.f32.mrf.mxu0
    %v3007 = vadd.f32 0.0, %v3006
    %3008 = vdwg.mxu0
    %v3009 = vmul.f32 %v3001, 0.35355338
    %v3010 = vmul.f32 %v3004, 0.35355338
    %v3011 = vmul.f32 %v3007, 0.35355338
    %v3012 = vsel %vm384, %v3009, -inf
    %3013 = vmax.xlane.f32.xlu0 %v3012
    %v3014 = vpop.xlane.xlu0 %3013
    %v3015 = vsel %vm384, %v3010, -inf
    %3016 = vmax.xlane.f32.xlu0 %v3015
    %v3017 = vpop.xlane.xlu0 %3016
    %v3018 = vsel %vm384, %v3011, -inf
    %3019 = vmax.xlane.f32.xlu0 %v3018
    %v3020 = vpop.xlane.xlu0 %3019
    %v3021 = vsub.f32 %v3009, %v3014
    %v3022 = vsub.f32 %v3010, %v3017
    %v3023 = vsub.f32 %v3011, %v3020
    %v3024 = vmul.f32 %v3021, 1.442695
    %v3025 = vpow.pop %v3024
    %v3026 = vmul.f32 %v3022, 1.442695
    %v3027 = vpow.pop %v3026
    %v3028 = vmul.f32 %v3023, 1.442695
    %v3029 = vpow.pop %v3028
    %v3030 = vsel %vm384, %v3025, 0.0
    %3031 = vadd.xlane.f32.xlu0 %v3030
    %v3032 = vpop.xlane.xlu0 %3031
    %v3033 = vsel %vm384, %v3027, 0.0
    %3034 = vadd.xlane.f32.xlu0 %v3033
    %v3035 = vpop.xlane.xlu0 %3034
    %v3036 = vsel %vm384, %v3029, 0.0
    %3037 = vadd.xlane.f32.xlu0 %v3036
    %v3038 = vpop.xlane.xlu0 %3037
    %v3039 = vrcp.pop %v3032
    %v3040 = vrcp.pop %v3035
    %v3041 = vrcp.pop %v3038
    %v3042 = vmul.f32 %v3025, %v3039
    %v3043 = vmul.f32 %v3027, %v3040
    %v3044 = vmul.f32 %v3029, %v3041
    %3045 = vrot.lane.b32.xlu0 %v2174, 56
    %v3046 = vpop.permute.xlu0 %3045
    %3047 = vrot.lane.b32.xlu0 %v2177, 56
    %v3048 = vpop.permute.xlu0 %3047
    %3049 = vrot.lane.b32.xlu0 %v2179, 56
    %v3050 = vpop.permute.xlu0 %3049
    %v3054 = vsel %vm384, %v3042, 0
    %v3057 = vsel %vm384, %v3043, 0
    %v3060 = vsel %vm384, %v3044, 0
    %v3062 = vsel %vm435, %v3050, 0
    %3064 = vmatpush.msra.mxu0 0.0
    %3065 = vmatpush.msra.mxu0 0.0
    %3066 = vmatpush.msra.mxu0 0.0
    %3067 = vmatpush.msra.mxu0 0.0
    %3068 = vmatpush.msra.mxu0 0.0
    %3069 = vmatpush.msra.mxu0 0.0
    %3070 = vmatpush.msra.mxu0 0.0
    %3071 = vmatpush.msra.mxu0 0.0
    %3072 = vmatpush.msra.mxu0 0.0
    %3073 = vmatpush.msra.mxu0 0.0
    %3074 = vmatpush.msra.mxu0 0.0
    %3075 = vmatpush.msra.mxu0 0.0
    %3076 = vmatpush.msra.mxu0 0.0
    %3077 = vmatpush.msra.mxu0 %v3062
    %3078 = vmatpush.msra.mxu0 %v3048
    %3079 = vmatpush.msra.mxu0 %v3046
    %3080 = vmatmul.f32.gmra.mxu0 %v3054
    %v3081 = vpop.f32.mrf.mxu0
    %v3082 = vadd.f32 0.0, %v3081
    %3083 = vmatmul.f32.gmra.mxu0 %v3057
    %v3084 = vpop.f32.mrf.mxu0
    %v3085 = vadd.f32 0.0, %v3084
    %3086 = vmatmul.f32.gmra.mxu0 %v3060
    %v3087 = vpop.f32.mrf.mxu0
    %v3088 = vadd.f32 0.0, %v3087
    %3089 = vdwg.mxu0
    %v3090 = vpack.c.bf16 %v3085, %v3082
    %v3091 = vpack.c.bf16 %v3088, %v3088
    %v3093 = vsel %vm342, %v3090, 0
    %v3096 = vsel %vm342, %v3091, 0
    %3098 = vmatpush.bf16.msra.mxu0 0
    %3099 = vmatpush.bf16.msra.mxu0 0
    %3100 = vmatpush.bf16.msra.mxu0 0
    %3101 = vmatpush.bf16.msra.mxu0 0
    %3102 = vmatpush.bf16.msra.mxu0 0
    %3103 = vmatpush.bf16.msra.mxu0 0
    %3104 = vmatpush.bf16.msra.mxu0 0
    %3105 = vmatpush.bf16.msra.mxu0 %v2456
    %3106 = vmatmul.bf16.gmra.mxu0 %v3093
    %v3107 = vpop.f32.mrf.mxu0
    %v3108 = vadd.f32 0.0, %v3107
    %v3109 = vpop.f32.mrf.mxu0
    %v3110 = vadd.f32 0.0, %v3109
    %3111 = vmatmul.bf16.gmra.mxu0 %v3096
    %v3112 = vpop.f32.mrf.mxu0
    %v3113 = vadd.f32 0.0, %v3112
    %v3114 = vpop.f32.mrf.mxu0
    %3115 = vdwg.mxu0
    %v3117 = vsel %vm342, %v2957, 0
    %v3120 = vsel %vm342, %v2958, 0
    %3122 = vmatpush.bf16.msra.mxu0 0
    %3123 = vmatpush.bf16.msra.mxu0 0
    %3124 = vmatpush.bf16.msra.mxu0 0
    %3125 = vmatpush.bf16.msra.mxu0 0
    %3126 = vmatpush.bf16.msra.mxu0 0
    %3127 = vmatpush.bf16.msra.mxu0 0
    %3128 = vmatpush.bf16.msra.mxu0 0
    %3129 = vmatpush.bf16.msra.mxu0 %v2483
    %3130 = vmatmul.bf16.gmra.mxu0 %v3117
    %v3131 = vpop.f32.mrf.mxu0
    %v3132 = vadd.f32 %v3108, %v3131
    %v3133 = vpop.f32.mrf.mxu0
    %v3134 = vadd.f32 %v3110, %v3133
    %3135 = vmatmul.bf16.gmra.mxu0 %v3120
    %v3136 = vpop.f32.mrf.mxu0
    %v3137 = vadd.f32 %v3113, %v3136
    %v3138 = vpop.f32.mrf.mxu0
    %3139 = vdwg.mxu0
    %3140 = vrot.lane.b32.xlu0 %v2174, 112
    %v3141 = vpop.permute.xlu0 %3140
    %3142 = vrot.lane.b32.xlu0 %v2177, 112
    %v3143 = vpop.permute.xlu0 %3142
    %3144 = vrot.lane.b32.xlu0 %v2179, 112
    %v3145 = vpop.permute.xlu0 %3144
    %3146 = vrot.lane.b32.xlu0 %v2174, 80
    %v3147 = vpop.permute.xlu0 %3146
    %3148 = vrot.lane.b32.xlu0 %v2177, 80
    %v3149 = vpop.permute.xlu0 %3148
    %3150 = vrot.lane.b32.xlu0 %v2179, 80
    %v3151 = vpop.permute.xlu0 %3150
    %v3152 = vsel %vm342, %v3141, 0
    %v3154 = vsel %vm342, %v3143, 0
    %v3156 = vsel %vm342, %v3145, 0
    %v3158 = vsel %vm342, %v3147, 0
    %v3160 = vsel %vm342, %v3149, 0
    %v3162 = vsel %vm342, %v3151, 0
    %3164 = vmatpush.xpose.msra.mxu0 0.0
    %3165 = vmatpush.xpose.msra.mxu0 0.0
    %3166 = vmatpush.xpose.msra.mxu0 0.0
    %3167 = vmatpush.xpose.msra.mxu0 0.0
    %3168 = vmatpush.xpose.msra.mxu0 0.0
    %3169 = vmatpush.xpose.msra.mxu0 0.0
    %3170 = vmatpush.xpose.msra.mxu0 0.0
    %3171 = vmatpush.xpose.msra.mxu0 0.0
    %3172 = vmatpush.xpose.msra.mxu0 0.0
    %3173 = vmatpush.xpose.msra.mxu0 0.0
    %3174 = vmatpush.xpose.msra.mxu0 0.0
    %3175 = vmatpush.xpose.msra.mxu0 0.0
    %3176 = vmatpush.xpose.msra.mxu0 0.0
    %3177 = vmatpush.xpose.msra.mxu0 %v3162
    %3178 = vmatpush.xpose.msra.mxu0 %v3160
    %3179 = vmatpush.xpose.msra.mxu0 %v3158
    %3180 = vmatmul.f32.gmra.mxu0 %v3152
    %v3181 = vpop.f32.mrf.mxu0
    %v3182 = vadd.f32 0.0, %v3181
    %3183 = vmatmul.f32.gmra.mxu0 %v3154
    %v3184 = vpop.f32.mrf.mxu0
    %v3185 = vadd.f32 0.0, %v3184
    %3186 = vmatmul.f32.gmra.mxu0 %v3156
    %v3187 = vpop.f32.mrf.mxu0
    %v3188 = vadd.f32 0.0, %v3187
    %3189 = vdwg.mxu0
    %v3190 = vmul.f32 %v3182, 0.35355338
    %v3191 = vmul.f32 %v3185, 0.35355338
    %v3192 = vmul.f32 %v3188, 0.35355338
    %v3193 = vsel %vm384, %v3190, -inf
    %3194 = vmax.xlane.f32.xlu0 %v3193
    %v3195 = vpop.xlane.xlu0 %3194
    %v3196 = vsel %vm384, %v3191, -inf
    %3197 = vmax.xlane.f32.xlu0 %v3196
    %v3198 = vpop.xlane.xlu0 %3197
    %v3199 = vsel %vm384, %v3192, -inf
    %3200 = vmax.xlane.f32.xlu0 %v3199
    %v3201 = vpop.xlane.xlu0 %3200
    %v3202 = vsub.f32 %v3190, %v3195
    %v3203 = vsub.f32 %v3191, %v3198
    %v3204 = vsub.f32 %v3192, %v3201
    %v3205 = vmul.f32 %v3202, 1.442695
    %v3206 = vpow.pop %v3205
    %v3207 = vmul.f32 %v3203, 1.442695
    %v3208 = vpow.pop %v3207
    %v3209 = vmul.f32 %v3204, 1.442695
    %v3210 = vpow.pop %v3209
    %v3211 = vsel %vm384, %v3206, 0.0
    %3212 = vadd.xlane.f32.xlu0 %v3211
    %v3213 = vpop.xlane.xlu0 %3212
    %v3214 = vsel %vm384, %v3208, 0.0
    %3215 = vadd.xlane.f32.xlu0 %v3214
    %v3216 = vpop.xlane.xlu0 %3215
    %v3217 = vsel %vm384, %v3210, 0.0
    %3218 = vadd.xlane.f32.xlu0 %v3217
    %v3219 = vpop.xlane.xlu0 %3218
    %v3220 = vrcp.pop %v3213
    %v3221 = vrcp.pop %v3216
    %v3222 = vrcp.pop %v3219
    %v3223 = vmul.f32 %v3206, %v3220
    %v3224 = vmul.f32 %v3208, %v3221
    %v3225 = vmul.f32 %v3210, %v3222
    %3226 = vrot.lane.b32.xlu0 %v2174, 48
    %v3227 = vpop.permute.xlu0 %3226
    %3228 = vrot.lane.b32.xlu0 %v2177, 48
    %v3229 = vpop.permute.xlu0 %3228
    %3230 = vrot.lane.b32.xlu0 %v2179, 48
    %v3231 = vpop.permute.xlu0 %3230
    %v3235 = vsel %vm384, %v3223, 0
    %v3238 = vsel %vm384, %v3224, 0
    %v3241 = vsel %vm384, %v3225, 0
    %v3243 = vsel %vm435, %v3231, 0
    %3245 = vmatpush.msra.mxu0 0.0
    %3246 = vmatpush.msra.mxu0 0.0
    %3247 = vmatpush.msra.mxu0 0.0
    %3248 = vmatpush.msra.mxu0 0.0
    %3249 = vmatpush.msra.mxu0 0.0
    %3250 = vmatpush.msra.mxu0 0.0
    %3251 = vmatpush.msra.mxu0 0.0
    %3252 = vmatpush.msra.mxu0 0.0
    %3253 = vmatpush.msra.mxu0 0.0
    %3254 = vmatpush.msra.mxu0 0.0
    %3255 = vmatpush.msra.mxu0 0.0
    %3256 = vmatpush.msra.mxu0 0.0
    %3257 = vmatpush.msra.mxu0 0.0
    %3258 = vmatpush.msra.mxu0 %v3243
    %3259 = vmatpush.msra.mxu0 %v3229
    %3260 = vmatpush.msra.mxu0 %v3227
    %3261 = vmatmul.f32.gmra.mxu0 %v3235
    %v3262 = vpop.f32.mrf.mxu0
    %v3263 = vadd.f32 0.0, %v3262
    %3264 = vmatmul.f32.gmra.mxu0 %v3238
    %v3265 = vpop.f32.mrf.mxu0
    %v3266 = vadd.f32 0.0, %v3265
    %3267 = vmatmul.f32.gmra.mxu0 %v3241
    %v3268 = vpop.f32.mrf.mxu0
    %v3269 = vadd.f32 0.0, %v3268
    %3270 = vdwg.mxu0
    %v3271 = vpack.c.bf16 %v3266, %v3263
    %v3272 = vpack.c.bf16 %v3269, %v3269
    %v3274 = vsel %vm342, %v3271, 0
    %v3277 = vsel %vm342, %v3272, 0
    %3279 = vmatpush.bf16.msra.mxu0 0
    %3280 = vmatpush.bf16.msra.mxu0 0
    %3281 = vmatpush.bf16.msra.mxu0 0
    %3282 = vmatpush.bf16.msra.mxu0 0
    %3283 = vmatpush.bf16.msra.mxu0 0
    %3284 = vmatpush.bf16.msra.mxu0 0
    %3285 = vmatpush.bf16.msra.mxu0 0
    %3286 = vmatpush.bf16.msra.mxu0 %v2643
    %3287 = vmatmul.bf16.gmra.mxu0 %v3274
    %v3288 = vpop.f32.mrf.mxu0
    %v3289 = vadd.f32 0.0, %v3288
    %v3290 = vpop.f32.mrf.mxu0
    %v3291 = vadd.f32 0.0, %v3290
    %3292 = vmatmul.bf16.gmra.mxu0 %v3277
    %v3293 = vpop.f32.mrf.mxu0
    %v3294 = vadd.f32 0.0, %v3293
    %v3295 = vpop.f32.mrf.mxu0
    %3296 = vdwg.mxu0
    %v3297 = vadd.f32 %v3132, %v3289
    %v3298 = vadd.f32 %v3134, %v3291
    %v3299 = vadd.f32 %v3137, %v3294
    %3300 = vrot.lane.b32.xlu0 %v2174, 104
    %v3301 = vpop.permute.xlu0 %3300
    %3302 = vrot.lane.b32.xlu0 %v2177, 104
    %v3303 = vpop.permute.xlu0 %3302
    %3304 = vrot.lane.b32.xlu0 %v2179, 104
    %v3305 = vpop.permute.xlu0 %3304
    %3306 = vrot.lane.b32.xlu0 %v2174, 72
    %v3307 = vpop.permute.xlu0 %3306
    %3308 = vrot.lane.b32.xlu0 %v2177, 72
    %v3309 = vpop.permute.xlu0 %3308
    %3310 = vrot.lane.b32.xlu0 %v2179, 72
    %v3311 = vpop.permute.xlu0 %3310
    %v3312 = vsel %vm342, %v3301, 0
    %v3314 = vsel %vm342, %v3303, 0
    %v3316 = vsel %vm342, %v3305, 0
    %v3318 = vsel %vm342, %v3307, 0
    %v3320 = vsel %vm342, %v3309, 0
    %v3322 = vsel %vm342, %v3311, 0
    %3324 = vmatpush.xpose.msra.mxu0 0.0
    %3325 = vmatpush.xpose.msra.mxu0 0.0
    %3326 = vmatpush.xpose.msra.mxu0 0.0
    %3327 = vmatpush.xpose.msra.mxu0 0.0
    %3328 = vmatpush.xpose.msra.mxu0 0.0
    %3329 = vmatpush.xpose.msra.mxu0 0.0
    %3330 = vmatpush.xpose.msra.mxu0 0.0
    %3331 = vmatpush.xpose.msra.mxu0 0.0
    %3332 = vmatpush.xpose.msra.mxu0 0.0
    %3333 = vmatpush.xpose.msra.mxu0 0.0
    %3334 = vmatpush.xpose.msra.mxu0 0.0
    %3335 = vmatpush.xpose.msra.mxu0 0.0
    %3336 = vmatpush.xpose.msra.mxu0 0.0
    %3337 = vmatpush.xpose.msra.mxu0 %v3322
    %3338 = vmatpush.xpose.msra.mxu0 %v3320
    %3339 = vmatpush.xpose.msra.mxu0 %v3318
    %3340 = vmatmul.f32.gmra.mxu0 %v3312
    %v3341 = vpop.f32.mrf.mxu0
    %v3342 = vadd.f32 0.0, %v3341
    %3343 = vmatmul.f32.gmra.mxu0 %v3314
    %v3344 = vpop.f32.mrf.mxu0
    %v3345 = vadd.f32 0.0, %v3344
    %3346 = vmatmul.f32.gmra.mxu0 %v3316
    %v3347 = vpop.f32.mrf.mxu0
    %v3348 = vadd.f32 0.0, %v3347
    %3349 = vdwg.mxu0
    %v3350 = vmul.f32 %v3342, 0.35355338
    %v3351 = vmul.f32 %v3345, 0.35355338
    %v3352 = vmul.f32 %v3348, 0.35355338
    %v3353 = vsel %vm384, %v3350, -inf
    %3354 = vmax.xlane.f32.xlu0 %v3353
    %v3355 = vpop.xlane.xlu0 %3354
    %v3356 = vsel %vm384, %v3351, -inf
    %3357 = vmax.xlane.f32.xlu0 %v3356
    %v3358 = vpop.xlane.xlu0 %3357
    %v3359 = vsel %vm384, %v3352, -inf
    %3360 = vmax.xlane.f32.xlu0 %v3359
    %v3361 = vpop.xlane.xlu0 %3360
    %v3362 = vsub.f32 %v3350, %v3355
    %v3363 = vsub.f32 %v3351, %v3358
    %v3364 = vsub.f32 %v3352, %v3361
    %v3365 = vmul.f32 %v3362, 1.442695
    %v3366 = vpow.pop %v3365
    %v3367 = vmul.f32 %v3363, 1.442695
    %v3368 = vpow.pop %v3367
    %v3369 = vmul.f32 %v3364, 1.442695
    %v3370 = vpow.pop %v3369
    %v3371 = vsel %vm384, %v3366, 0.0
    %3372 = vadd.xlane.f32.xlu0 %v3371
    %v3373 = vpop.xlane.xlu0 %3372
    %v3374 = vsel %vm384, %v3368, 0.0
    %3375 = vadd.xlane.f32.xlu0 %v3374
    %v3376 = vpop.xlane.xlu0 %3375
    %v3377 = vsel %vm384, %v3370, 0.0
    %3378 = vadd.xlane.f32.xlu0 %v3377
    %v3379 = vpop.xlane.xlu0 %3378
    %v3380 = vrcp.pop %v3373
    %v3381 = vrcp.pop %v3376
    %v3382 = vrcp.pop %v3379
    %v3383 = vmul.f32 %v3366, %v3380
    %v3384 = vmul.f32 %v3368, %v3381
    %v3385 = vmul.f32 %v3370, %v3382
    %3386 = vrot.lane.b32.xlu0 %v2174, 40
    %v3387 = vpop.permute.xlu0 %3386
    %3388 = vrot.lane.b32.xlu0 %v2177, 40
    %v3389 = vpop.permute.xlu0 %3388
    %3390 = vrot.lane.b32.xlu0 %v2179, 40
    %v3391 = vpop.permute.xlu0 %3390
    %v3395 = vsel %vm384, %v3383, 0
    %v3398 = vsel %vm384, %v3384, 0
    %v3401 = vsel %vm384, %v3385, 0
    %v3403 = vsel %vm435, %v3391, 0
    %3405 = vmatpush.msra.mxu0 0.0
    %3406 = vmatpush.msra.mxu0 0.0
    %3407 = vmatpush.msra.mxu0 0.0
    %3408 = vmatpush.msra.mxu0 0.0
    %3409 = vmatpush.msra.mxu0 0.0
    %3410 = vmatpush.msra.mxu0 0.0
    %3411 = vmatpush.msra.mxu0 0.0
    %3412 = vmatpush.msra.mxu0 0.0
    %3413 = vmatpush.msra.mxu0 0.0
    %3414 = vmatpush.msra.mxu0 0.0
    %3415 = vmatpush.msra.mxu0 0.0
    %3416 = vmatpush.msra.mxu0 0.0
    %3417 = vmatpush.msra.mxu0 0.0
    %3418 = vmatpush.msra.mxu0 %v3403
    %3419 = vmatpush.msra.mxu0 %v3389
    %3420 = vmatpush.msra.mxu0 %v3387
    %3421 = vmatmul.f32.gmra.mxu0 %v3395
    %v3422 = vpop.f32.mrf.mxu0
    %v3423 = vadd.f32 0.0, %v3422
    %3424 = vmatmul.f32.gmra.mxu0 %v3398
    %v3425 = vpop.f32.mrf.mxu0
    %v3426 = vadd.f32 0.0, %v3425
    %3427 = vmatmul.f32.gmra.mxu0 %v3401
    %v3428 = vpop.f32.mrf.mxu0
    %v3429 = vadd.f32 0.0, %v3428
    %3430 = vdwg.mxu0
    %v3431 = vpack.c.bf16 %v3426, %v3423
    %v3432 = vpack.c.bf16 %v3429, %v3429
    %v3434 = vsel %vm342, %v3431, 0
    %v3437 = vsel %vm342, %v3432, 0
    %3439 = vmatpush.bf16.msra.mxu0 0
    %3440 = vmatpush.bf16.msra.mxu0 0
    %3441 = vmatpush.bf16.msra.mxu0 0
    %3442 = vmatpush.bf16.msra.mxu0 0
    %3443 = vmatpush.bf16.msra.mxu0 0
    %3444 = vmatpush.bf16.msra.mxu0 0
    %3445 = vmatpush.bf16.msra.mxu0 0
    %3446 = vmatpush.bf16.msra.mxu0 %v2806
    %3447 = vmatmul.bf16.gmra.mxu0 %v3434
    %v3448 = vpop.f32.mrf.mxu0
    %v3449 = vadd.f32 0.0, %v3448
    %v3450 = vpop.f32.mrf.mxu0
    %v3451 = vadd.f32 0.0, %v3450
    %3452 = vmatmul.bf16.gmra.mxu0 %v3437
    %v3453 = vpop.f32.mrf.mxu0
    %v3454 = vadd.f32 0.0, %v3453
    %v3455 = vpop.f32.mrf.mxu0
    %3456 = vdwg.mxu0
    %v3457 = vadd.f32 %v3297, %v3449
    %v3458 = vadd.f32 %v3298, %v3451
    %v3459 = vadd.f32 %v3299, %v3454
    %v3460 = vperm.slane %v35, 7
    %v3461 = vadd.f32 %v1975, %v3460
    %v3462 = vadd.f32 %v1976, %v3460
    %v3463 = vadd.f32 %v1977, %v3460
    %v3464 = vadd.f32 %v1978, %v3460
    %v3465 = vadd.f32 %v1979, %v3460
    %v3466 = vadd.f32 %v1980, %v3460
    %v3467 = vadd.f32 %v3461, %v2826
    %v3468 = vadd.f32 %v3462, %v2827
    %v3469 = vadd.f32 %v3463, %v2828
    %v3470 = vadd.f32 %v3464, %v3457
    %v3471 = vadd.f32 %v3465, %v3458
    %v3472 = vadd.f32 %v3466, %v3459
    %v3473 = vsel %vm122, %v3467, 0.0
    %3474 = vadd.xlane.f32.xlu0 %v3473
    %v3475 = vpop.xlane.xlu0 %3474
    %v3476 = vsel %vm122, %v3468, 0.0
    %3477 = vadd.xlane.f32.xlu0 %v3476
    %v3478 = vpop.xlane.xlu0 %3477
    %v3479 = vsel %vm122, %v3469, 0.0
    %3480 = vadd.xlane.f32.xlu0 %v3479
    %v3481 = vpop.xlane.xlu0 %3480
    %v3482 = vsel %vm122, %v3470, 0.0
    %3483 = vadd.xlane.f32.xlu0 %v3482
    %v3484 = vpop.xlane.xlu0 %3483
    %v3485 = vsel %vm122, %v3471, 0.0
    %3486 = vadd.xlane.f32.xlu0 %v3485
    %v3487 = vpop.xlane.xlu0 %3486
    %v3488 = vsel %vm122, %v3472, 0.0
    %3489 = vadd.xlane.f32.xlu0 %v3488
    %v3490 = vpop.xlane.xlu0 %3489
    %v3491 = vmul.f32 %v3475, %v147
    %v3492 = vmul.f32 %v3478, %v147
    %v3493 = vmul.f32 %v3481, %v147
    %v3494 = vmul.f32 %v3484, %v147
    %v3495 = vmul.f32 %v3487, %v147
    %v3496 = vmul.f32 %v3490, %v147
    %v3497 = vsub.f32 %v3467, %v3491
    %v3498 = vsub.f32 %v3468, %v3492
    %v3499 = vsub.f32 %v3469, %v3493
    %v3500 = vsub.f32 %v3470, %v3494
    %v3501 = vsub.f32 %v3471, %v3495
    %v3502 = vsub.f32 %v3472, %v3496
    %v3503 = vmul.f32 %v3497, %v3497
    %v3504 = vmul.f32 %v3498, %v3498
    %v3505 = vmul.f32 %v3499, %v3499
    %v3506 = vmul.f32 %v3500, %v3500
    %v3507 = vmul.f32 %v3501, %v3501
    %v3508 = vmul.f32 %v3502, %v3502
    %v3509 = vsel %vm122, %v3503, 0.0
    %3510 = vadd.xlane.f32.xlu0 %v3509
    %v3511 = vpop.xlane.xlu0 %3510
    %v3512 = vsel %vm122, %v3504, 0.0
    %3513 = vadd.xlane.f32.xlu0 %v3512
    %v3514 = vpop.xlane.xlu0 %3513
    %v3515 = vsel %vm122, %v3505, 0.0
    %3516 = vadd.xlane.f32.xlu0 %v3515
    %v3517 = vpop.xlane.xlu0 %3516
    %v3518 = vsel %vm122, %v3506, 0.0
    %3519 = vadd.xlane.f32.xlu0 %v3518
    %v3520 = vpop.xlane.xlu0 %3519
    %v3521 = vsel %vm122, %v3507, 0.0
    %3522 = vadd.xlane.f32.xlu0 %v3521
    %v3523 = vpop.xlane.xlu0 %3522
    %v3524 = vsel %vm122, %v3508, 0.0
    %3525 = vadd.xlane.f32.xlu0 %v3524
    %v3526 = vpop.xlane.xlu0 %3525
    %v3527 = vmul.f32 %v3511, %v147
    %v3528 = vmul.f32 %v3514, %v147
    %v3529 = vmul.f32 %v3517, %v147
    %v3530 = vmul.f32 %v3520, %v147
    %v3531 = vmul.f32 %v3523, %v147
    %v3532 = vmul.f32 %v3526, %v147
    %v3533 = vadd.f32 %v3527, 1e-05
    %v3534 = vadd.f32 %v3528, 1e-05
    %v3535 = vadd.f32 %v3529, 1e-05
    %v3536 = vadd.f32 %v3530, 1e-05
    %v3537 = vadd.f32 %v3531, 1e-05
    %v3538 = vadd.f32 %v3532, 1e-05
    %v3539 = vrsqrt.pop %v3533
    %v3540 = vmul.f32 %v3539, %v3533
    %v3541 = vmul.f32 %v3540, %v3539
    %v3542 = vmul.f32 0.5, %v3541
    %v3543 = vsub.f32 1.5, %v3542
    %v3544 = vmul.f32 %v3539, %v3543
    %vm3545 = vweird.f32 %v3533
    %vm3546 = vweird.f32 %v3539
    %vm3547 = vmor %vm3545, %vm3546
    %v3548 = vsel %vm3547, %v3539, %v3544
    %v3549 = vrsqrt.pop %v3534
    %v3550 = vmul.f32 %v3549, %v3534
    %v3551 = vmul.f32 %v3550, %v3549
    %v3552 = vmul.f32 0.5, %v3551
    %v3553 = vsub.f32 1.5, %v3552
    %v3554 = vmul.f32 %v3549, %v3553
    %vm3555 = vweird.f32 %v3534
    %vm3556 = vweird.f32 %v3549
    %vm3557 = vmor %vm3555, %vm3556
    %v3558 = vsel %vm3557, %v3549, %v3554
    %v3559 = vrsqrt.pop %v3535
    %v3560 = vmul.f32 %v3559, %v3535
    %v3561 = vmul.f32 %v3560, %v3559
    %v3562 = vmul.f32 0.5, %v3561
    %v3563 = vsub.f32 1.5, %v3562
    %v3564 = vmul.f32 %v3559, %v3563
    %vm3565 = vweird.f32 %v3535
    %vm3566 = vweird.f32 %v3559
    %vm3567 = vmor %vm3565, %vm3566
    %v3568 = vsel %vm3567, %v3559, %v3564
    %v3569 = vrsqrt.pop %v3536
    %v3570 = vmul.f32 %v3569, %v3536
    %v3571 = vmul.f32 %v3570, %v3569
    %v3572 = vmul.f32 0.5, %v3571
    %v3573 = vsub.f32 1.5, %v3572
    %v3574 = vmul.f32 %v3569, %v3573
    %vm3575 = vweird.f32 %v3536
    %vm3576 = vweird.f32 %v3569
    %vm3577 = vmor %vm3575, %vm3576
    %v3578 = vsel %vm3577, %v3569, %v3574
    %v3579 = vrsqrt.pop %v3537
    %v3580 = vmul.f32 %v3579, %v3537
    %v3581 = vmul.f32 %v3580, %v3579
    %v3582 = vmul.f32 0.5, %v3581
    %v3583 = vsub.f32 1.5, %v3582
    %v3584 = vmul.f32 %v3579, %v3583
    %vm3585 = vweird.f32 %v3537
    %vm3586 = vweird.f32 %v3579
    %vm3587 = vmor %vm3585, %vm3586
    %v3588 = vsel %vm3587, %v3579, %v3584
    %v3589 = vrsqrt.pop %v3538
    %v3590 = vmul.f32 %v3589, %v3538
    %v3591 = vmul.f32 %v3590, %v3589
    %v3592 = vmul.f32 0.5, %v3591
    %v3593 = vsub.f32 1.5, %v3592
    %v3594 = vmul.f32 %v3589, %v3593
    %vm3595 = vweird.f32 %v3538
    %vm3596 = vweird.f32 %v3589
    %vm3597 = vmor %vm3595, %vm3596
    %v3598 = vsel %vm3597, %v3589, %v3594
    %v3599 = vmul.f32 %v3497, %v3548
    %v3600 = vmul.f32 %v3498, %v3558
    %v3601 = vmul.f32 %v3499, %v3568
    %v3602 = vmul.f32 %v3500, %v3578
    %v3603 = vmul.f32 %v3501, %v3588
    %v3604 = vmul.f32 %v3502, %v3598
    %v3605 = vperm.slane %v35, 5
    %v3606 = vmul.f32 %v3599, %v3605
    %v3607 = vmul.f32 %v3600, %v3605
    %v3608 = vmul.f32 %v3601, %v3605
    %v3609 = vmul.f32 %v3602, %v3605
    %v3610 = vmul.f32 %v3603, %v3605
    %v3611 = vmul.f32 %v3604, %v3605
    %v3612 = vperm.slane %v35, 6
    %v3613 = vadd.f32 %v3606, %v3612
    %v3614 = vadd.f32 %v3607, %v3612
    %v3615 = vadd.f32 %v3608, %v3612
    %v3616 = vadd.f32 %v3609, %v3612
    %v3617 = vadd.f32 %v3610, %v3612
    %v3618 = vadd.f32 %v3611, %v3612
    %v3619 = vpack.c.bf16 %v3614, %v3613
    %v3620 = vpack.c.bf16 %v3616, %v3615
    %v3621 = vpack.c.bf16 %v3618, %v3617
    %s3622 = scalar_lea.vmem %s6, 16
    %v3623 = vld [vmem:[%s3622] sm:$0xf]
    %v3624 = vld [vmem:[%s3622 + $0x4] sm:$0xf]
    %v3625 = vld [vmem:[%s3622 + $0x8] sm:$0xf]
    %v3626 = vld [vmem:[%s3622 + $0xc] sm:$0xf]
    %v3627 = vperm.slane %v36, 2
    %v3632 = vunpack.c.l.b16 %v3623
    %v3633 = vunpack.c.l.b16 %v3624
    %v3634 = vunpack.c.l.b16 %v3625
    %v3635 = vunpack.c.l.b16 %v3626
    %v3636 = vpack.c.b16 %v3633, %v3632
    %v3637 = vpack.c.b16 %v3635, %v3634
    %v3641 = vsel %vm122, %v3619, 0
    %v3644 = vsel %vm122, %v3620, 0
    %v3647 = vsel %vm122, %v3621, 0
    %3649 = vmatpush.bf16.msra.mxu0 0
    %3650 = vmatpush.bf16.msra.mxu0 0
    %3651 = vmatpush.bf16.msra.mxu0 0
    %3652 = vmatpush.bf16.msra.mxu0 0
    %3653 = vmatpush.bf16.msra.mxu0 0
    %3654 = vmatpush.bf16.msra.mxu0 0
    %3655 = vmatpush.bf16.msra.mxu0 %v3637
    %3656 = vmatpush.bf16.msra.mxu0 %v3636
    %3657 = vmatmul.bf16.gmra.mxu0 %v3641
    %v3658 = vpop.f32.mrf.mxu0
    %v3659 = vadd.f32 %v3627, %v3658
    %v3660 = vpop.f32.mrf.mxu0
    %v3661 = vadd.f32 %v3627, %v3660
    %3662 = vmatmul.bf16.gmra.mxu0 %v3644
    %v3663 = vpop.f32.mrf.mxu0
    %v3664 = vadd.f32 %v3627, %v3663
    %v3665 = vpop.f32.mrf.mxu0
    %v3666 = vadd.f32 %v3627, %v3665
    %3667 = vmatmul.bf16.gmra.mxu0 %v3647
    %v3668 = vpop.f32.mrf.mxu0
    %v3669 = vadd.f32 %v3627, %v3668
    %v3670 = vpop.f32.mrf.mxu0
    %v3671 = vadd.f32 %v3627, %v3670
    %3672 = vdwg.mxu0
    %v3673 = vmul.f32 %v3659, %v3659
    %v3674 = vmul.f32 %v3661, %v3661
    %v3675 = vmul.f32 %v3664, %v3664
    %v3676 = vmul.f32 %v3666, %v3666
    %v3677 = vmul.f32 %v3669, %v3669
    %v3678 = vmul.f32 %v3671, %v3671
    %v3679 = vmul.f32 %v3659, %v3673
    %v3680 = vmul.f32 %v3661, %v3674
    %v3681 = vmul.f32 %v3664, %v3675
    %v3682 = vmul.f32 %v3666, %v3676
    %v3683 = vmul.f32 %v3669, %v3677
    %v3684 = vmul.f32 %v3671, %v3678
    %v3685 = vmul.f32 %v3679, 0.044715
    %v3686 = vmul.f32 %v3680, 0.044715
    %v3687 = vmul.f32 %v3681, 0.044715
    %v3688 = vmul.f32 %v3682, 0.044715
    %v3689 = vmul.f32 %v3683, 0.044715
    %v3690 = vmul.f32 %v3684, 0.044715
    %v3691 = vadd.f32 %v3659, %v3685
    %v3692 = vadd.f32 %v3661, %v3686
    %v3693 = vadd.f32 %v3664, %v3687
    %v3694 = vadd.f32 %v3666, %v3688
    %v3695 = vadd.f32 %v3669, %v3689
    %v3696 = vadd.f32 %v3671, %v3690
    %v3697 = vmul.f32 %v3691, 0.7978846
    %v3698 = vmul.f32 %v3692, 0.7978846
    %v3699 = vmul.f32 %v3693, 0.7978846
    %v3700 = vmul.f32 %v3694, 0.7978846
    %v3701 = vmul.f32 %v3695, 0.7978846
    %v3702 = vmul.f32 %v3696, 0.7978846
    %v3703 = vtanh.pop %v3697
    %v3704 = vtanh.pop %v3698
    %v3705 = vtanh.pop %v3699
    %v3706 = vtanh.pop %v3700
    %v3707 = vtanh.pop %v3701
    %v3708 = vtanh.pop %v3702
    %v3709 = vadd.f32 %v3703, 1.0
    %v3710 = vadd.f32 %v3704, 1.0
    %v3711 = vadd.f32 %v3705, 1.0
    %v3712 = vadd.f32 %v3706, 1.0
    %v3713 = vadd.f32 %v3707, 1.0
    %v3714 = vadd.f32 %v3708, 1.0
    %v3715 = vmul.f32 %v3709, 0.5
    %v3716 = vmul.f32 %v3710, 0.5
    %v3717 = vmul.f32 %v3711, 0.5
    %v3718 = vmul.f32 %v3712, 0.5
    %v3719 = vmul.f32 %v3713, 0.5
    %v3720 = vmul.f32 %v3714, 0.5
    %v3721 = vmul.f32 %v3659, %v3715
    %v3722 = vmul.f32 %v3661, %v3716
    %v3723 = vmul.f32 %v3664, %v3717
    %v3724 = vmul.f32 %v3666, %v3718
    %v3725 = vmul.f32 %v3669, %v3719
    %v3726 = vmul.f32 %v3671, %v3720
    %v3727 = vpack.c.bf16 %v3722, %v3721
    %v3728 = vpack.c.bf16 %v3724, %v3723
    %v3729 = vpack.c.bf16 %v3726, %v3725
    %s3730 = scalar_lea.vmem %s7, 64
    %v3731 = vld [vmem:[%s3730] sm:$0xf]
    %v3732 = vld [vmem:[%s3730 + $0x4] sm:$0xf]
    %v3733 = vld [vmem:[%s3730 + $0x8] sm:$0xf]
    %v3734 = vld [vmem:[%s3730 + $0xc] sm:$0xf]
    %v3735 = vld [vmem:[%s3730 + $0x10] sm:$0xf]
    %v3736 = vld [vmem:[%s3730 + $0x14] sm:$0xf]
    %v3737 = vld [vmem:[%s3730 + $0x18] sm:$0xf]
    %v3738 = vld [vmem:[%s3730 + $0x1c] sm:$0xf]
    %v3739 = vld [vmem:[%s3730 + $0x20] sm:$0xf]
    %v3740 = vld [vmem:[%s3730 + $0x24] sm:$0xf]
    %v3741 = vld [vmem:[%s3730 + $0x28] sm:$0xf]
    %v3742 = vld [vmem:[%s3730 + $0x2c] sm:$0xf]
    %v3743 = vld [vmem:[%s3730 + $0x30] sm:$0xf]
    %v3744 = vld [vmem:[%s3730 + $0x34] sm:$0xf]
    %v3745 = vld [vmem:[%s3730 + $0x38] sm:$0xf]
    %v3746 = vld [vmem:[%s3730 + $0x3c] sm:$0xf]
    %v3763 = vunpack.c.l.b16 %v3731
    %v3764 = vunpack.c.l.b16 %v3732
    %v3765 = vunpack.c.l.b16 %v3733
    %v3766 = vunpack.c.l.b16 %v3734
    %v3767 = vunpack.c.l.b16 %v3735
    %v3768 = vunpack.c.l.b16 %v3736
    %v3769 = vunpack.c.l.b16 %v3737
    %v3770 = vunpack.c.l.b16 %v3738
    %v3771 = vunpack.c.l.b16 %v3739
    %v3772 = vunpack.c.l.b16 %v3740
    %v3773 = vunpack.c.l.b16 %v3741
    %v3774 = vunpack.c.l.b16 %v3742
    %v3775 = vunpack.c.l.b16 %v3743
    %v3776 = vunpack.c.l.b16 %v3744
    %v3777 = vunpack.c.l.b16 %v3745
    %v3778 = vunpack.c.l.b16 %v3746
    %v3779 = vpack.c.b16 %v3764, %v3763
    %v3780 = vpack.c.b16 %v3766, %v3765
    %v3781 = vpack.c.b16 %v3768, %v3767
    %v3782 = vpack.c.b16 %v3770, %v3769
    %v3783 = vpack.c.b16 %v3772, %v3771
    %v3784 = vpack.c.b16 %v3774, %v3773
    %v3785 = vpack.c.b16 %v3776, %v3775
    %v3786 = vpack.c.b16 %v3778, %v3777
    %3795 = vmatpush.bf16.msra.mxu0 %v3786
    %3796 = vmatpush.bf16.msra.mxu0 %v3785
    %3797 = vmatpush.bf16.msra.mxu0 %v3784
    %3798 = vmatpush.bf16.msra.mxu0 %v3783
    %3799 = vmatpush.bf16.msra.mxu0 %v3782
    %3800 = vmatpush.bf16.msra.mxu0 %v3781
    %3801 = vmatpush.bf16.msra.mxu0 %v3780
    %3802 = vmatpush.bf16.msra.mxu0 %v3779
    %3803 = vmatmul.bf16.gmra.mxu0 %v3727
    %v3804 = vpop.f32.mrf.mxu0
    %v3805 = vadd.f32 0.0, %v3804
    %v3806 = vpop.f32.mrf.mxu0
    %v3807 = vadd.f32 0.0, %v3806
    %3808 = vmatmul.bf16.gmra.mxu0 %v3728
    %v3809 = vpop.f32.mrf.mxu0
    %v3810 = vadd.f32 0.0, %v3809
    %v3811 = vpop.f32.mrf.mxu0
    %v3812 = vadd.f32 0.0, %v3811
    %3813 = vmatmul.bf16.gmra.mxu0 %v3729
    %v3814 = vpop.f32.mrf.mxu0
    %v3815 = vadd.f32 0.0, %v3814
    %v3816 = vpop.f32.mrf.mxu0
    %v3817 = vadd.f32 0.0, %v3816
    %3818 = vdwg.mxu0
    %v3819 = vadd.f32 %v3467, %v3805
    %v3820 = vadd.f32 %v3468, %v3807
    %v3821 = vadd.f32 %v3469, %v3810
    %v3822 = vadd.f32 %v3470, %v3812
    %v3823 = vadd.f32 %v3471, %v3815
    %v3824 = vadd.f32 %v3472, %v3817
    %v3825 = vperm.slane %v36, 0
    %v3826 = vadd.f32 %v3819, %v3825
    %v3827 = vadd.f32 %v3820, %v3825
    %v3828 = vadd.f32 %v3821, %v3825
    %v3829 = vadd.f32 %v3822, %v3825
    %v3830 = vadd.f32 %v3823, %v3825
    %v3831 = vadd.f32 %v3824, %v3825
    %v3832 = vlaneseq
    %v3833 = vand.u32 %v3832, 127
    %v3834 = vlaneseq
    %v3835 = vshrl.u32 %v3834, 7
    %v3836 = vmul.u32 %v3835, 24
    %vm3837 = vcmp.eq.s32.totalorder %v3833, %v3836
    %v3838 = vsel %vm3837, 1, 0
    %v3839 = vcvt.s32.f32 %v3838
    %v3841 = vsel %vm88, %v3839, 0
    %3843 = vmatpush.msra.mxu0 0.0
    %3844 = vmatpush.msra.mxu0 0.0
    %3845 = vmatpush.msra.mxu0 0.0
    %3846 = vmatpush.msra.mxu0 0.0
    %3847 = vmatpush.msra.mxu0 0.0
    %3848 = vmatpush.msra.mxu0 0.0
    %3849 = vmatpush.msra.mxu0 0.0
    %3850 = vmatpush.msra.mxu0 0.0
    %3851 = vmatpush.msra.mxu0 0.0
    %3852 = vmatpush.msra.mxu0 0.0
    %3853 = vmatpush.msra.mxu0 %v3831
    %3854 = vmatpush.msra.mxu0 %v3830
    %3855 = vmatpush.msra.mxu0 %v3829
    %3856 = vmatpush.msra.mxu0 %v3828
    %3857 = vmatpush.msra.mxu0 %v3827
    %3858 = vmatpush.msra.mxu0 %v3826
    %3859 = vmatmul.f32.gmra.mxu0 %v3841
    %v3860 = vpop.f32.mrf.mxu0
    %v3861 = vadd.f32 0.0, %v3860
    %3862 = vdwg.mxu0
    %vm3863 = vcmask 254976
    %v3864 = vsel %vm3863, %v3861, 0.0
    %3865 = vadd.xlane.f32.xlu0 %v3864
    %v3866 = vpop.xlane.xlu0 %3865
    %v3867 = vmul.f32 %v3866, %v147
    %v3868 = vsub.f32 %v3861, %v3867
    %v3869 = vmul.f32 %v3868, %v3868
    %v3870 = vsel %vm3863, %v3869, 0.0
    %3871 = vadd.xlane.f32.xlu0 %v3870
    %v3872 = vpop.xlane.xlu0 %3871
    %v3873 = vmul.f32 %v3872, %v147
    %v3874 = vadd.f32 %v3873, 1e-05
    %v3875 = vrsqrt.pop %v3874
    %v3876 = vmul.f32 %v3875, %v3874
    %v3877 = vmul.f32 %v3876, %v3875
    %v3878 = vmul.f32 0.5, %v3877
    %v3879 = vsub.f32 1.5, %v3878
    %v3880 = vmul.f32 %v3875, %v3879
    %vm3881 = vweird.f32 %v3874
    %vm3882 = vweird.f32 %v3875
    %vm3883 = vmor %vm3881, %vm3882
    %v3884 = vsel %vm3883, %v3875, %v3880
    %v3885 = vmul.f32 %v3868, %v3884
    %v3886 = vperm.slane %v34, 0
    %v3887 = vmul.f32 %v3885, %v3886
    %v3888 = vperm.slane %v34, 1
    %v3889 = vadd.f32 %v3887, %v3888
    %v3890 = vpack.c.bf16 %v3889, %v3889
    %v3891 = vld [vmem:[%s8] sm:$0xf]
    %v3892 = vld [vmem:[%s8 + $0x4] sm:$0xf]
    %v3893 = vld [vmem:[%s8 + $0x8] sm:$0xf]
    %v3894 = vld [vmem:[%s8 + $0xc] sm:$0xf]
    %v3895 = vperm.slane %v34, 2
    %v3900 = vunpack.c.l.b16 %v3891
    %v3901 = vunpack.c.l.b16 %v3892
    %v3902 = vunpack.c.l.b16 %v3893
    %v3903 = vunpack.c.l.b16 %v3894
    %v3904 = vpack.c.b16 %v3901, %v3900
    %v3905 = vpack.c.b16 %v3903, %v3902
    %v3909 = vsel %vm122, %v3890, 0
    %3911 = vmatpush.bf16.msra.mxu0 0
    %3912 = vmatpush.bf16.msra.mxu0 0
    %3913 = vmatpush.bf16.msra.mxu0 0
    %3914 = vmatpush.bf16.msra.mxu0 0
    %3915 = vmatpush.bf16.msra.mxu0 0
    %3916 = vmatpush.bf16.msra.mxu0 0
    %3917 = vmatpush.bf16.msra.mxu0 %v3905
    %3918 = vmatpush.bf16.msra.mxu0 %v3904
    %3919 = vmatmul.bf16.gmra.mxu0 %v3909
    %v3920 = vpop.f32.mrf.mxu0
    %v3921 = vadd.f32 %v3895, %v3920
    %v3922 = vpop.f32.mrf.mxu0
    %3923 = vdwg.mxu0
    %3924 = vst [vmem:[#allocation2] sm:$0x3] %v3921
    // Predicated region
    $region38: #{vit_forward.1} parent=1 // pred_check
      _
    $region39: #{vit_forward.1} parent=1 // pred_check_branch
      %3926 = sbr.rel (0) target = $region41
    $region40: #{vit_forward.1} parent=1 // pred_region
      %3928 = vsyncadd [#allocation3], 0
      %s3930 = sshll.u32 [#allocation2], 4
      %s3931 = int_to_ptr.vmem [resolvable:$true] %s3930
      %s3932 = sshll.u32 %s9, 4
      %s3933 = int_to_ptr.hbm [resolvable:$true] %s3932
      %3935 = dma.vmem_to_hbm [thread:$0]  %s3931, 32, %s3933, [#allocation3]
    $region41: #{vit_forward.1} parent=1 // pred_fallthru
      _
    // Predicated region
    $region42: #{vit_forward.1} parent=1 // pred_check
      _
    $region43: #{vit_forward.1} parent=1 // pred_check_branch
      %3937 = sbr.rel (0) target = $region45
    $region44: #{vit_forward.1} parent=1 // pred_region
      %3939 = dma.done [#allocation3], 32
    $region45: #{vit_forward.1} parent=1 // pred_fallthru
      _
    %3940 = vsyncpa [#allocation3], 1

</llo_original>
